<compile_context>
chip_gen: v7x
topology: tpu7x:2x2x1
jax: 0.10.0
libtpu: 0.0.40
codegen_flags: <defaults>
</compile_context>

<pallas_src>
import functools

import jax
import jax.numpy as jnp
from jax.experimental import pallas as pl
from jax.experimental.pallas import tpu as pltpu


def _pick_tile(n, candidates):
    """Largest candidate tile that evenly divides n (falls back to n itself)."""
    for c in candidates:
        if c <= n and n % c == 0:
            return c
    return n


# ----------------------------------------------------------------------------
# Kernel A: fused q / kv projections, channel-major.
#   xq_ref/xx_ref : (1, C, tn) f32  (channel-major token tiles)
#   wq_ref        : (C, C)  bf16    (attention scale folded in)
#   wkv_ref       : (2C, C) bf16    (k rows then v rows)
#   q/k/v refs    : (1, C, tn) bf16 outputs (lane-dense: lane dim = tn >= 128)
# ----------------------------------------------------------------------------
def _qkv_proj_kernel(xq_ref, xx_ref, wq_ref, wkv_ref, q_ref, k_ref, v_ref):
    c = q_ref.shape[1]
    xq = xq_ref[0].astype(jnp.bfloat16)            # (C, tn)
    xx = xx_ref[0].astype(jnp.bfloat16)            # (C, tn)

    q_ref[0] = jnp.dot(wq_ref[...], xq,
                       preferred_element_type=jnp.float32).astype(q_ref.dtype)

    # Single fused k/v matmul: one weight load, (2C, tn) MXU output.
    kv = jnp.dot(wkv_ref[...], xx, preferred_element_type=jnp.float32)  # (2C, tn)
    k_ref[0] = kv[:c, :].astype(k_ref.dtype)
    v_ref[0] = kv[c:, :].astype(v_ref.dtype)


# ----------------------------------------------------------------------------
# Kernel B: single-pass softmax attention + fused output projection,
#           channel-major in and out.
#   q_ref : (1, C, tq) bf16       k_ref/v_ref : (1, C, N) bf16 (full keys)
#   wp_ref: (C, C) bf16           bp_ref      : (C, 1) f32
#   o_ref : (1, C, tq) f32  (lane-dense store: lane dim = tq >= 128)
# ----------------------------------------------------------------------------
def _attn_proj_kernel(q_ref, k_ref, v_ref, wp_ref, bp_ref, o_ref, *, num_heads):
    nh = num_heads
    _, c, tq = q_ref.shape
    hd = c // nh
    n = k_ref.shape[2]

    # Head split is a free leading-dim split in channel-major layout.
    k_cm = k_ref[0].reshape(nh, hd, n)             # (nh, hd, N) bf16
    v_cm = v_ref[0].reshape(nh, hd, n)             # (nh, hd, N) bf16

    # q to (nh, tq, hd) via a small minor-dims transpose (done in f32 - cheap
    # and robustly supported), then back to bf16 for the MXU.
    q_t = jnp.transpose(
        q_ref[0].astype(jnp.float32).reshape(nh, hd, tq),
        (0, 2, 1)).astype(jnp.bfloat16)            # (nh, tq, hd)

    # Scores (scale already folded into Wq): heads batched via einsum batch dim.
    s = jnp.einsum("hqd,hdk->hqk", q_t, k_cm,
                   preferred_element_type=jnp.float32)        # (nh, tq, N) f32

    # Single-pass softmax over the full key axis (K/V resident in VMEM).
    m = jnp.max(s, axis=-1, keepdims=True)
    p = jnp.exp(s - m)
    l = jnp.sum(p, axis=-1, keepdims=True)
    p = (p * pl.reciprocal(l, approx=True)).astype(v_cm.dtype)  # bf16 weights

    # Context, channel-major: ctx[h, d, q] = sum_k v[h, d, k] * p[h, q, k].
    ctx = jnp.einsum("hdk,hqk->hdq", v_cm, p,
                     preferred_element_type=jnp.float32)      # (nh, hd, tq) f32
    ctx = ctx.reshape(c, tq).astype(wp_ref.dtype)             # (C, tq) bf16

    # Output projection: one full-depth (C,C)@(C,tq) MXU matmul + bias.
    out = jnp.dot(wp_ref[...], ctx, preferred_element_type=jnp.float32)
    o_ref[0] = (out + bp_ref[...]).astype(o_ref.dtype)


# ----------------------------------------------------------------------------
# Wrapper: NCHW in / NCHW out, everything channel-major in between.
# ----------------------------------------------------------------------------
def cross_attention_fast(query, x, params, *, num_heads, sr_ratio=1):
    """query, x: (B, C, W, H) float32.  Returns (B, C, W, H) float32."""
    if query.shape != x.shape:
        raise ValueError(f"query shape {query.shape} should equal x shape {x.shape}.")
    if sr_ratio != 1:
        # TODO(synk): sr_ratio > 1 spatial-reduction path not implemented.
        raise NotImplementedError("only sr_ratio == 1 is supported")

    B, C, W, Hs = x.shape
    N = W * Hs
    nh = num_heads
    hd = C // nh
    scale = hd ** (-0.5)

    # Channel-major token matrices: pure reshapes of NCHW (no transpose pass).
    xq_cm = query.reshape(B, C, N)
    xx_cm = x.reshape(B, C, N)

    # Channel-major math uses the PyTorch (out, in) weights as-is:
    #   out[o, n] = sum_i W[o, i] * x_cm[i, n].
    wq_s = (params["wq"] * scale).astype(jnp.bfloat16)    # (C, C), scale folded
    wkv = params["wkv"].astype(jnp.bfloat16)              # (2C, C): k rows, v rows
    wp = params["wp"].astype(jnp.bfloat16)                # (C, C)
    bp = params["bp"].reshape(C, 1).astype(jnp.float32)   # (C, 1) column bias

    # --- Kernel A: fused q / kv projections over token tiles. ---
    tn = _pick_tile(N, (512, 256, 128))
    q_cm, k_cm, v_cm = pl.pallas_call(
        _qkv_proj_kernel,
        out_shape=(
            jax.ShapeDtypeStruct((B, C, N), jnp.bfloat16),
            jax.ShapeDtypeStruct((B, C, N), jnp.bfloat16),
            jax.ShapeDtypeStruct((B, C, N), jnp.bfloat16),
        ),
        grid_spec=pltpu.PrefetchScalarGridSpec(
            num_scalar_prefetch=0,
            grid=(B, N // tn),
            in_specs=[
                pl.BlockSpec((1, C, tn), lambda b, i: (b, 0, i)),   # query tokens
                pl.BlockSpec((1, C, tn), lambda b, i: (b, 0, i)),   # kv tokens
                pl.BlockSpec((C, C), lambda b, i: (0, 0)),          # Wq * scale
                pl.BlockSpec((2 * C, C), lambda b, i: (0, 0)),      # Wkv (fused)
            ],
            out_specs=[
                pl.BlockSpec((1, C, tn), lambda b, i: (b, 0, i)),
                pl.BlockSpec((1, C, tn), lambda b, i: (b, 0, i)),
                pl.BlockSpec((1, C, tn), lambda b, i: (b, 0, i)),
            ],
        ),
        compiler_params=pltpu.CompilerParams(
            dimension_semantics=("parallel", "parallel")),
    )(xq_cm, xx_cm, wq_s, wkv)

    # --- Kernel B: single-pass attention + output projection, channel-major. ---
    tq = _pick_tile(N, (256, 128))
    out_cm = pl.pallas_call(
        functools.partial(_attn_proj_kernel, num_heads=nh),
        out_shape=jax.ShapeDtypeStruct((B, C, N), jnp.float32),
        grid_spec=pltpu.PrefetchScalarGridSpec(
            num_scalar_prefetch=0,
            grid=(B, N // tq),
            in_specs=[
                pl.BlockSpec((1, C, tq), lambda b, qi: (b, 0, qi)),  # q tile
                pl.BlockSpec((1, C, N), lambda b, qi: (b, 0, 0)),    # full K
                pl.BlockSpec((1, C, N), lambda b, qi: (b, 0, 0)),    # full V
                pl.BlockSpec((C, C), lambda b, qi: (0, 0)),          # Wp
                pl.BlockSpec((C, 1), lambda b, qi: (0, 0)),          # proj bias
            ],
            out_specs=pl.BlockSpec((1, C, tq), lambda b, qi: (b, 0, qi)),
        ),
        compiler_params=pltpu.CompilerParams(
            dimension_semantics=("parallel", "parallel")),
    )(q_cm, k_cm, v_cm, wp, bp)

    # (B, C, N) -> (B, C, W, H): pure reshape, no transpose pass.
    return out_cm.reshape(B, C, W, Hs)


# ----------------------------------------------------------------------------
# Pure-JAX (f32) reference mirroring the PyTorch forward, sr_ratio = 1.
# ----------------------------------------------------------------------------
def reference_forward(query, x, params, *, num_heads):
    B, C, W, Hs = x.shape
    N = W * Hs
    hd = C // num_heads
    scale = hd ** (-0.5)

    q_in = jnp.transpose(query, (0, 2, 3, 1)).reshape(B, N, C)
    x_in = jnp.transpose(x, (0, 2, 3, 1)).reshape(B, N, C)

    q = q_in @ params["wq"].T
    kv = x_in @ params["wkv"].T

    q = q.reshape(B, N, num_heads, hd).transpose(0, 2, 1, 3)
    kv = kv.reshape(B, N, 2, num_heads, hd).transpose(2, 0, 3, 1, 4)
    k, v = kv[0], kv[1]

    attn = jnp.einsum("bhqd,bhkd->bhqk", q, k) * scale
    attn = jax.nn.softmax(attn, axis=-1)
    o = jnp.einsum("bhqk,bhkd->bhqd", attn, v)
    o = o.transpose(0, 2, 1, 3).reshape(B, N, C)
    o = o @ params["wp"].T + params["bp"]
    return jnp.transpose(o.reshape(B, W, Hs, C), (0, 3, 1, 2))


# ----------------------------------------------------------------------------
# Deterministic parameter init (mimics trunc_normal std=0.02, zero biases).
# ----------------------------------------------------------------------------
def init_params(key, dim):
    k1, k2, k3 = jax.random.split(key, 3)
    return {
        # nn.Linear weight layout: (out_features, in_features)
        "wq": 0.02 * jax.random.normal(k1, (dim, dim), jnp.float32),
        "wkv": 0.02 * jax.random.normal(k2, (2 * dim, dim), jnp.float32),
        "wp": 0.02 * jax.random.normal(k3, (dim, dim), jnp.float32),
        "bp": jnp.zeros((dim,), jnp.float32),   # nn.init.constant_(bias, 0)
    }


if __name__ == "__main__":
    B, C, W, Hs = 2, 32, 16, 16      # N = 256 tokens -> exercises tiling paths
    num_heads = 4

    key = jax.random.PRNGKey(0)
    k_q, k_x, k_p = jax.random.split(key, 3)
    query = jax.random.normal(k_q, (B, C, W, Hs), jnp.float32)
    x = jax.random.normal(k_x, (B, C, W, Hs), jnp.float32)
    params = init_params(k_p, C)

    fwd = jax.jit(functools.partial(cross_attention_fast, num_heads=num_heads))
    out = jax.block_until_ready(fwd(query, x, params))

    ref = reference_forward(query, x, params, num_heads=num_heads)
    assert out.shape == (B, C, W, Hs), out.shape
    max_err = float(jnp.max(jnp.abs(out - ref)))
    # bf16 MXU operands + approx-reciprocal softmax vs a pure-f32 reference.
    assert jnp.allclose(out, ref, rtol=2e-2, atol=1e-3), max_err

    print("KERNEL_OK")
</pallas_src>

<mosaic_0001>
module attributes {stable_mosaic.version = 11 : i64} {
  func.func @_qkv_proj_kernel(%arg0: i32, %arg1: i32, %arg2: memref<1x32x256xf32, #tpu.memory_space<vmem>>, %arg3: memref<1x32x256xf32, #tpu.memory_space<vmem>>, %arg4: memref<32x32xbf16, #tpu.memory_space<vmem>>, %arg5: memref<64x32xbf16, #tpu.memory_space<vmem>>, %arg6: memref<1x32x256xbf16, #tpu.memory_space<vmem>>, %arg7: memref<1x32x256xbf16, #tpu.memory_space<vmem>>, %arg8: memref<1x32x256xbf16, #tpu.memory_space<vmem>>) attributes {dimension_semantics = [#tpu.dimension_semantics<parallel>, #tpu.dimension_semantics<parallel>], iteration_bounds = array<i64: 2, 1>, scalar_prefetch = 0 : i64, scratch_operands = 0 : i64, tpu.core_type = #tpu.core_type<tc>, window_params = [{transform_indices = @transform_0, window_bounds = array<i64: 1, 32, 256>}, {transform_indices = @transform_1, window_bounds = array<i64: 1, 32, 256>}, {pipeline_mode = #tpu.pipeline_mode<synchronous>, transform_indices = @transform_2, window_bounds = array<i64: 32, 32>}, {pipeline_mode = #tpu.pipeline_mode<synchronous>, transform_indices = @transform_3, window_bounds = array<i64: 64, 32>}, {transform_indices = @transform_4, window_bounds = array<i64: 1, 32, 256>}, {transform_indices = @transform_5, window_bounds = array<i64: 1, 32, 256>}, {transform_indices = @transform_6, window_bounds = array<i64: 1, 32, 256>}]} {
    %c0 = arith.constant 0 : index
    %c0_0 = arith.constant 0 : index
    %c0_1 = arith.constant 0 : index
    %0 = vector.load %arg2[%c0, %c0_0, %c0_1] : memref<1x32x256xf32, #tpu.memory_space<vmem>>, vector<1x32x256xf32>
    %1 = vector.shape_cast %0 : vector<1x32x256xf32> to vector<32x256xf32>
    %2 = arith.truncf %1 : vector<32x256xf32> to vector<32x256xbf16>
    %c0_2 = arith.constant 0 : index
    %c0_3 = arith.constant 0 : index
    %c0_4 = arith.constant 0 : index
    %3 = vector.load %arg3[%c0_2, %c0_3, %c0_4] : memref<1x32x256xf32, #tpu.memory_space<vmem>>, vector<1x32x256xf32>
    %4 = vector.shape_cast %3 : vector<1x32x256xf32> to vector<32x256xf32>
    %5 = arith.truncf %4 : vector<32x256xf32> to vector<32x256xbf16>
    %c0_5 = arith.constant 0 : index
    %c0_6 = arith.constant 0 : index
    %6 = vector.load %arg4[%c0_5, %c0_6] : memref<32x32xbf16, #tpu.memory_space<vmem>>, vector<32x32xbf16>
    %cst = arith.constant dense<0.000000e+00> : vector<32x256xf32>
    %7 = tpu.matmul %6, %2, %cst {dimension_numbers = #tpu.dot_dimension_numbers<[1], [0], [0], [1], [0, 0, 1, 1], [], []>} : vector<32x32xbf16>, vector<32x256xbf16>, vector<32x256xf32> -> vector<32x256xf32>
    %8 = arith.truncf %7 : vector<32x256xf32> to vector<32x256xbf16>
    %c0_7 = arith.constant 0 : index
    %c0_8 = arith.constant 0 : index
    %c0_9 = arith.constant 0 : index
    %9 = vector.load %arg6[%c0_7, %c0_8, %c0_9] : memref<1x32x256xbf16, #tpu.memory_space<vmem>>, vector<1x32x256xbf16>
    %10 = vector.shape_cast %9 : vector<1x32x256xbf16> to vector<32x256xbf16>
    %11 = vector.shape_cast %8 : vector<32x256xbf16> to vector<1x32x256xbf16>
    tpu.vector_store %arg6[%c0_7, %c0_8, %c0_9], %11 {strides = array<i32>} : memref<1x32x256xbf16, #tpu.memory_space<vmem>>, vector<1x32x256xbf16>,
    %c0_10 = arith.constant 0 : index
    %c0_11 = arith.constant 0 : index
    %12 = vector.load %arg5[%c0_10, %c0_11] : memref<64x32xbf16, #tpu.memory_space<vmem>>, vector<64x32xbf16>
    %cst_12 = arith.constant dense<0.000000e+00> : vector<64x256xf32>
    %13 = tpu.matmul %12, %5, %cst_12 {dimension_numbers = #tpu.dot_dimension_numbers<[1], [0], [0], [1], [0, 0, 1, 1], [], []>} : vector<64x32xbf16>, vector<32x256xbf16>, vector<64x256xf32> -> vector<64x256xf32>
    %14 = vector.extract_strided_slice %13 {offsets = [0, 0], sizes = [32, 256], strides = [1, 1]} : vector<64x256xf32> to vector<32x256xf32>
    %15 = arith.truncf %14 : vector<32x256xf32> to vector<32x256xbf16>
    %c0_13 = arith.constant 0 : index
    %c0_14 = arith.constant 0 : index
    %c0_15 = arith.constant 0 : index
    %16 = vector.load %arg7[%c0_13, %c0_14, %c0_15] : memref<1x32x256xbf16, #tpu.memory_space<vmem>>, vector<1x32x256xbf16>
    %17 = vector.shape_cast %16 : vector<1x32x256xbf16> to vector<32x256xbf16>
    %18 = vector.shape_cast %15 : vector<32x256xbf16> to vector<1x32x256xbf16>
    tpu.vector_store %arg7[%c0_13, %c0_14, %c0_15], %18 {strides = array<i32>} : memref<1x32x256xbf16, #tpu.memory_space<vmem>>, vector<1x32x256xbf16>,
    %19 = vector.extract_strided_slice %13 {offsets = [32, 0], sizes = [32, 256], strides = [1, 1]} : vector<64x256xf32> to vector<32x256xf32>
    %20 = arith.truncf %19 : vector<32x256xf32> to vector<32x256xbf16>
    %c0_16 = arith.constant 0 : index
    %c0_17 = arith.constant 0 : index
    %c0_18 = arith.constant 0 : index
    %21 = vector.load %arg8[%c0_16, %c0_17, %c0_18] : memref<1x32x256xbf16, #tpu.memory_space<vmem>>, vector<1x32x256xbf16>
    %22 = vector.shape_cast %21 : vector<1x32x256xbf16> to vector<32x256xbf16>
    %23 = vector.shape_cast %20 : vector<32x256xbf16> to vector<1x32x256xbf16>
    tpu.vector_store %arg8[%c0_16, %c0_17, %c0_18], %23 {strides = array<i32>} : memref<1x32x256xbf16, #tpu.memory_space<vmem>>, vector<1x32x256xbf16>,
    return
  }
  func.func @transform_0(%arg0: i32, %arg1: i32) -> (i32, i32, i32) {
    %c0_i32 = arith.constant 0 : i32
    %c0_i32_0 = arith.constant 0 : i32
    return %arg0, %c0_i32, %arg1 : i32, i32, i32
  }
  func.func @transform_1(%arg0: i32, %arg1: i32) -> (i32, i32, i32) {
    %c0_i32 = arith.constant 0 : i32
    %c0_i32_0 = arith.constant 0 : i32
    return %arg0, %c0_i32, %arg1 : i32, i32, i32
  }
  func.func @transform_2(%arg0: i32, %arg1: i32) -> (i32, i32) {
    %c0_i32 = arith.constant 0 : i32
    %c0_i32_0 = arith.constant 0 : i32
    %c0_i32_1 = arith.constant 0 : i32
    return %c0_i32, %c0_i32_0 : i32, i32
  }
  func.func @transform_3(%arg0: i32, %arg1: i32) -> (i32, i32) {
    %c0_i32 = arith.constant 0 : i32
    %c0_i32_0 = arith.constant 0 : i32
    %c0_i32_1 = arith.constant 0 : i32
    return %c0_i32, %c0_i32_0 : i32, i32
  }
  func.func @transform_4(%arg0: i32, %arg1: i32) -> (i32, i32, i32) {
    %c0_i32 = arith.constant 0 : i32
    %c0_i32_0 = arith.constant 0 : i32
    return %arg0, %c0_i32, %arg1 : i32, i32, i32
  }
  func.func @transform_5(%arg0: i32, %arg1: i32) -> (i32, i32, i32) {
    %c0_i32 = arith.constant 0 : i32
    %c0_i32_0 = arith.constant 0 : i32
    return %arg0, %c0_i32, %arg1 : i32, i32, i32
  }
  func.func @transform_6(%arg0: i32, %arg1: i32) -> (i32, i32, i32) {
    %c0_i32 = arith.constant 0 : i32
    %c0_i32_0 = arith.constant 0 : i32
    return %arg0, %c0_i32, %arg1 : i32, i32, i32
  }
}

module attributes {stable_mosaic.version = 11 : i64} {
  func.func @_attn_proj_kernel(%arg0: i32, %arg1: i32, %arg2: memref<1x32x256xbf16, #tpu.memory_space<vmem>>, %arg3: memref<1x32x256xbf16, #tpu.memory_space<vmem>>, %arg4: memref<1x32x256xbf16, #tpu.memory_space<vmem>>, %arg5: memref<32x32xbf16, #tpu.memory_space<vmem>>, %arg6: memref<32x1xf32, #tpu.memory_space<vmem>>, %arg7: memref<1x32x256xf32, #tpu.memory_space<vmem>>) attributes {dimension_semantics = [#tpu.dimension_semantics<parallel>, #tpu.dimension_semantics<parallel>], iteration_bounds = array<i64: 2, 1>, scalar_prefetch = 0 : i64, scratch_operands = 0 : i64, tpu.core_type = #tpu.core_type<tc>, window_params = [{transform_indices = @transform_0, window_bounds = array<i64: 1, 32, 256>}, {transform_indices = @transform_1, window_bounds = array<i64: 1, 32, 256>}, {transform_indices = @transform_2, window_bounds = array<i64: 1, 32, 256>}, {pipeline_mode = #tpu.pipeline_mode<synchronous>, transform_indices = @transform_3, window_bounds = array<i64: 32, 32>}, {pipeline_mode = #tpu.pipeline_mode<synchronous>, transform_indices = @transform_4, window_bounds = array<i64: 32, 1>}, {transform_indices = @transform_5, window_bounds = array<i64: 1, 32, 256>}]} {
    %c0 = arith.constant 0 : index
    %c0_0 = arith.constant 0 : index
    %c0_1 = arith.constant 0 : index
    %0 = vector.load %arg3[%c0, %c0_0, %c0_1] : memref<1x32x256xbf16, #tpu.memory_space<vmem>>, vector<1x32x256xbf16>
    %1 = vector.shape_cast %0 : vector<1x32x256xbf16> to vector<32x256xbf16>
    %2 = vector.shape_cast %1 : vector<32x256xbf16> to vector<4x8x256xbf16>
    %c0_2 = arith.constant 0 : index
    %c0_3 = arith.constant 0 : index
    %c0_4 = arith.constant 0 : index
    %3 = vector.load %arg4[%c0_2, %c0_3, %c0_4] : memref<1x32x256xbf16, #tpu.memory_space<vmem>>, vector<1x32x256xbf16>
    %4 = vector.shape_cast %3 : vector<1x32x256xbf16> to vector<32x256xbf16>
    %5 = vector.shape_cast %4 : vector<32x256xbf16> to vector<4x8x256xbf16>
    %c0_5 = arith.constant 0 : index
    %c0_6 = arith.constant 0 : index
    %c0_7 = arith.constant 0 : index
    %6 = vector.load %arg2[%c0_5, %c0_6, %c0_7] : memref<1x32x256xbf16, #tpu.memory_space<vmem>>, vector<1x32x256xbf16>
    %7 = vector.shape_cast %6 : vector<1x32x256xbf16> to vector<32x256xbf16>
    %8 = arith.extf %7 : vector<32x256xbf16> to vector<32x256xf32>
    %9 = vector.shape_cast %8 : vector<32x256xf32> to vector<4x8x256xf32>
    %10 = tpu.transpose %9, [0, 2, 1] : vector<4x8x256xf32> -> vector<4x256x8xf32>
    %11 = arith.truncf %10 : vector<4x256x8xf32> to vector<4x256x8xbf16>
    "tpu.trace_start"() <{level = 10 : i32, message = "hqd,hdk->hqk"}> : () -> ()
    %cst = arith.constant dense<0.000000e+00> : vector<4x256x256xf32>
    %12 = tpu.matmul %11, %2, %cst {dimension_numbers = #tpu.dot_dimension_numbers<[2], [1], [1], [2], [0, 0, 0, 1, 1, 2], [0], [0]>} : vector<4x256x8xbf16>, vector<4x8x256xbf16>, vector<4x256x256xf32> -> vector<4x256x256xf32>
    "tpu.trace_stop"() : () -> ()
    %cst_8 = arith.constant dense<0xFF800000> : vector<4x256xf32>
    %13 = vector.multi_reduction <maximumf>, %12, %cst_8 [2] : vector<4x256x256xf32> to vector<4x256xf32>
    %14 = vector.shape_cast %13 : vector<4x256xf32> to vector<4x256x1xf32>
    %15 = vector.broadcast %14 : vector<4x256x1xf32> to vector<4x256x256xf32>
    %16 = arith.subf %12, %15 : vector<4x256x256xf32>
    %17 = math.exp %16 : vector<4x256x256xf32>
    %cst_9 = arith.constant dense<0.000000e+00> : vector<4x256xf32>
    %18 = vector.multi_reduction <add>, %17, %cst_9 [2] : vector<4x256x256xf32> to vector<4x256xf32>
    %19 = vector.shape_cast %18 : vector<4x256xf32> to vector<4x256x1xf32>
    %20 = tpu.reciprocal %19 {approx = true} : vector<4x256x1xf32> -> vector<4x256x1xf32>
    %21 = vector.broadcast %20 : vector<4x256x1xf32> to vector<4x256x256xf32>
    %22 = arith.mulf %17, %21 : vector<4x256x256xf32>
    %23 = arith.truncf %22 : vector<4x256x256xf32> to vector<4x256x256xbf16>
    "tpu.trace_start"() <{level = 10 : i32, message = "hdk,hqk->hdq"}> : () -> ()
    %cst_10 = arith.constant dense<0.000000e+00> : vector<4x8x256xf32>
    %24 = tpu.matmul %5, %23, %cst_10 {dimension_numbers = #tpu.dot_dimension_numbers<[2], [2], [1], [1], [0, 0, 0, 1, 1, 1], [0], [0]>} : vector<4x8x256xbf16>, vector<4x256x256xbf16>, vector<4x8x256xf32> -> vector<4x8x256xf32>
    "tpu.trace_stop"() : () -> ()
    %25 = vector.shape_cast %24 : vector<4x8x256xf32> to vector<32x256xf32>
    %26 = arith.truncf %25 : vector<32x256xf32> to vector<32x256xbf16>
    %c0_11 = arith.constant 0 : index
    %c0_12 = arith.constant 0 : index
    %27 = vector.load %arg5[%c0_11, %c0_12] : memref<32x32xbf16, #tpu.memory_space<vmem>>, vector<32x32xbf16>
    %cst_13 = arith.constant dense<0.000000e+00> : vector<32x256xf32>
    %28 = tpu.matmul %27, %26, %cst_13 {dimension_numbers = #tpu.dot_dimension_numbers<[1], [0], [0], [1], [0, 0, 1, 1], [], []>} : vector<32x32xbf16>, vector<32x256xbf16>, vector<32x256xf32> -> vector<32x256xf32>
    %c0_14 = arith.constant 0 : index
    %c0_15 = arith.constant 0 : index
    %29 = vector.load %arg6[%c0_14, %c0_15] : memref<32x1xf32, #tpu.memory_space<vmem>>, vector<32x1xf32>
    %30 = vector.broadcast %29 : vector<32x1xf32> to vector<32x256xf32>
    %31 = arith.addf %28, %30 : vector<32x256xf32>
    %c0_16 = arith.constant 0 : index
    %c0_17 = arith.constant 0 : index
    %c0_18 = arith.constant 0 : index
    %32 = vector.load %arg7[%c0_16, %c0_17, %c0_18] : memref<1x32x256xf32, #tpu.memory_space<vmem>>, vector<1x32x256xf32>
    %33 = vector.shape_cast %32 : vector<1x32x256xf32> to vector<32x256xf32>
    %34 = vector.shape_cast %31 : vector<32x256xf32> to vector<1x32x256xf32>
    tpu.vector_store %arg7[%c0_16, %c0_17, %c0_18], %34 {strides = array<i32>} : memref<1x32x256xf32, #tpu.memory_space<vmem>>, vector<1x32x256xf32>,
    return
  }
  func.func @transform_0(%arg0: i32, %arg1: i32) -> (i32, i32, i32) {
    %c0_i32 = arith.constant 0 : i32
    %c0_i32_0 = arith.constant 0 : i32
    return %arg0, %c0_i32, %arg1 : i32, i32, i32
  }
  func.func @transform_1(%arg0: i32, %arg1: i32) -> (i32, i32, i32) {
    %c0_i32 = arith.constant 0 : i32
    %c0_i32_0 = arith.constant 0 : i32
    %c0_i32_1 = arith.constant 0 : i32
    return %arg0, %c0_i32, %c0_i32_0 : i32, i32, i32
  }
  func.func @transform_2(%arg0: i32, %arg1: i32) -> (i32, i32, i32) {
    %c0_i32 = arith.constant 0 : i32
    %c0_i32_0 = arith.constant 0 : i32
    %c0_i32_1 = arith.constant 0 : i32
    return %arg0, %c0_i32, %c0_i32_0 : i32, i32, i32
  }
  func.func @transform_3(%arg0: i32, %arg1: i32) -> (i32, i32) {
    %c0_i32 = arith.constant 0 : i32
    %c0_i32_0 = arith.constant 0 : i32
    %c0_i32_1 = arith.constant 0 : i32
    return %c0_i32, %c0_i32_0 : i32, i32
  }
  func.func @transform_4(%arg0: i32, %arg1: i32) -> (i32, i32) {
    %c0_i32 = arith.constant 0 : i32
    %c0_i32_0 = arith.constant 0 : i32
    %c0_i32_1 = arith.constant 0 : i32
    return %c0_i32, %c0_i32_0 : i32, i32
  }
  func.func @transform_5(%arg0: i32, %arg1: i32) -> (i32, i32, i32) {
    %c0_i32 = arith.constant 0 : i32
    %c0_i32_0 = arith.constant 0 : i32
    return %arg0, %c0_i32, %arg1 : i32, i32, i32
  }
}

</mosaic_0001>

<llo_original>
// kernel: cross_attention_fast.2
$region0: #{cross_attention_fast.2}
  #allocation0 [shape = 'u32[]', space=smem, size = 0x4, offset = 0x4, fixed_abs, tag = 'smem constant byte address 0x4 - core index']
  #allocation1 [shape = 'u32[144,128]{1,0:T(1,128)}', space=vmem, size = 0x12000, scoped, tag = 'internal scratch']
  %s0 = inlined_call_operand.vmem [shape: f32[2,32,256], index: 0, kind: input, shape index: {}]
  %s1 = inlined_call_operand.vmem [shape: f32[2,32,256], index: 1, kind: input, shape index: {}]
  %s2 = inlined_call_operand.vmem [shape: bf16[32,32], index: 2, kind: input, shape index: {}]
  %s3 = inlined_call_operand.vmem [shape: bf16[64,32], index: 3, kind: input, shape index: {}]
  %s4 = inlined_call_operand.vmem [shape: bf16[2,32,256], index: 4, kind: output, shape index: {0}]
  %s5 = inlined_call_operand.vmem [shape: bf16[2,32,256], index: 5, kind: output, shape index: {1}]
  %s6 = inlined_call_operand.vmem [shape: bf16[2,32,256], index: 6, kind: output, shape index: {2}]
  %7 = xla_tuple %s4, %s5, %s6
  %s8 = sld [smem:[#allocation0]]
  $region65: #{cross_attention_fast.2} parent=0
    _
  %s10 = ssub.s32 1, %s8
  %s11 = scalar_select 0, %s10, %s8
  loop: start=0, step=1, limit=4
  $region2: #{cross_attention_fast.2} parent=0 // loop_pre_header
    _
  $region3: #{cross_attention_fast.2} parent=0 // loop_header
    %s13 = sphi 0, %s17
    %p14 = scmp.ge.s32.totalorder %s13, 4
    %s20 = sphi 0, %s32
    %s21 = sphi 0, %s28
    %s22 = sphi 0, %s20
    %s23 = sphi 0, %s21
    %s24 = sphi 0, %s22
    %s25 = sphi 0, %s23
    %s37 = sphi 0, %s39
    %s40 = sphi 0, %s37
    %s41 = sphi 0, %s40
    %s57 = sphi 0, %s41
    %s65 = sphi 0, %s67
    %s68 = sphi 0, %s65
    %s69 = sphi 0, %s68
    %s85 = sphi 0, %s69
    %s89 = sphi 0, %s89
    %s91 = sphi 0, %s89
    %s92 = sphi 0, %s91
    %s106 = sphi 0, %s92
    %s110 = sphi 0, %s110
    %s112 = sphi 0, %s110
    %s113 = sphi 0, %s112
    %s127 = sphi 0, %s113
    %s135 = sphi 0, %s137
    %s138 = sphi 0, %s135
    %s139 = sphi 0, %s138
    %s155 = sphi 0, %s139
    %s163 = sphi 0, %s165
    %s166 = sphi 0, %s163
    %s167 = sphi 0, %s166
    %s183 = sphi 0, %s167
    %s191 = sphi 0, %s193
    %s194 = sphi 0, %s191
    %s195 = sphi 0, %s194
    %s211 = sphi 0, %s195
  $region4: #{cross_attention_fast.2} parent=0 // loop_header_branch
    %16 = sbr.rel (%p14) target = $region8
  $region5: #{cross_attention_fast.2} parent=0 // loop_body
    %s18 = ssub.s32 %s13, 1
    %s19 = ssub.s32 %s13, 2
    %s26 = sadd.s32 1, %s21
    %p27 = scmp.ge.s32.totalorder %s26, 1
    %s28 = scalar_select %p27, 0, %s26
    %s29 = sadd.s32 1, %s20
    %s30 = scalar_select %p27, %s29, %s20
    %p31 = scmp.ge.s32.totalorder %s30, 2
    %s32 = scalar_select %p31, 0, %s30
    %s33 = ssub.s32 %s20, %s32
    %s34 = ssub.s32 %s21, %s28
    %s35 = sor.u32 %s33, %s34
    %p36 = scmp.eq.s32.totalorder %s35, 0
    %s38 = sadd.s32 %s37, 1
    %s39 = scalar_select %p36, %s37, %s38
    %p42 = pneg %p36
    %p43 = scmp.eq.s32.totalorder %s13, 1
    %p44 = por %p42, %p43
    %p45 = scmp.ne.s32.totalorder %s37, %s40
    %p46 = scmp.eq.s32.totalorder %s13, 0
    %p47 = por %p45, %p46
    %p48 = scmp.ne.s32.totalorder %s37, %s40
    %p49 = scmp.eq.s32.totalorder %s18, 1
    %p50 = por %p48, %p49
    %p51 = scmp.ne.s32.totalorder %s40, %s41
    %p52 = scmp.eq.s32.totalorder %s18, 0
    %p53 = por %p51, %p52
    %p54 = scmp.ne.s32.totalorder %s40, %s41
    %p55 = scmp.eq.s32.totalorder %s19, 1
    %p56 = por %p54, %p55
    %p58 = scmp.ne.s32.totalorder %s41, %s57
    %p59 = scmp.eq.s32.totalorder %s19, 0
    %p60 = por %p58, %p59
    %s61 = ssub.s32 %s20, %s32
    %s62 = ssub.s32 %s21, %s28
    %s63 = sor.u32 %s61, %s62
    %p64 = scmp.eq.s32.totalorder %s63, 0
    %s66 = sadd.s32 %s65, 1
    %s67 = scalar_select %p64, %s65, %s66
    %p70 = pneg %p64
    %p71 = scmp.eq.s32.totalorder %s13, 1
    %p72 = por %p70, %p71
    %p73 = scmp.ne.s32.totalorder %s65, %s68
    %p74 = scmp.eq.s32.totalorder %s13, 0
    %p75 = por %p73, %p74
    %p76 = scmp.ne.s32.totalorder %s65, %s68
    %p77 = scmp.eq.s32.totalorder %s18, 1
    %p78 = por %p76, %p77
    %p79 = scmp.ne.s32.totalorder %s68, %s69
    %p80 = scmp.eq.s32.totalorder %s18, 0
    %p81 = por %p79, %p80
    %p82 = scmp.ne.s32.totalorder %s68, %s69
    %p83 = scmp.eq.s32.totalorder %s19, 1
    %p84 = por %p82, %p83
    %p86 = scmp.ne.s32.totalorder %s69, %s85
    %p87 = scmp.eq.s32.totalorder %s19, 0
    %p88 = por %p86, %p87
    %s90 = sadd.s32 %s89, 1
    %p93 = scmp.eq.s32.totalorder %s13, 1
    %p94 = scmp.ne.s32.totalorder %s89, %s91
    %p95 = scmp.eq.s32.totalorder %s13, 0
    %p96 = por %p94, %p95
    %p97 = scmp.ne.s32.totalorder %s89, %s91
    %p98 = scmp.eq.s32.totalorder %s18, 1
    %p99 = por %p97, %p98
    %p100 = scmp.ne.s32.totalorder %s91, %s92
    %p101 = scmp.eq.s32.totalorder %s18, 0
    %p102 = por %p100, %p101
    %p103 = scmp.ne.s32.totalorder %s91, %s92
    %p104 = scmp.eq.s32.totalorder %s19, 1
    %p105 = por %p103, %p104
    %p107 = scmp.ne.s32.totalorder %s92, %s106
    %p108 = scmp.eq.s32.totalorder %s19, 0
    %p109 = por %p107, %p108
    %s111 = sadd.s32 %s110, 1
    %p114 = scmp.eq.s32.totalorder %s13, 1
    %p115 = scmp.ne.s32.totalorder %s110, %s112
    %p116 = scmp.eq.s32.totalorder %s13, 0
    %p117 = por %p115, %p116
    %p118 = scmp.ne.s32.totalorder %s110, %s112
    %p119 = scmp.eq.s32.totalorder %s18, 1
    %p120 = por %p118, %p119
    %p121 = scmp.ne.s32.totalorder %s112, %s113
    %p122 = scmp.eq.s32.totalorder %s18, 0
    %p123 = por %p121, %p122
    %p124 = scmp.ne.s32.totalorder %s112, %s113
    %p125 = scmp.eq.s32.totalorder %s19, 1
    %p126 = por %p124, %p125
    %p128 = scmp.ne.s32.totalorder %s113, %s127
    %p129 = scmp.eq.s32.totalorder %s19, 0
    %p130 = por %p128, %p129
    %s131 = ssub.s32 %s20, %s32
    %s132 = ssub.s32 %s21, %s28
    %s133 = sor.u32 %s131, %s132
    %p134 = scmp.eq.s32.totalorder %s133, 0
    %s136 = sadd.s32 %s135, 1
    %s137 = scalar_select %p134, %s135, %s136
    %p140 = pneg %p134
    %p141 = scmp.eq.s32.totalorder %s13, 1
    %p142 = por %p140, %p141
    %p143 = scmp.ne.s32.totalorder %s135, %s138
    %p144 = scmp.eq.s32.totalorder %s13, 0
    %p145 = por %p143, %p144
    %p146 = scmp.ne.s32.totalorder %s135, %s138
    %p147 = scmp.eq.s32.totalorder %s18, 1
    %p148 = por %p146, %p147
    %p149 = scmp.ne.s32.totalorder %s138, %s139
    %p150 = scmp.eq.s32.totalorder %s18, 0
    %p151 = por %p149, %p150
    %p152 = scmp.ne.s32.totalorder %s138, %s139
    %p153 = scmp.eq.s32.totalorder %s19, 1
    %p154 = por %p152, %p153
    %p156 = scmp.ne.s32.totalorder %s139, %s155
    %p157 = scmp.eq.s32.totalorder %s19, 0
    %p158 = por %p156, %p157
    %s159 = ssub.s32 %s20, %s32
    %s160 = ssub.s32 %s21, %s28
    %s161 = sor.u32 %s159, %s160
    %p162 = scmp.eq.s32.totalorder %s161, 0
    %s164 = sadd.s32 %s163, 1
    %s165 = scalar_select %p162, %s163, %s164
    %p168 = pneg %p162
    %p169 = scmp.eq.s32.totalorder %s13, 1
    %p170 = por %p168, %p169
    %p171 = scmp.ne.s32.totalorder %s163, %s166
    %p172 = scmp.eq.s32.totalorder %s13, 0
    %p173 = por %p171, %p172
    %p174 = scmp.ne.s32.totalorder %s163, %s166
    %p175 = scmp.eq.s32.totalorder %s18, 1
    %p176 = por %p174, %p175
    %p177 = scmp.ne.s32.totalorder %s166, %s167
    %p178 = scmp.eq.s32.totalorder %s18, 0
    %p179 = por %p177, %p178
    %p180 = scmp.ne.s32.totalorder %s166, %s167
    %p181 = scmp.eq.s32.totalorder %s19, 1
    %p182 = por %p180, %p181
    %p184 = scmp.ne.s32.totalorder %s167, %s183
    %p185 = scmp.eq.s32.totalorder %s19, 0
    %p186 = por %p184, %p185
    %s187 = ssub.s32 %s20, %s32
    %s188 = ssub.s32 %s21, %s28
    %s189 = sor.u32 %s187, %s188
    %p190 = scmp.eq.s32.totalorder %s189, 0
    %s192 = sadd.s32 %s191, 1
    %s193 = scalar_select %p190, %s191, %s192
    %p196 = pneg %p190
    %p197 = scmp.eq.s32.totalorder %s13, 1
    %p198 = por %p196, %p197
    %p199 = scmp.ne.s32.totalorder %s191, %s194
    %p200 = scmp.eq.s32.totalorder %s13, 0
    %p201 = por %p199, %p200
    %p202 = scmp.ne.s32.totalorder %s191, %s194
    %p203 = scmp.eq.s32.totalorder %s18, 1
    %p204 = por %p202, %p203
    %p205 = scmp.ne.s32.totalorder %s194, %s195
    %p206 = scmp.eq.s32.totalorder %s18, 0
    %p207 = por %p205, %p206
    %p208 = scmp.ne.s32.totalorder %s194, %s195
    %p209 = scmp.eq.s32.totalorder %s19, 1
    %p210 = por %p208, %p209
    %p212 = scmp.ne.s32.totalorder %s195, %s211
    %p213 = scmp.eq.s32.totalorder %s19, 0
    %p214 = por %p212, %p213
    %p215 = scmp.le.s32.totalorder 1, %s13
    %p216 = scmp.lt.s32.totalorder %s13, 3
    %p217 = pnand %p215, %p216
    %p218 = pneg %p217
    // Predicated region
    $region9: #{cross_attention_fast.2} parent=5 // pred_check
      _
    $region10: #{cross_attention_fast.2} parent=5 // pred_check_branch
      %220 = sbr.rel (%p217) target = $region12
    $region11: #{cross_attention_fast.2} parent=5 // pred_region
      %s221 = ssub.s32 %s13, 1
      // Predicated region
      $region13: #{cross_attention_fast.2} parent=11 // pred_check
        %p222 = pneg %p102
      $region14: #{cross_attention_fast.2} parent=11 // pred_check_branch
        %224 = sbr.rel (%p222) target = $region16
      $region15: #{cross_attention_fast.2} parent=11 // pred_region
        _
      $region16: #{cross_attention_fast.2} parent=11 // pred_fallthru
        _
      // Predicated region
      $region17: #{cross_attention_fast.2} parent=11 // pred_check
        %p225 = pneg %p123
      $region18: #{cross_attention_fast.2} parent=11 // pred_check_branch
        %227 = sbr.rel (%p225) target = $region20
      $region19: #{cross_attention_fast.2} parent=11 // pred_region
        _
      $region20: #{cross_attention_fast.2} parent=11 // pred_fallthru
        _
    $region12: #{cross_attention_fast.2} parent=5 // pred_fallthru
      _
    %p228 = scmp.lt.s32.totalorder %s13, 2
    // Predicated region
    $region21: #{cross_attention_fast.2} parent=5 // pred_check
      %p229 = pneg %p228
    $region22: #{cross_attention_fast.2} parent=5 // pred_check_branch
      %231 = sbr.rel (%p229) target = $region24
    $region23: #{cross_attention_fast.2} parent=5 // pred_region
      // Predicated region
      $region25: #{cross_attention_fast.2} parent=23 // pred_check
        %p232 = pneg %p47
      $region26: #{cross_attention_fast.2} parent=23 // pred_check_branch
        %234 = sbr.rel (%p232) target = $region28
      $region27: #{cross_attention_fast.2} parent=23 // pred_region
        %s235 = smul.u32 2, %s21
        %p236 = scmp.lt.s32.totalorder %s20, 1
        %s237 = scalar_select %p236, %s20, 1
        %p238 = scmp.lt.s32.totalorder %s235, 1
        %s239 = scalar_select %p238, %s235, 1
        %s240 = smul.addr %s237, 8
        %s241 = sadd.s32 %s239, %s240
        %s242 = smul.addr %s241, 8
        %s243 = scalar_lea.vmem %s0, %s242
        %s244 = smul.u32 2, %s21
      $region28: #{cross_attention_fast.2} parent=23 // pred_fallthru
        _
      // Predicated region
      $region29: #{cross_attention_fast.2} parent=23 // pred_check
        %p245 = pneg %p75
      $region30: #{cross_attention_fast.2} parent=23 // pred_check_branch
        %247 = sbr.rel (%p245) target = $region32
      $region31: #{cross_attention_fast.2} parent=23 // pred_region
        %s248 = smul.u32 2, %s21
        %p249 = scmp.lt.s32.totalorder %s20, 1
        %s250 = scalar_select %p249, %s20, 1
        %p251 = scmp.lt.s32.totalorder %s248, 1
        %s252 = scalar_select %p251, %s248, 1
        %s253 = smul.addr %s250, 8
        %s254 = sadd.s32 %s252, %s253
        %s255 = smul.addr %s254, 8
        %s256 = scalar_lea.vmem %s1, %s255
        %s257 = smul.u32 2, %s21
      $region32: #{cross_attention_fast.2} parent=23 // pred_fallthru
        _
    $region24: #{cross_attention_fast.2} parent=5 // pred_fallthru
      _
    %p258 = scmp.le.s32.totalorder 1, %s13
    %p259 = scmp.lt.s32.totalorder %s13, 3
    %p260 = pnand %p258, %p259
    %p261 = pneg %p260
    // Predicated region
    $region33: #{cross_attention_fast.2} parent=5 // pred_check
      _
    $region34: #{cross_attention_fast.2} parent=5 // pred_check_branch
      %263 = sbr.rel (%p260) target = $region36
    $region35: #{cross_attention_fast.2} parent=5 // pred_region
      %s264 = ssub.s32 %s13, 1
      %s265 = smul.u32 2, %s23
      %p266 = scmp.lt.s32.totalorder %s22, 1
      %s267 = scalar_select %p266, %s22, 1
      %p268 = scmp.lt.s32.totalorder %s265, 1
      %s269 = scalar_select %p268, %s265, 1
      %s270 = smul.addr %s267, 8
      %s271 = sadd.s32 %s269, %s270
      %s272 = smul.addr %s271, 8
      %s273 = scalar_lea.vmem %s0, %s272
      %p274 = pneg %p53
      %p275 = pneg %p50
      %s276 = smul.u32 2, %s23
      %p277 = scmp.lt.s32.totalorder %s22, 1
      %s278 = scalar_select %p277, %s22, 1
      %p279 = scmp.lt.s32.totalorder %s276, 1
      %s280 = scalar_select %p279, %s276, 1
      %s281 = smul.addr %s278, 8
      %s282 = sadd.s32 %s280, %s281
      %s283 = smul.addr %s282, 8
      %s284 = scalar_lea.vmem %s1, %s283
      %p285 = pneg %p81
      %p286 = pneg %p78
      %p287 = pneg %p102
      %p288 = pneg %p99
      %p289 = pneg %p123
      %p290 = pneg %p120
      %p291 = pneg %p151
      %p292 = pneg %p148
      %s293 = smul.u32 2, %s23
      %p294 = scmp.lt.s32.totalorder %s22, 1
      %s295 = scalar_select %p294, %s22, 1
      %p296 = scmp.lt.s32.totalorder %s293, 1
      %s297 = scalar_select %p296, %s293, 1
      %s298 = smul.addr %s295, 8
      %s299 = sadd.s32 %s297, %s298
      %s300 = smul.addr %s299, 4
      %s301 = scalar_lea.vmem %s4, %s300
      %p302 = pneg %p179
      %p303 = pneg %p176
      %s304 = smul.u32 2, %s23
      %p305 = scmp.lt.s32.totalorder %s22, 1
      %s306 = scalar_select %p305, %s22, 1
      %p307 = scmp.lt.s32.totalorder %s304, 1
      %s308 = scalar_select %p307, %s304, 1
      %s309 = smul.addr %s306, 8
      %s310 = sadd.s32 %s308, %s309
      %s311 = smul.addr %s310, 4
      %s312 = scalar_lea.vmem %s5, %s311
      %p313 = pneg %p207
      %p314 = pneg %p204
      %s315 = smul.u32 2, %s23
      %p316 = scmp.lt.s32.totalorder %s22, 1
      %s317 = scalar_select %p316, %s22, 1
      %p318 = scmp.lt.s32.totalorder %s315, 1
      %s319 = scalar_select %p318, %s315, 1
      %s320 = smul.addr %s317, 8
      %s321 = sadd.s32 %s319, %s320
      %s322 = smul.addr %s321, 4
      %s323 = scalar_lea.vmem %s6, %s322
      %s324 = smul.u32 2, %s23
      %p325 = scmp.lt.s32.totalorder %s22, 1
      %s326 = scalar_select %p325, %s22, 1
      %p327 = scmp.lt.s32.totalorder %s324, 1
      %s328 = scalar_select %p327, %s324, 1
      %s329 = smul.addr %s326, 8
      %s330 = sadd.s32 %s328, %s329
      %s331 = smul.addr %s330, 8
      %s332 = scalar_lea.vmem %s0, %s331
      %s333 = smul.u32 2, %s23
      %s334 = smul.u32 2, %s23
      %p335 = scmp.lt.s32.totalorder %s22, 1
      %s336 = scalar_select %p335, %s22, 1
      %p337 = scmp.lt.s32.totalorder %s334, 1
      %s338 = scalar_select %p337, %s334, 1
      %s339 = smul.addr %s336, 8
      %s340 = sadd.s32 %s338, %s339
      %s341 = smul.addr %s340, 8
      %s342 = scalar_lea.vmem %s1, %s341
      %s343 = smul.u32 2, %s23
      %s344 = smul.u32 2, %s23
      %p345 = scmp.lt.s32.totalorder %s22, 1
      %s346 = scalar_select %p345, %s22, 1
      %p347 = scmp.lt.s32.totalorder %s344, 1
      %s348 = scalar_select %p347, %s344, 1
      %s349 = smul.addr %s346, 8
      %s350 = sadd.s32 %s348, %s349
      %s351 = smul.addr %s350, 4
      %s352 = scalar_lea.vmem %s4, %s351
      %s353 = smul.u32 2, %s23
      %s354 = smul.u32 2, %s23
      %p355 = scmp.lt.s32.totalorder %s22, 1
      %s356 = scalar_select %p355, %s22, 1
      %p357 = scmp.lt.s32.totalorder %s354, 1
      %s358 = scalar_select %p357, %s354, 1
      %s359 = smul.addr %s356, 8
      %s360 = sadd.s32 %s358, %s359
      %s361 = smul.addr %s360, 4
      %s362 = scalar_lea.vmem %s5, %s361
      %s363 = smul.u32 2, %s23
      %s364 = smul.u32 2, %s23
      %p365 = scmp.lt.s32.totalorder %s22, 1
      %s366 = scalar_select %p365, %s22, 1
      %p367 = scmp.lt.s32.totalorder %s364, 1
      %s368 = scalar_select %p367, %s364, 1
      %s369 = smul.addr %s366, 8
      %s370 = sadd.s32 %s368, %s369
      %s371 = smul.addr %s370, 4
      %s372 = scalar_lea.vmem %s6, %s371
      %s373 = smul.u32 2, %s23
      %v375 = vld [vmem:[%s332] sm:$0xff]
      %v376 = vld [vmem:[%s332 + $0x8] sm:$0xff]
      %v377 = vld [vmem:[%s332 + $0x10] sm:$0xff]
      %v378 = vld [vmem:[%s332 + $0x18] sm:$0xff]
      %v379 = vld [vmem:[%s332 + $0x20] sm:$0xff]
      %v380 = vld [vmem:[%s332 + $0x28] sm:$0xff]
      %v381 = vld [vmem:[%s332 + $0x30] sm:$0xff]
      %v382 = vld [vmem:[%s332 + $0x38] sm:$0xff]
      %v383 = vpack.c.bf16 %v377, %v375
      %v384 = vpack.c.bf16 %v378, %v376
      %v385 = vpack.c.bf16 %v381, %v379
      %v386 = vpack.c.bf16 %v382, %v380
      %v387 = vld [vmem:[%s342] sm:$0xff]
      %v388 = vld [vmem:[%s342 + $0x8] sm:$0xff]
      %v389 = vld [vmem:[%s342 + $0x10] sm:$0xff]
      %v390 = vld [vmem:[%s342 + $0x18] sm:$0xff]
      %v391 = vld [vmem:[%s342 + $0x20] sm:$0xff]
      %v392 = vld [vmem:[%s342 + $0x28] sm:$0xff]
      %v393 = vld [vmem:[%s342 + $0x30] sm:$0xff]
      %v394 = vld [vmem:[%s342 + $0x38] sm:$0xff]
      %v395 = vpack.c.bf16 %v389, %v387
      %v396 = vpack.c.bf16 %v390, %v388
      %v397 = vpack.c.bf16 %v393, %v391
      %v398 = vpack.c.bf16 %v394, %v392
      %v399 = vld [vmem:[%s2] sm:$0xf]
      %v400 = vld [vmem:[%s2 + $0x4] sm:$0xf]
      %v401 = vld [vmem:[%s2 + $0x8] sm:$0xf]
      %v402 = vld [vmem:[%s2 + $0xc] sm:$0xf]
      %v407 = vunpack.c.l.b16 %v399
      %v408 = vunpack.c.l.b16 %v400
      %v409 = vunpack.c.l.b16 %v401
      %v410 = vunpack.c.l.b16 %v402
      %v411 = vpack.c.b16 %v408, %v407
      %v412 = vpack.c.b16 %v410, %v409
      %vm413 = vcmask 261120
      %v415 = vsel %vm413, %v411, 0
      %v418 = vsel %vm413, %v412, 0
      %420 = vmatprep.subr.bf16.mxu0 %v384
      %421 = vmatpush1.bf16.msra.mxu0 %v383
      %422 = vmatprep.subr.bf16.mxu0 %v386
      %423 = vmatpush1.bf16.msra.mxu0 %v385
      %424 = vmatprep.subr.bf16.mxu0 0
      %425 = vmatpush1.bf16.msra.mxu0 0
      %426 = vmatprep.subr.bf16.mxu0 0
      %427 = vmatpush1.bf16.msra.mxu0 0
      %428 = vmatprep.subr.bf16.mxu0 0
      %429 = vmatpush1.bf16.msra.mxu0 0
      %430 = vmatprep.subr.bf16.mxu0 0
      %431 = vmatpush1.bf16.msra.mxu0 0
      %432 = vmatprep.subr.bf16.mxu0 0
      %433 = vmatpush1.bf16.msra.mxu0 0
      %434 = vmatprep.subr.bf16.mxu0 0
      %435 = vmatpush1.bf16.msra.mxu0 0
      %436 = vmatprep.subr.bf16.mxu0 0
      %437 = vmatpush1.bf16.msra.mxu0 0
      %438 = vmatprep.subr.bf16.mxu0 0
      %439 = vmatpush1.bf16.msra.mxu0 0
      %440 = vmatprep.subr.bf16.mxu0 0
      %441 = vmatpush1.bf16.msra.mxu0 0
      %442 = vmatprep.subr.bf16.mxu0 0
      %443 = vmatpush1.bf16.msra.mxu0 0
      %444 = vmatprep.subr.bf16.mxu0 0
      %445 = vmatpush1.bf16.msra.mxu0 0
      %446 = vmatprep.subr.bf16.mxu0 0
      %447 = vmatpush1.bf16.msra.mxu0 0
      %448 = vmatprep.subr.bf16.mxu0 0
      %449 = vmatpush1.bf16.msra.mxu0 0
      %450 = vmatprep.subr.bf16.mxu0 0
      %451 = vmatpush1.bf16.msra.mxu0 0
      %452 = vmatprep.mubr.bf16.mxu0 0
      %453 = vmatmul.mubr.bf16.gmra.mrb[0].mxu0 %v415
      %v454 = vpop.f32.mrb[0].mxu0
      %v455 = vadd.f32 0.0, %v454
      %v456 = vpop.f32.mrb[0].mxu0
      %v457 = vadd.f32 0.0, %v456
      %v458 = vpop.f32.mrb[0].mxu0
      %v459 = vadd.f32 0.0, %v458
      %v460 = vpop.f32.mrb[0].mxu0
      %v461 = vadd.f32 0.0, %v460
      %462 = vmatprep.mubr.bf16.mxu0 0
      %463 = vmatmul.mubr.bf16.gmra.mrb[0].mxu0 %v418
      %v464 = vpop.f32.mrb[0].mxu0
      %v465 = vadd.f32 0.0, %v464
      %v466 = vpop.f32.mrb[0].mxu0
      %v467 = vadd.f32 0.0, %v466
      %v468 = vpop.f32.mrb[0].mxu0
      %v469 = vadd.f32 0.0, %v468
      %v470 = vpop.f32.mrb[0].mxu0
      %v471 = vadd.f32 0.0, %v470
      %472 = vdwg.mxu0
      %v473 = vpack.c.bf16 %v459, %v455
      %v474 = vpack.c.bf16 %v461, %v457
      %v475 = vpack.c.bf16 %v469, %v465
      %v476 = vpack.c.bf16 %v471, %v467
      %v481 = vunpack.c.l.b16 %v473
      %v482 = vunpack.c.l.b16 %v474
      %v483 = vunpack.c.h.b16 %v473
      %v484 = vunpack.c.h.b16 %v474
      %v485 = vunpack.c.l.b16 %v475
      %v486 = vunpack.c.l.b16 %v476
      %v487 = vunpack.c.h.b16 %v475
      %v488 = vunpack.c.h.b16 %v476
      %v489 = vpack.c.b16 %v482, %v481
      %v490 = vpack.c.b16 %v484, %v483
      %v491 = vpack.c.b16 %v486, %v485
      %v492 = vpack.c.b16 %v488, %v487
      %497 = vst [vmem:[%s352] sm:$0xff] %v489
      %498 = vst [vmem:[%s352 + $0x8] sm:$0xff] %v490
      %499 = vst [vmem:[%s352 + $0x10] sm:$0xff] %v491
      %500 = vst [vmem:[%s352 + $0x18] sm:$0xff] %v492
      %v501 = vld [vmem:[%s3] sm:$0xf]
      %v502 = vld [vmem:[%s3 + $0x4] sm:$0xf]
      %v503 = vld [vmem:[%s3 + $0x8] sm:$0xf]
      %v504 = vld [vmem:[%s3 + $0xc] sm:$0xf]
      %v505 = vld [vmem:[%s3 + $0x10] sm:$0xf]
      %v506 = vld [vmem:[%s3 + $0x14] sm:$0xf]
      %v507 = vld [vmem:[%s3 + $0x18] sm:$0xf]
      %v508 = vld [vmem:[%s3 + $0x1c] sm:$0xf]
      %v517 = vunpack.c.l.b16 %v501
      %v518 = vunpack.c.l.b16 %v502
      %v519 = vunpack.c.l.b16 %v503
      %v520 = vunpack.c.l.b16 %v504
      %v521 = vunpack.c.l.b16 %v505
      %v522 = vunpack.c.l.b16 %v506
      %v523 = vunpack.c.l.b16 %v507
      %v524 = vunpack.c.l.b16 %v508
      %v525 = vpack.c.b16 %v518, %v517
      %v526 = vpack.c.b16 %v520, %v519
      %v527 = vpack.c.b16 %v522, %v521
      %v528 = vpack.c.b16 %v524, %v523
      %v530 = vsel %vm413, %v525, 0
      %v533 = vsel %vm413, %v526, 0
      %v536 = vsel %vm413, %v527, 0
      %v539 = vsel %vm413, %v528, 0
      %541 = vmatprep.subr.bf16.mxu0 %v396
      %542 = vmatpush1.bf16.msra.mxu0 %v395
      %543 = vmatprep.subr.bf16.mxu0 %v398
      %544 = vmatpush1.bf16.msra.mxu0 %v397
      %545 = vmatprep.subr.bf16.mxu0 0
      %546 = vmatpush1.bf16.msra.mxu0 0
      %547 = vmatprep.subr.bf16.mxu0 0
      %548 = vmatpush1.bf16.msra.mxu0 0
      %549 = vmatprep.subr.bf16.mxu0 0
      %550 = vmatpush1.bf16.msra.mxu0 0
      %551 = vmatprep.subr.bf16.mxu0 0
      %552 = vmatpush1.bf16.msra.mxu0 0
      %553 = vmatprep.subr.bf16.mxu0 0
      %554 = vmatpush1.bf16.msra.mxu0 0
      %555 = vmatprep.subr.bf16.mxu0 0
      %556 = vmatpush1.bf16.msra.mxu0 0
      %557 = vmatprep.subr.bf16.mxu0 0
      %558 = vmatpush1.bf16.msra.mxu0 0
      %559 = vmatprep.subr.bf16.mxu0 0
      %560 = vmatpush1.bf16.msra.mxu0 0
      %561 = vmatprep.subr.bf16.mxu0 0
      %562 = vmatpush1.bf16.msra.mxu0 0
      %563 = vmatprep.subr.bf16.mxu0 0
      %564 = vmatpush1.bf16.msra.mxu0 0
      %565 = vmatprep.subr.bf16.mxu0 0
      %566 = vmatpush1.bf16.msra.mxu0 0
      %567 = vmatprep.subr.bf16.mxu0 0
      %568 = vmatpush1.bf16.msra.mxu0 0
      %569 = vmatprep.subr.bf16.mxu0 0
      %570 = vmatpush1.bf16.msra.mxu0 0
      %571 = vmatprep.subr.bf16.mxu0 0
      %572 = vmatpush1.bf16.msra.mxu0 0
      %573 = vmatprep.mubr.bf16.mxu0 0
      %574 = vmatmul.mubr.bf16.gmra.mrb[0].mxu0 %v530
      %v575 = vpop.f32.mrb[0].mxu0
      %v576 = vadd.f32 0.0, %v575
      %v577 = vpop.f32.mrb[0].mxu0
      %v578 = vadd.f32 0.0, %v577
      %v579 = vpop.f32.mrb[0].mxu0
      %v580 = vadd.f32 0.0, %v579
      %v581 = vpop.f32.mrb[0].mxu0
      %v582 = vadd.f32 0.0, %v581
      %583 = vmatprep.mubr.bf16.mxu0 0
      %584 = vmatmul.mubr.bf16.gmra.mrb[0].mxu0 %v533
      %v585 = vpop.f32.mrb[0].mxu0
      %v586 = vadd.f32 0.0, %v585
      %v587 = vpop.f32.mrb[0].mxu0
      %v588 = vadd.f32 0.0, %v587
      %v589 = vpop.f32.mrb[0].mxu0
      %v590 = vadd.f32 0.0, %v589
      %v591 = vpop.f32.mrb[0].mxu0
      %v592 = vadd.f32 0.0, %v591
      %593 = vmatprep.mubr.bf16.mxu0 0
      %594 = vmatmul.mubr.bf16.gmra.mrb[0].mxu0 %v536
      %v595 = vpop.f32.mrb[0].mxu0
      %v596 = vadd.f32 0.0, %v595
      %v597 = vpop.f32.mrb[0].mxu0
      %v598 = vadd.f32 0.0, %v597
      %v599 = vpop.f32.mrb[0].mxu0
      %v600 = vadd.f32 0.0, %v599
      %v601 = vpop.f32.mrb[0].mxu0
      %v602 = vadd.f32 0.0, %v601
      %603 = vmatprep.mubr.bf16.mxu0 0
      %604 = vmatmul.mubr.bf16.gmra.mrb[0].mxu0 %v539
      %v605 = vpop.f32.mrb[0].mxu0
      %v606 = vadd.f32 0.0, %v605
      %v607 = vpop.f32.mrb[0].mxu0
      %v608 = vadd.f32 0.0, %v607
      %v609 = vpop.f32.mrb[0].mxu0
      %v610 = vadd.f32 0.0, %v609
      %v611 = vpop.f32.mrb[0].mxu0
      %v612 = vadd.f32 0.0, %v611
      %613 = vdwg.mxu0
      %v614 = vpack.c.bf16 %v580, %v576
      %v615 = vpack.c.bf16 %v582, %v578
      %v616 = vpack.c.bf16 %v590, %v586
      %v617 = vpack.c.bf16 %v592, %v588
      %v622 = vunpack.c.l.b16 %v614
      %v623 = vunpack.c.l.b16 %v615
      %v624 = vunpack.c.h.b16 %v614
      %v625 = vunpack.c.h.b16 %v615
      %v626 = vunpack.c.l.b16 %v616
      %v627 = vunpack.c.l.b16 %v617
      %v628 = vunpack.c.h.b16 %v616
      %v629 = vunpack.c.h.b16 %v617
      %v630 = vpack.c.b16 %v623, %v622
      %v631 = vpack.c.b16 %v625, %v624
      %v632 = vpack.c.b16 %v627, %v626
      %v633 = vpack.c.b16 %v629, %v628
      %638 = vst [vmem:[%s362] sm:$0xff] %v630
      %639 = vst [vmem:[%s362 + $0x8] sm:$0xff] %v631
      %640 = vst [vmem:[%s362 + $0x10] sm:$0xff] %v632
      %641 = vst [vmem:[%s362 + $0x18] sm:$0xff] %v633
      %v642 = vpack.c.bf16 %v600, %v596
      %v643 = vpack.c.bf16 %v602, %v598
      %v644 = vpack.c.bf16 %v610, %v606
      %v645 = vpack.c.bf16 %v612, %v608
      %v650 = vunpack.c.l.b16 %v642
      %v651 = vunpack.c.l.b16 %v643
      %v652 = vunpack.c.h.b16 %v642
      %v653 = vunpack.c.h.b16 %v643
      %v654 = vunpack.c.l.b16 %v644
      %v655 = vunpack.c.l.b16 %v645
      %v656 = vunpack.c.h.b16 %v644
      %v657 = vunpack.c.h.b16 %v645
      %v658 = vpack.c.b16 %v651, %v650
      %v659 = vpack.c.b16 %v653, %v652
      %v660 = vpack.c.b16 %v655, %v654
      %v661 = vpack.c.b16 %v657, %v656
      %666 = vst [vmem:[%s372] sm:$0xff] %v658
      %667 = vst [vmem:[%s372 + $0x8] sm:$0xff] %v659
      %668 = vst [vmem:[%s372 + $0x10] sm:$0xff] %v660
      %669 = vst [vmem:[%s372 + $0x18] sm:$0xff] %v661
      %s670 = smul.u32 2, %s23
      %p671 = scmp.lt.s32.totalorder %s22, 1
      %s672 = scalar_select %p671, %s22, 1
      %p673 = scmp.lt.s32.totalorder %s670, 1
      %s674 = scalar_select %p673, %s670, 1
      %s675 = smul.addr %s672, 8
      %s676 = sadd.s32 %s674, %s675
      %s677 = smul.addr %s676, 4
      %s678 = scalar_lea.vmem %s4, %s677
      %s679 = smul.u32 2, %s23
      %p680 = scmp.lt.s32.totalorder %s22, 1
      %s681 = scalar_select %p680, %s22, 1
      %p682 = scmp.lt.s32.totalorder %s679, 1
      %s683 = scalar_select %p682, %s679, 1
      %s684 = smul.addr %s681, 8
      %s685 = sadd.s32 %s683, %s684
      %s686 = smul.addr %s685, 4
      %s687 = scalar_lea.vmem %s5, %s686
      %s688 = smul.u32 2, %s23
      %p689 = scmp.lt.s32.totalorder %s22, 1
      %s690 = scalar_select %p689, %s22, 1
      %p691 = scmp.lt.s32.totalorder %s688, 1
      %s692 = scalar_select %p691, %s688, 1
      %s693 = smul.addr %s690, 8
      %s694 = sadd.s32 %s692, %s693
      %s695 = smul.addr %s694, 4
      %s696 = scalar_lea.vmem %s6, %s695
      // Predicated region
      $region37: #{cross_attention_fast.2} parent=35 // pred_check
        %p697 = pneg %p148
      $region38: #{cross_attention_fast.2} parent=35 // pred_check_branch
        %699 = sbr.rel (%p697) target = $region40
      $region39: #{cross_attention_fast.2} parent=35 // pred_region
        %s700 = smul.u32 2, %s23
      $region40: #{cross_attention_fast.2} parent=35 // pred_fallthru
        _
      // Predicated region
      $region41: #{cross_attention_fast.2} parent=35 // pred_check
        %p701 = pneg %p176
      $region42: #{cross_attention_fast.2} parent=35 // pred_check_branch
        %703 = sbr.rel (%p701) target = $region44
      $region43: #{cross_attention_fast.2} parent=35 // pred_region
        %s704 = smul.u32 2, %s23
      $region44: #{cross_attention_fast.2} parent=35 // pred_fallthru
        _
      // Predicated region
      $region45: #{cross_attention_fast.2} parent=35 // pred_check
        %p705 = pneg %p204
      $region46: #{cross_attention_fast.2} parent=35 // pred_check_branch
        %707 = sbr.rel (%p705) target = $region48
      $region47: #{cross_attention_fast.2} parent=35 // pred_region
        %s708 = smul.u32 2, %s23
      $region48: #{cross_attention_fast.2} parent=35 // pred_fallthru
        _
    $region36: #{cross_attention_fast.2} parent=5 // pred_fallthru
      _
    %p709 = scmp.le.s32.totalorder 2, %s13
    // Predicated region
    $region49: #{cross_attention_fast.2} parent=5 // pred_check
      %p710 = pneg %p709
    $region50: #{cross_attention_fast.2} parent=5 // pred_check_branch
      %712 = sbr.rel (%p710) target = $region52
    $region51: #{cross_attention_fast.2} parent=5 // pred_region
      %s713 = ssub.s32 %s13, 2
      // Predicated region
      $region53: #{cross_attention_fast.2} parent=51 // pred_check
        %p714 = pneg %p154
      $region54: #{cross_attention_fast.2} parent=51 // pred_check_branch
        %716 = sbr.rel (%p714) target = $region56
      $region55: #{cross_attention_fast.2} parent=51 // pred_region
        %s717 = smul.u32 2, %s25
        %p718 = scmp.lt.s32.totalorder %s24, 1
        %s719 = scalar_select %p718, %s24, 1
        %p720 = scmp.lt.s32.totalorder %s717, 1
        %s721 = scalar_select %p720, %s717, 1
        %s722 = smul.addr %s719, 8
        %s723 = sadd.s32 %s721, %s722
        %s724 = smul.addr %s723, 4
        %s725 = scalar_lea.vmem %s4, %s724
      $region56: #{cross_attention_fast.2} parent=51 // pred_fallthru
        _
      // Predicated region
      $region57: #{cross_attention_fast.2} parent=51 // pred_check
        %p726 = pneg %p182
      $region58: #{cross_attention_fast.2} parent=51 // pred_check_branch
        %728 = sbr.rel (%p726) target = $region60
      $region59: #{cross_attention_fast.2} parent=51 // pred_region
        %s729 = smul.u32 2, %s25
        %p730 = scmp.lt.s32.totalorder %s24, 1
        %s731 = scalar_select %p730, %s24, 1
        %p732 = scmp.lt.s32.totalorder %s729, 1
        %s733 = scalar_select %p732, %s729, 1
        %s734 = smul.addr %s731, 8
        %s735 = sadd.s32 %s733, %s734
        %s736 = smul.addr %s735, 4
        %s737 = scalar_lea.vmem %s5, %s736
      $region60: #{cross_attention_fast.2} parent=51 // pred_fallthru
        _
      // Predicated region
      $region61: #{cross_attention_fast.2} parent=51 // pred_check
        %p738 = pneg %p210
      $region62: #{cross_attention_fast.2} parent=51 // pred_check_branch
        %740 = sbr.rel (%p738) target = $region64
      $region63: #{cross_attention_fast.2} parent=51 // pred_region
        %s741 = smul.u32 2, %s25
        %p742 = scmp.lt.s32.totalorder %s24, 1
        %s743 = scalar_select %p742, %s24, 1
        %p744 = scmp.lt.s32.totalorder %s741, 1
        %s745 = scalar_select %p744, %s741, 1
        %s746 = smul.addr %s743, 8
        %s747 = sadd.s32 %s745, %s746
        %s748 = smul.addr %s747, 4
        %s749 = scalar_lea.vmem %s6, %s748
      $region64: #{cross_attention_fast.2} parent=51 // pred_fallthru
        _
    $region52: #{cross_attention_fast.2} parent=5 // pred_fallthru
      _
  $region6: #{cross_attention_fast.2} parent=0 // loop_footer
    %s17 = sadd.s32 1, %s13
  $region7: #{cross_attention_fast.2} parent=0 // loop_footer_branch
    %12 = sbr.rel target = $region3
  $region8: #{cross_attention_fast.2} parent=0 // loop_exit
    _

// kernel: cross_attention_fast.3
$region0: #{cross_attention_fast.3}
  #allocation0 [shape = 'u32[]', space=smem, size = 0x4, offset = 0x4, fixed_abs, tag = 'smem constant byte address 0x4 - core index']
  #allocation1 [shape = 'u32[144,128]{1,0:T(1,128)}', space=vmem, size = 0x12000, scoped, tag = 'internal scratch']
  %s0 = inlined_call_operand.vmem [shape: bf16[2,32,256], index: 0, kind: input, shape index: {}]
  %s1 = inlined_call_operand.vmem [shape: bf16[2,32,256], index: 1, kind: input, shape index: {}]
  %s2 = inlined_call_operand.vmem [shape: bf16[2,32,256], index: 2, kind: input, shape index: {}]
  %s3 = inlined_call_operand.vmem [shape: bf16[32,32], index: 3, kind: input, shape index: {}]
  %s4 = inlined_call_operand.vmem [shape: f32[32,1], index: 4, kind: input, shape index: {}]
  %s5 = inlined_call_operand.vmem [shape: f32[2,32,256], index: 5, kind: output, shape index: {}]
  %s6 = sld [smem:[#allocation0]]
  $region53: #{cross_attention_fast.3} parent=0
    _
  %s8 = ssub.s32 1, %s6
  %s9 = scalar_select 0, %s8, %s6
  loop: start=0, step=1, limit=4
  $region2: #{cross_attention_fast.3} parent=0 // loop_pre_header
    _
  $region3: #{cross_attention_fast.3} parent=0 // loop_header
    %s11 = sphi 0, %s15
    %p12 = scmp.ge.s32.totalorder %s11, 4
    %s18 = sphi 0, %s30
    %s19 = sphi 0, %s26
    %s20 = sphi 0, %s18
    %s21 = sphi 0, %s19
    %s22 = sphi 0, %s20
    %s23 = sphi 0, %s21
    %s35 = sphi 0, %s37
    %s38 = sphi 0, %s35
    %s39 = sphi 0, %s38
    %s55 = sphi 0, %s39
    %s61 = sphi 0, %s63
    %s64 = sphi 0, %s61
    %s65 = sphi 0, %s64
    %s81 = sphi 0, %s65
    %s87 = sphi 0, %s89
    %s90 = sphi 0, %s87
    %s91 = sphi 0, %s90
    %s107 = sphi 0, %s91
    %s111 = sphi 0, %s111
    %s113 = sphi 0, %s111
    %s114 = sphi 0, %s113
    %s128 = sphi 0, %s114
    %s132 = sphi 0, %s132
    %s134 = sphi 0, %s132
    %s135 = sphi 0, %s134
    %s149 = sphi 0, %s135
    %s157 = sphi 0, %s159
    %s160 = sphi 0, %s157
    %s161 = sphi 0, %s160
    %s177 = sphi 0, %s161
  $region4: #{cross_attention_fast.3} parent=0 // loop_header_branch
    %14 = sbr.rel (%p12) target = $region8
  $region5: #{cross_attention_fast.3} parent=0 // loop_body
    %s16 = ssub.s32 %s11, 1
    %s17 = ssub.s32 %s11, 2
    %s24 = sadd.s32 1, %s19
    %p25 = scmp.ge.s32.totalorder %s24, 1
    %s26 = scalar_select %p25, 0, %s24
    %s27 = sadd.s32 1, %s18
    %s28 = scalar_select %p25, %s27, %s18
    %p29 = scmp.ge.s32.totalorder %s28, 2
    %s30 = scalar_select %p29, 0, %s28
    %s31 = ssub.s32 %s18, %s30
    %s32 = ssub.s32 %s19, %s26
    %s33 = sor.u32 %s31, %s32
    %p34 = scmp.eq.s32.totalorder %s33, 0
    %s36 = sadd.s32 %s35, 1
    %s37 = scalar_select %p34, %s35, %s36
    %p40 = pneg %p34
    %p41 = scmp.eq.s32.totalorder %s11, 1
    %p42 = por %p40, %p41
    %p43 = scmp.ne.s32.totalorder %s35, %s38
    %p44 = scmp.eq.s32.totalorder %s11, 0
    %p45 = por %p43, %p44
    %p46 = scmp.ne.s32.totalorder %s35, %s38
    %p47 = scmp.eq.s32.totalorder %s16, 1
    %p48 = por %p46, %p47
    %p49 = scmp.ne.s32.totalorder %s38, %s39
    %p50 = scmp.eq.s32.totalorder %s16, 0
    %p51 = por %p49, %p50
    %p52 = scmp.ne.s32.totalorder %s38, %s39
    %p53 = scmp.eq.s32.totalorder %s17, 1
    %p54 = por %p52, %p53
    %p56 = scmp.ne.s32.totalorder %s39, %s55
    %p57 = scmp.eq.s32.totalorder %s17, 0
    %p58 = por %p56, %p57
    %s59 = ssub.s32 %s18, %s30
    %p60 = scmp.eq.s32.totalorder %s59, 0
    %s62 = sadd.s32 %s61, 1
    %s63 = scalar_select %p60, %s61, %s62
    %p66 = pneg %p60
    %p67 = scmp.eq.s32.totalorder %s11, 1
    %p68 = por %p66, %p67
    %p69 = scmp.ne.s32.totalorder %s61, %s64
    %p70 = scmp.eq.s32.totalorder %s11, 0
    %p71 = por %p69, %p70
    %p72 = scmp.ne.s32.totalorder %s61, %s64
    %p73 = scmp.eq.s32.totalorder %s16, 1
    %p74 = por %p72, %p73
    %p75 = scmp.ne.s32.totalorder %s64, %s65
    %p76 = scmp.eq.s32.totalorder %s16, 0
    %p77 = por %p75, %p76
    %p78 = scmp.ne.s32.totalorder %s64, %s65
    %p79 = scmp.eq.s32.totalorder %s17, 1
    %p80 = por %p78, %p79
    %p82 = scmp.ne.s32.totalorder %s65, %s81
    %p83 = scmp.eq.s32.totalorder %s17, 0
    %p84 = por %p82, %p83
    %s85 = ssub.s32 %s18, %s30
    %p86 = scmp.eq.s32.totalorder %s85, 0
    %s88 = sadd.s32 %s87, 1
    %s89 = scalar_select %p86, %s87, %s88
    %p92 = pneg %p86
    %p93 = scmp.eq.s32.totalorder %s11, 1
    %p94 = por %p92, %p93
    %p95 = scmp.ne.s32.totalorder %s87, %s90
    %p96 = scmp.eq.s32.totalorder %s11, 0
    %p97 = por %p95, %p96
    %p98 = scmp.ne.s32.totalorder %s87, %s90
    %p99 = scmp.eq.s32.totalorder %s16, 1
    %p100 = por %p98, %p99
    %p101 = scmp.ne.s32.totalorder %s90, %s91
    %p102 = scmp.eq.s32.totalorder %s16, 0
    %p103 = por %p101, %p102
    %p104 = scmp.ne.s32.totalorder %s90, %s91
    %p105 = scmp.eq.s32.totalorder %s17, 1
    %p106 = por %p104, %p105
    %p108 = scmp.ne.s32.totalorder %s91, %s107
    %p109 = scmp.eq.s32.totalorder %s17, 0
    %p110 = por %p108, %p109
    %s112 = sadd.s32 %s111, 1
    %p115 = scmp.eq.s32.totalorder %s11, 1
    %p116 = scmp.ne.s32.totalorder %s111, %s113
    %p117 = scmp.eq.s32.totalorder %s11, 0
    %p118 = por %p116, %p117
    %p119 = scmp.ne.s32.totalorder %s111, %s113
    %p120 = scmp.eq.s32.totalorder %s16, 1
    %p121 = por %p119, %p120
    %p122 = scmp.ne.s32.totalorder %s113, %s114
    %p123 = scmp.eq.s32.totalorder %s16, 0
    %p124 = por %p122, %p123
    %p125 = scmp.ne.s32.totalorder %s113, %s114
    %p126 = scmp.eq.s32.totalorder %s17, 1
    %p127 = por %p125, %p126
    %p129 = scmp.ne.s32.totalorder %s114, %s128
    %p130 = scmp.eq.s32.totalorder %s17, 0
    %p131 = por %p129, %p130
    %s133 = sadd.s32 %s132, 1
    %p136 = scmp.eq.s32.totalorder %s11, 1
    %p137 = scmp.ne.s32.totalorder %s132, %s134
    %p138 = scmp.eq.s32.totalorder %s11, 0
    %p139 = por %p137, %p138
    %p140 = scmp.ne.s32.totalorder %s132, %s134
    %p141 = scmp.eq.s32.totalorder %s16, 1
    %p142 = por %p140, %p141
    %p143 = scmp.ne.s32.totalorder %s134, %s135
    %p144 = scmp.eq.s32.totalorder %s16, 0
    %p145 = por %p143, %p144
    %p146 = scmp.ne.s32.totalorder %s134, %s135
    %p147 = scmp.eq.s32.totalorder %s17, 1
    %p148 = por %p146, %p147
    %p150 = scmp.ne.s32.totalorder %s135, %s149
    %p151 = scmp.eq.s32.totalorder %s17, 0
    %p152 = por %p150, %p151
    %s153 = ssub.s32 %s18, %s30
    %s154 = ssub.s32 %s19, %s26
    %s155 = sor.u32 %s153, %s154
    %p156 = scmp.eq.s32.totalorder %s155, 0
    %s158 = sadd.s32 %s157, 1
    %s159 = scalar_select %p156, %s157, %s158
    %p162 = pneg %p156
    %p163 = scmp.eq.s32.totalorder %s11, 1
    %p164 = por %p162, %p163
    %p165 = scmp.ne.s32.totalorder %s157, %s160
    %p166 = scmp.eq.s32.totalorder %s11, 0
    %p167 = por %p165, %p166
    %p168 = scmp.ne.s32.totalorder %s157, %s160
    %p169 = scmp.eq.s32.totalorder %s16, 1
    %p170 = por %p168, %p169
    %p171 = scmp.ne.s32.totalorder %s160, %s161
    %p172 = scmp.eq.s32.totalorder %s16, 0
    %p173 = por %p171, %p172
    %p174 = scmp.ne.s32.totalorder %s160, %s161
    %p175 = scmp.eq.s32.totalorder %s17, 1
    %p176 = por %p174, %p175
    %p178 = scmp.ne.s32.totalorder %s161, %s177
    %p179 = scmp.eq.s32.totalorder %s17, 0
    %p180 = por %p178, %p179
    %p181 = scmp.le.s32.totalorder 1, %s11
    %p182 = scmp.lt.s32.totalorder %s11, 3
    %p183 = pnand %p181, %p182
    %p184 = pneg %p183
    // Predicated region
    $region9: #{cross_attention_fast.3} parent=5 // pred_check
      _
    $region10: #{cross_attention_fast.3} parent=5 // pred_check_branch
      %186 = sbr.rel (%p183) target = $region12
    $region11: #{cross_attention_fast.3} parent=5 // pred_region
      %s187 = ssub.s32 %s11, 1
      // Predicated region
      $region13: #{cross_attention_fast.3} parent=11 // pred_check
        %p188 = pneg %p124
      $region14: #{cross_attention_fast.3} parent=11 // pred_check_branch
        %190 = sbr.rel (%p188) target = $region16
      $region15: #{cross_attention_fast.3} parent=11 // pred_region
        _
      $region16: #{cross_attention_fast.3} parent=11 // pred_fallthru
        _
      // Predicated region
      $region17: #{cross_attention_fast.3} parent=11 // pred_check
        %p191 = pneg %p145
      $region18: #{cross_attention_fast.3} parent=11 // pred_check_branch
        %193 = sbr.rel (%p191) target = $region20
      $region19: #{cross_attention_fast.3} parent=11 // pred_region
        _
      $region20: #{cross_attention_fast.3} parent=11 // pred_fallthru
        _
    $region12: #{cross_attention_fast.3} parent=5 // pred_fallthru
      _
    %p194 = scmp.lt.s32.totalorder %s11, 2
    // Predicated region
    $region21: #{cross_attention_fast.3} parent=5 // pred_check
      %p195 = pneg %p194
    $region22: #{cross_attention_fast.3} parent=5 // pred_check_branch
      %197 = sbr.rel (%p195) target = $region24
    $region23: #{cross_attention_fast.3} parent=5 // pred_region
      // Predicated region
      $region25: #{cross_attention_fast.3} parent=23 // pred_check
        %p198 = pneg %p45
      $region26: #{cross_attention_fast.3} parent=23 // pred_check_branch
        %200 = sbr.rel (%p198) target = $region28
      $region27: #{cross_attention_fast.3} parent=23 // pred_region
        %s201 = smul.u32 2, %s19
        %p202 = scmp.lt.s32.totalorder %s18, 1
        %s203 = scalar_select %p202, %s18, 1
        %p204 = scmp.lt.s32.totalorder %s201, 1
        %s205 = scalar_select %p204, %s201, 1
        %s206 = smul.addr %s203, 8
        %s207 = sadd.s32 %s205, %s206
        %s208 = smul.addr %s207, 4
        %s209 = scalar_lea.vmem %s0, %s208
        %s210 = smul.u32 2, %s19
      $region28: #{cross_attention_fast.3} parent=23 // pred_fallthru
        _
      // Predicated region
      $region29: #{cross_attention_fast.3} parent=23 // pred_check
        %p211 = pneg %p71
      $region30: #{cross_attention_fast.3} parent=23 // pred_check_branch
        %213 = sbr.rel (%p211) target = $region32
      $region31: #{cross_attention_fast.3} parent=23 // pred_region
        %p214 = scmp.lt.s32.totalorder %s18, 1
        %s215 = scalar_select %p214, %s18, 1
        %s216 = smul.addr %s215, 8
        %s217 = smul.addr %s216, 4
        %s218 = scalar_lea.vmem %s1, %s217
      $region32: #{cross_attention_fast.3} parent=23 // pred_fallthru
        _
      // Predicated region
      $region33: #{cross_attention_fast.3} parent=23 // pred_check
        %p219 = pneg %p97
      $region34: #{cross_attention_fast.3} parent=23 // pred_check_branch
        %221 = sbr.rel (%p219) target = $region36
      $region35: #{cross_attention_fast.3} parent=23 // pred_region
        %p222 = scmp.lt.s32.totalorder %s18, 1
        %s223 = scalar_select %p222, %s18, 1
        %s224 = smul.addr %s223, 8
        %s225 = smul.addr %s224, 4
        %s226 = scalar_lea.vmem %s2, %s225
      $region36: #{cross_attention_fast.3} parent=23 // pred_fallthru
        _
    $region24: #{cross_attention_fast.3} parent=5 // pred_fallthru
      _
    %p227 = scmp.le.s32.totalorder 1, %s11
    %p228 = scmp.lt.s32.totalorder %s11, 3
    %p229 = pnand %p227, %p228
    %p230 = pneg %p229
    // Predicated region
    $region37: #{cross_attention_fast.3} parent=5 // pred_check
      _
    $region38: #{cross_attention_fast.3} parent=5 // pred_check_branch
      %232 = sbr.rel (%p229) target = $region40
    $region39: #{cross_attention_fast.3} parent=5 // pred_region
      %s233 = ssub.s32 %s11, 1
      %s234 = smul.u32 2, %s21
      %p235 = scmp.lt.s32.totalorder %s20, 1
      %s236 = scalar_select %p235, %s20, 1
      %p237 = scmp.lt.s32.totalorder %s234, 1
      %s238 = scalar_select %p237, %s234, 1
      %s239 = smul.addr %s236, 8
      %s240 = sadd.s32 %s238, %s239
      %s241 = smul.addr %s240, 4
      %s242 = scalar_lea.vmem %s0, %s241
      %p243 = pneg %p51
      %p244 = pneg %p48
      %p245 = scmp.lt.s32.totalorder %s20, 1
      %s246 = scalar_select %p245, %s20, 1
      %s247 = smul.addr %s246, 8
      %s248 = smul.addr %s247, 4
      %s249 = scalar_lea.vmem %s1, %s248
      %p250 = pneg %p77
      %p251 = pneg %p74
      %p252 = scmp.lt.s32.totalorder %s20, 1
      %s253 = scalar_select %p252, %s20, 1
      %s254 = smul.addr %s253, 8
      %s255 = smul.addr %s254, 4
      %s256 = scalar_lea.vmem %s2, %s255
      %p257 = pneg %p103
      %p258 = pneg %p100
      %p259 = pneg %p124
      %p260 = pneg %p121
      %p261 = pneg %p145
      %p262 = pneg %p142
      %p263 = pneg %p173
      %p264 = pneg %p170
      %s265 = smul.u32 2, %s21
      %p266 = scmp.lt.s32.totalorder %s20, 1
      %s267 = scalar_select %p266, %s20, 1
      %p268 = scmp.lt.s32.totalorder %s265, 1
      %s269 = scalar_select %p268, %s265, 1
      %s270 = smul.addr %s267, 8
      %s271 = sadd.s32 %s269, %s270
      %s272 = smul.addr %s271, 8
      %s273 = scalar_lea.vmem %s5, %s272
      %s274 = smul.u32 2, %s21
      %p275 = scmp.lt.s32.totalorder %s20, 1
      %s276 = scalar_select %p275, %s20, 1
      %p277 = scmp.lt.s32.totalorder %s274, 1
      %s278 = scalar_select %p277, %s274, 1
      %s279 = smul.addr %s276, 8
      %s280 = sadd.s32 %s278, %s279
      %s281 = smul.addr %s280, 4
      %s282 = scalar_lea.vmem %s0, %s281
      %s283 = smul.u32 2, %s21
      %p284 = scmp.lt.s32.totalorder %s20, 1
      %s285 = scalar_select %p284, %s20, 1
      %s286 = smul.addr %s285, 8
      %s287 = smul.addr %s286, 4
      %s288 = scalar_lea.vmem %s1, %s287
      %p289 = scmp.lt.s32.totalorder %s20, 1
      %s290 = scalar_select %p289, %s20, 1
      %s291 = smul.addr %s290, 8
      %s292 = smul.addr %s291, 4
      %s293 = scalar_lea.vmem %s2, %s292
      %s294 = smul.u32 2, %s21
      %p295 = scmp.lt.s32.totalorder %s20, 1
      %s296 = scalar_select %p295, %s20, 1
      %p297 = scmp.lt.s32.totalorder %s294, 1
      %s298 = scalar_select %p297, %s294, 1
      %s299 = smul.addr %s296, 8
      %s300 = sadd.s32 %s298, %s299
      %s301 = smul.addr %s300, 8
      %s302 = scalar_lea.vmem %s5, %s301
      %s303 = smul.u32 2, %s21
      %v305 = vld [vmem:[%s288] sm:$0xff]
      %v306 = vld [vmem:[%s288 + $0x8] sm:$0xff]
      %v307 = vld [vmem:[%s288 + $0x10] sm:$0xff]
      %v308 = vld [vmem:[%s288 + $0x18] sm:$0xff]
      %v309 = vld [vmem:[%s293] sm:$0xff]
      %v310 = vld [vmem:[%s293 + $0x8] sm:$0xff]
      %v311 = vld [vmem:[%s293 + $0x10] sm:$0xff]
      %v312 = vld [vmem:[%s293 + $0x18] sm:$0xff]
      %v313 = vld [vmem:[%s282] sm:$0xff]
      %v314 = vld [vmem:[%s282 + $0x8] sm:$0xff]
      %v315 = vld [vmem:[%s282 + $0x10] sm:$0xff]
      %v316 = vld [vmem:[%s282 + $0x18] sm:$0xff]
      %v317 = vunpack.c.l.bf16 %v313
      %v318 = vunpack.c.h.bf16 %v313
      %v319 = vunpack.c.l.bf16 %v314
      %v320 = vunpack.c.h.bf16 %v314
      %v321 = vunpack.c.l.bf16 %v315
      %v322 = vunpack.c.h.bf16 %v315
      %v323 = vunpack.c.l.bf16 %v316
      %v324 = vunpack.c.h.bf16 %v316
      %325 = vxpose.xlu0.b32.start [1/16] %v317, 128
      %326 = vxpose.xlu0.b32.cont [2/16] 0.0, 128
      %327 = vxpose.xlu0.b32.cont [3/16] 0.0, 128
      %328 = vxpose.xlu0.b32.cont [4/16] 0.0, 128
      %329 = vxpose.xlu0.b32.cont [5/16] 0.0, 128
      %330 = vxpose.xlu0.b32.cont [6/16] 0.0, 128
      %331 = vxpose.xlu0.b32.cont [7/16] 0.0, 128
      %332 = vxpose.xlu0.b32.cont [8/16] 0.0, 128
      %333 = vxpose.xlu0.b32.cont [9/16] 0.0, 128
      %334 = vxpose.xlu0.b32.cont [10/16] 0.0, 128
      %335 = vxpose.xlu0.b32.cont [11/16] 0.0, 128
      %336 = vxpose.xlu0.b32.cont [12/16] 0.0, 128
      %337 = vxpose.xlu0.b32.cont [13/16] 0.0, 128
      %338 = vxpose.xlu0.b32.cont [14/16] 0.0, 128
      %339 = vxpose.xlu0.b32.cont [15/16] 0.0, 128
      %340 = vxpose.xlu0.b32.end [16/16] 0.0, 128
      %v341 = vpop.trf.xlu0
      %v342 = vpop.trf.xlu0
      %v343 = vpop.trf.xlu0
      %v344 = vpop.trf.xlu0
      %v345 = vpop.trf.xlu0
      %v346 = vpop.trf.xlu0
      %v347 = vpop.trf.xlu0
      %v348 = vpop.trf.xlu0
      %v349 = vpop.trf.xlu0
      %v350 = vpop.trf.xlu0
      %v351 = vpop.trf.xlu0
      %v352 = vpop.trf.xlu0
      %v353 = vpop.trf.xlu0
      %v354 = vpop.trf.xlu0
      %v355 = vpop.trf.xlu0
      %v356 = vpop.trf.xlu0
      %357 = vxpose.xlu0.b32.start [1/16] %v318, 128
      %358 = vxpose.xlu0.b32.cont [2/16] 0.0, 128
      %359 = vxpose.xlu0.b32.cont [3/16] 0.0, 128
      %360 = vxpose.xlu0.b32.cont [4/16] 0.0, 128
      %361 = vxpose.xlu0.b32.cont [5/16] 0.0, 128
      %362 = vxpose.xlu0.b32.cont [6/16] 0.0, 128
      %363 = vxpose.xlu0.b32.cont [7/16] 0.0, 128
      %364 = vxpose.xlu0.b32.cont [8/16] 0.0, 128
      %365 = vxpose.xlu0.b32.cont [9/16] 0.0, 128
      %366 = vxpose.xlu0.b32.cont [10/16] 0.0, 128
      %367 = vxpose.xlu0.b32.cont [11/16] 0.0, 128
      %368 = vxpose.xlu0.b32.cont [12/16] 0.0, 128
      %369 = vxpose.xlu0.b32.cont [13/16] 0.0, 128
      %370 = vxpose.xlu0.b32.cont [14/16] 0.0, 128
      %371 = vxpose.xlu0.b32.cont [15/16] 0.0, 128
      %372 = vxpose.xlu0.b32.end [16/16] 0.0, 128
      %v373 = vpop.trf.xlu0
      %v374 = vpop.trf.xlu0
      %v375 = vpop.trf.xlu0
      %v376 = vpop.trf.xlu0
      %v377 = vpop.trf.xlu0
      %v378 = vpop.trf.xlu0
      %v379 = vpop.trf.xlu0
      %v380 = vpop.trf.xlu0
      %v381 = vpop.trf.xlu0
      %v382 = vpop.trf.xlu0
      %v383 = vpop.trf.xlu0
      %v384 = vpop.trf.xlu0
      %v385 = vpop.trf.xlu0
      %v386 = vpop.trf.xlu0
      %v387 = vpop.trf.xlu0
      %v388 = vpop.trf.xlu0
      %389 = vxpose.xlu0.b32.start [1/16] %v319, 128
      %390 = vxpose.xlu0.b32.cont [2/16] 0.0, 128
      %391 = vxpose.xlu0.b32.cont [3/16] 0.0, 128
      %392 = vxpose.xlu0.b32.cont [4/16] 0.0, 128
      %393 = vxpose.xlu0.b32.cont [5/16] 0.0, 128
      %394 = vxpose.xlu0.b32.cont [6/16] 0.0, 128
      %395 = vxpose.xlu0.b32.cont [7/16] 0.0, 128
      %396 = vxpose.xlu0.b32.cont [8/16] 0.0, 128
      %397 = vxpose.xlu0.b32.cont [9/16] 0.0, 128
      %398 = vxpose.xlu0.b32.cont [10/16] 0.0, 128
      %399 = vxpose.xlu0.b32.cont [11/16] 0.0, 128
      %400 = vxpose.xlu0.b32.cont [12/16] 0.0, 128
      %401 = vxpose.xlu0.b32.cont [13/16] 0.0, 128
      %402 = vxpose.xlu0.b32.cont [14/16] 0.0, 128
      %403 = vxpose.xlu0.b32.cont [15/16] 0.0, 128
      %404 = vxpose.xlu0.b32.end [16/16] 0.0, 128
      %v405 = vpop.trf.xlu0
      %v406 = vpop.trf.xlu0
      %v407 = vpop.trf.xlu0
      %v408 = vpop.trf.xlu0
      %v409 = vpop.trf.xlu0
      %v410 = vpop.trf.xlu0
      %v411 = vpop.trf.xlu0
      %v412 = vpop.trf.xlu0
      %v413 = vpop.trf.xlu0
      %v414 = vpop.trf.xlu0
      %v415 = vpop.trf.xlu0
      %v416 = vpop.trf.xlu0
      %v417 = vpop.trf.xlu0
      %v418 = vpop.trf.xlu0
      %v419 = vpop.trf.xlu0
      %v420 = vpop.trf.xlu0
      %421 = vxpose.xlu0.b32.start [1/16] %v320, 128
      %422 = vxpose.xlu0.b32.cont [2/16] 0.0, 128
      %423 = vxpose.xlu0.b32.cont [3/16] 0.0, 128
      %424 = vxpose.xlu0.b32.cont [4/16] 0.0, 128
      %425 = vxpose.xlu0.b32.cont [5/16] 0.0, 128
      %426 = vxpose.xlu0.b32.cont [6/16] 0.0, 128
      %427 = vxpose.xlu0.b32.cont [7/16] 0.0, 128
      %428 = vxpose.xlu0.b32.cont [8/16] 0.0, 128
      %429 = vxpose.xlu0.b32.cont [9/16] 0.0, 128
      %430 = vxpose.xlu0.b32.cont [10/16] 0.0, 128
      %431 = vxpose.xlu0.b32.cont [11/16] 0.0, 128
      %432 = vxpose.xlu0.b32.cont [12/16] 0.0, 128
      %433 = vxpose.xlu0.b32.cont [13/16] 0.0, 128
      %434 = vxpose.xlu0.b32.cont [14/16] 0.0, 128
      %435 = vxpose.xlu0.b32.cont [15/16] 0.0, 128
      %436 = vxpose.xlu0.b32.end [16/16] 0.0, 128
      %v437 = vpop.trf.xlu0
      %v438 = vpop.trf.xlu0
      %v439 = vpop.trf.xlu0
      %v440 = vpop.trf.xlu0
      %v441 = vpop.trf.xlu0
      %v442 = vpop.trf.xlu0
      %v443 = vpop.trf.xlu0
      %v444 = vpop.trf.xlu0
      %v445 = vpop.trf.xlu0
      %v446 = vpop.trf.xlu0
      %v447 = vpop.trf.xlu0
      %v448 = vpop.trf.xlu0
      %v449 = vpop.trf.xlu0
      %v450 = vpop.trf.xlu0
      %v451 = vpop.trf.xlu0
      %v452 = vpop.trf.xlu0
      %453 = vxpose.xlu0.b32.start [1/16] %v321, 128
      %454 = vxpose.xlu0.b32.cont [2/16] 0.0, 128
      %455 = vxpose.xlu0.b32.cont [3/16] 0.0, 128
      %456 = vxpose.xlu0.b32.cont [4/16] 0.0, 128
      %457 = vxpose.xlu0.b32.cont [5/16] 0.0, 128
      %458 = vxpose.xlu0.b32.cont [6/16] 0.0, 128
      %459 = vxpose.xlu0.b32.cont [7/16] 0.0, 128
      %460 = vxpose.xlu0.b32.cont [8/16] 0.0, 128
      %461 = vxpose.xlu0.b32.cont [9/16] 0.0, 128
      %462 = vxpose.xlu0.b32.cont [10/16] 0.0, 128
      %463 = vxpose.xlu0.b32.cont [11/16] 0.0, 128
      %464 = vxpose.xlu0.b32.cont [12/16] 0.0, 128
      %465 = vxpose.xlu0.b32.cont [13/16] 0.0, 128
      %466 = vxpose.xlu0.b32.cont [14/16] 0.0, 128
      %467 = vxpose.xlu0.b32.cont [15/16] 0.0, 128
      %468 = vxpose.xlu0.b32.end [16/16] 0.0, 128
      %v469 = vpop.trf.xlu0
      %v470 = vpop.trf.xlu0
      %v471 = vpop.trf.xlu0
      %v472 = vpop.trf.xlu0
      %v473 = vpop.trf.xlu0
      %v474 = vpop.trf.xlu0
      %v475 = vpop.trf.xlu0
      %v476 = vpop.trf.xlu0
      %v477 = vpop.trf.xlu0
      %v478 = vpop.trf.xlu0
      %v479 = vpop.trf.xlu0
      %v480 = vpop.trf.xlu0
      %v481 = vpop.trf.xlu0
      %v482 = vpop.trf.xlu0
      %v483 = vpop.trf.xlu0
      %v484 = vpop.trf.xlu0
      %485 = vxpose.xlu0.b32.start [1/16] %v322, 128
      %486 = vxpose.xlu0.b32.cont [2/16] 0.0, 128
      %487 = vxpose.xlu0.b32.cont [3/16] 0.0, 128
      %488 = vxpose.xlu0.b32.cont [4/16] 0.0, 128
      %489 = vxpose.xlu0.b32.cont [5/16] 0.0, 128
      %490 = vxpose.xlu0.b32.cont [6/16] 0.0, 128
      %491 = vxpose.xlu0.b32.cont [7/16] 0.0, 128
      %492 = vxpose.xlu0.b32.cont [8/16] 0.0, 128
      %493 = vxpose.xlu0.b32.cont [9/16] 0.0, 128
      %494 = vxpose.xlu0.b32.cont [10/16] 0.0, 128
      %495 = vxpose.xlu0.b32.cont [11/16] 0.0, 128
      %496 = vxpose.xlu0.b32.cont [12/16] 0.0, 128
      %497 = vxpose.xlu0.b32.cont [13/16] 0.0, 128
      %498 = vxpose.xlu0.b32.cont [14/16] 0.0, 128
      %499 = vxpose.xlu0.b32.cont [15/16] 0.0, 128
      %500 = vxpose.xlu0.b32.end [16/16] 0.0, 128
      %v501 = vpop.trf.xlu0
      %v502 = vpop.trf.xlu0
      %v503 = vpop.trf.xlu0
      %v504 = vpop.trf.xlu0
      %v505 = vpop.trf.xlu0
      %v506 = vpop.trf.xlu0
      %v507 = vpop.trf.xlu0
      %v508 = vpop.trf.xlu0
      %v509 = vpop.trf.xlu0
      %v510 = vpop.trf.xlu0
      %v511 = vpop.trf.xlu0
      %v512 = vpop.trf.xlu0
      %v513 = vpop.trf.xlu0
      %v514 = vpop.trf.xlu0
      %v515 = vpop.trf.xlu0
      %v516 = vpop.trf.xlu0
      %517 = vxpose.xlu0.b32.start [1/16] %v323, 128
      %518 = vxpose.xlu0.b32.cont [2/16] 0.0, 128
      %519 = vxpose.xlu0.b32.cont [3/16] 0.0, 128
      %520 = vxpose.xlu0.b32.cont [4/16] 0.0, 128
      %521 = vxpose.xlu0.b32.cont [5/16] 0.0, 128
      %522 = vxpose.xlu0.b32.cont [6/16] 0.0, 128
      %523 = vxpose.xlu0.b32.cont [7/16] 0.0, 128
      %524 = vxpose.xlu0.b32.cont [8/16] 0.0, 128
      %525 = vxpose.xlu0.b32.cont [9/16] 0.0, 128
      %526 = vxpose.xlu0.b32.cont [10/16] 0.0, 128
      %527 = vxpose.xlu0.b32.cont [11/16] 0.0, 128
      %528 = vxpose.xlu0.b32.cont [12/16] 0.0, 128
      %529 = vxpose.xlu0.b32.cont [13/16] 0.0, 128
      %530 = vxpose.xlu0.b32.cont [14/16] 0.0, 128
      %531 = vxpose.xlu0.b32.cont [15/16] 0.0, 128
      %532 = vxpose.xlu0.b32.end [16/16] 0.0, 128
      %v533 = vpop.trf.xlu0
      %v534 = vpop.trf.xlu0
      %v535 = vpop.trf.xlu0
      %v536 = vpop.trf.xlu0
      %v537 = vpop.trf.xlu0
      %v538 = vpop.trf.xlu0
      %v539 = vpop.trf.xlu0
      %v540 = vpop.trf.xlu0
      %v541 = vpop.trf.xlu0
      %v542 = vpop.trf.xlu0
      %v543 = vpop.trf.xlu0
      %v544 = vpop.trf.xlu0
      %v545 = vpop.trf.xlu0
      %v546 = vpop.trf.xlu0
      %v547 = vpop.trf.xlu0
      %v548 = vpop.trf.xlu0
      %549 = vxpose.xlu0.b32.start [1/16] %v324, 128
      %550 = vxpose.xlu0.b32.cont [2/16] 0.0, 128
      %551 = vxpose.xlu0.b32.cont [3/16] 0.0, 128
      %552 = vxpose.xlu0.b32.cont [4/16] 0.0, 128
      %553 = vxpose.xlu0.b32.cont [5/16] 0.0, 128
      %554 = vxpose.xlu0.b32.cont [6/16] 0.0, 128
      %555 = vxpose.xlu0.b32.cont [7/16] 0.0, 128
      %556 = vxpose.xlu0.b32.cont [8/16] 0.0, 128
      %557 = vxpose.xlu0.b32.cont [9/16] 0.0, 128
      %558 = vxpose.xlu0.b32.cont [10/16] 0.0, 128
      %559 = vxpose.xlu0.b32.cont [11/16] 0.0, 128
      %560 = vxpose.xlu0.b32.cont [12/16] 0.0, 128
      %561 = vxpose.xlu0.b32.cont [13/16] 0.0, 128
      %562 = vxpose.xlu0.b32.cont [14/16] 0.0, 128
      %563 = vxpose.xlu0.b32.cont [15/16] 0.0, 128
      %564 = vxpose.xlu0.b32.end [16/16] 0.0, 128
      %v565 = vpop.trf.xlu0
      %v566 = vpop.trf.xlu0
      %v567 = vpop.trf.xlu0
      %v568 = vpop.trf.xlu0
      %v569 = vpop.trf.xlu0
      %v570 = vpop.trf.xlu0
      %v571 = vpop.trf.xlu0
      %v572 = vpop.trf.xlu0
      %v573 = vpop.trf.xlu0
      %v574 = vpop.trf.xlu0
      %v575 = vpop.trf.xlu0
      %v576 = vpop.trf.xlu0
      %v577 = vpop.trf.xlu0
      %v578 = vpop.trf.xlu0
      %v579 = vpop.trf.xlu0
      %v580 = vpop.trf.xlu0
      %v581 = vpack.c.bf16 %v342, %v341
      %v582 = vpack.c.bf16 %v344, %v343
      %v583 = vpack.c.bf16 %v346, %v345
      %v584 = vpack.c.bf16 %v348, %v347
      %v585 = vpack.c.bf16 %v350, %v349
      %v586 = vpack.c.bf16 %v352, %v351
      %v587 = vpack.c.bf16 %v354, %v353
      %v588 = vpack.c.bf16 %v356, %v355
      %v589 = vpack.c.bf16 %v374, %v373
      %v590 = vpack.c.bf16 %v376, %v375
      %v591 = vpack.c.bf16 %v378, %v377
      %v592 = vpack.c.bf16 %v380, %v379
      %v593 = vpack.c.bf16 %v382, %v381
      %v594 = vpack.c.bf16 %v384, %v383
      %v595 = vpack.c.bf16 %v386, %v385
      %v596 = vpack.c.bf16 %v388, %v387
      %v597 = vpack.c.bf16 %v406, %v405
      %v598 = vpack.c.bf16 %v408, %v407
      %v599 = vpack.c.bf16 %v410, %v409
      %v600 = vpack.c.bf16 %v412, %v411
      %v601 = vpack.c.bf16 %v414, %v413
      %v602 = vpack.c.bf16 %v416, %v415
      %v603 = vpack.c.bf16 %v418, %v417
      %v604 = vpack.c.bf16 %v420, %v419
      %v605 = vpack.c.bf16 %v438, %v437
      %v606 = vpack.c.bf16 %v440, %v439
      %v607 = vpack.c.bf16 %v442, %v441
      %v608 = vpack.c.bf16 %v444, %v443
      %v609 = vpack.c.bf16 %v446, %v445
      %v610 = vpack.c.bf16 %v448, %v447
      %v611 = vpack.c.bf16 %v450, %v449
      %v612 = vpack.c.bf16 %v452, %v451
      %v613 = vpack.c.bf16 %v470, %v469
      %v614 = vpack.c.bf16 %v472, %v471
      %v615 = vpack.c.bf16 %v474, %v473
      %v616 = vpack.c.bf16 %v476, %v475
      %v617 = vpack.c.bf16 %v478, %v477
      %v618 = vpack.c.bf16 %v480, %v479
      %v619 = vpack.c.bf16 %v482, %v481
      %v620 = vpack.c.bf16 %v484, %v483
      %v621 = vpack.c.bf16 %v502, %v501
      %v622 = vpack.c.bf16 %v504, %v503
      %v623 = vpack.c.bf16 %v506, %v505
      %v624 = vpack.c.bf16 %v508, %v507
      %v625 = vpack.c.bf16 %v510, %v509
      %v626 = vpack.c.bf16 %v512, %v511
      %v627 = vpack.c.bf16 %v514, %v513
      %v628 = vpack.c.bf16 %v516, %v515
      %v629 = vpack.c.bf16 %v534, %v533
      %v630 = vpack.c.bf16 %v536, %v535
      %v631 = vpack.c.bf16 %v538, %v537
      %v632 = vpack.c.bf16 %v540, %v539
      %v633 = vpack.c.bf16 %v542, %v541
      %v634 = vpack.c.bf16 %v544, %v543
      %v635 = vpack.c.bf16 %v546, %v545
      %v636 = vpack.c.bf16 %v548, %v547
      %v637 = vpack.c.bf16 %v566, %v565
      %v638 = vpack.c.bf16 %v568, %v567
      %v639 = vpack.c.bf16 %v570, %v569
      %v640 = vpack.c.bf16 %v572, %v571
      %v641 = vpack.c.bf16 %v574, %v573
      %v642 = vpack.c.bf16 %v576, %v575
      %v643 = vpack.c.bf16 %v578, %v577
      %v644 = vpack.c.bf16 %v580, %v579
      %v646 = vunpack.c.l.b16 %v305
      %v647 = vunpack.c.h.b16 %v305
      %v648 = vpack.c.b16 %v646, %v646
      %v649 = vpack.c.b16 %v647, %v647
      %vm650 = vcmask 64512
      %v652 = vsel %vm650, %v581, 0
      %v655 = vsel %vm650, %v582, 0
      %v658 = vsel %vm650, %v583, 0
      %v661 = vsel %vm650, %v584, 0
      %v664 = vsel %vm650, %v585, 0
      %v667 = vsel %vm650, %v586, 0
      %v670 = vsel %vm650, %v587, 0
      %v673 = vsel %vm650, %v588, 0
      %v676 = vsel %vm650, %v589, 0
      %v679 = vsel %vm650, %v590, 0
      %v682 = vsel %vm650, %v591, 0
      %v685 = vsel %vm650, %v592, 0
      %v688 = vsel %vm650, %v593, 0
      %v691 = vsel %vm650, %v594, 0
      %v694 = vsel %vm650, %v595, 0
      %v697 = vsel %vm650, %v596, 0
      %vm699 = vcmask 1043456
      %v701 = vsel %vm699, %v648, 0
      %v704 = vsel %vm699, %v649, 0
      %706 = vmatprep.subr.bf16.mxu0 %v704
      %707 = vmatpush1.bf16.msra.mxu0 %v701
      %708 = vmatprep.subr.bf16.mxu0 0
      %709 = vmatpush1.bf16.msra.mxu0 0
      %710 = vmatprep.subr.bf16.mxu0 0
      %711 = vmatpush1.bf16.msra.mxu0 0
      %712 = vmatprep.subr.bf16.mxu0 0
      %713 = vmatpush1.bf16.msra.mxu0 0
      %714 = vmatprep.subr.bf16.mxu0 0
      %715 = vmatpush1.bf16.msra.mxu0 0
      %716 = vmatprep.subr.bf16.mxu0 0
      %717 = vmatpush1.bf16.msra.mxu0 0
      %718 = vmatprep.subr.bf16.mxu0 0
      %719 = vmatpush1.bf16.msra.mxu0 0
      %720 = vmatprep.subr.bf16.mxu0 0
      %721 = vmatpush1.bf16.msra.mxu0 0
      %722 = vmatprep.subr.bf16.mxu0 0
      %723 = vmatpush1.bf16.msra.mxu0 0
      %724 = vmatprep.subr.bf16.mxu0 0
      %725 = vmatpush1.bf16.msra.mxu0 0
      %726 = vmatprep.subr.bf16.mxu0 0
      %727 = vmatpush1.bf16.msra.mxu0 0
      %728 = vmatprep.subr.bf16.mxu0 0
      %729 = vmatpush1.bf16.msra.mxu0 0
      %730 = vmatprep.subr.bf16.mxu0 0
      %731 = vmatpush1.bf16.msra.mxu0 0
      %732 = vmatprep.subr.bf16.mxu0 0
      %733 = vmatpush1.bf16.msra.mxu0 0
      %734 = vmatprep.subr.bf16.mxu0 0
      %735 = vmatpush1.bf16.msra.mxu0 0
      %736 = vmatprep.subr.bf16.mxu0 0
      %737 = vmatpush1.bf16.msra.mxu0 0
      %738 = vmatprep.mubr.bf16.mxu0 0
      %739 = vmatmul.mubr.bf16.gmra.mrb[0].mxu0 %v652
      %v740 = vpop.f32.mrb[0].mxu0
      %v741 = vadd.f32 0.0, %v740
      %v742 = vpop.f32.mrb[0].mxu0
      %v743 = vadd.f32 0.0, %v742
      %v744 = vpop.f32.mrb[0].mxu0
      %v745 = vadd.f32 0.0, %v744
      %v746 = vpop.f32.mrb[0].mxu0
      %v747 = vadd.f32 0.0, %v746
      %748 = vmatprep.mubr.bf16.mxu0 0
      %749 = vmatmul.mubr.bf16.gmra.mrb[0].mxu0 %v655
      %v750 = vpop.f32.mrb[0].mxu0
      %v751 = vadd.f32 0.0, %v750
      %v752 = vpop.f32.mrb[0].mxu0
      %v753 = vadd.f32 0.0, %v752
      %v754 = vpop.f32.mrb[0].mxu0
      %v755 = vadd.f32 0.0, %v754
      %v756 = vpop.f32.mrb[0].mxu0
      %v757 = vadd.f32 0.0, %v756
      %758 = vmatprep.mubr.bf16.mxu0 0
      %759 = vmatmul.mubr.bf16.gmra.mrb[0].mxu0 %v658
      %v760 = vpop.f32.mrb[0].mxu0
      %v761 = vadd.f32 0.0, %v760
      %v762 = vpop.f32.mrb[0].mxu0
      %v763 = vadd.f32 0.0, %v762
      %v764 = vpop.f32.mrb[0].mxu0
      %v765 = vadd.f32 0.0, %v764
      %v766 = vpop.f32.mrb[0].mxu0
      %v767 = vadd.f32 0.0, %v766
      %768 = vmatprep.mubr.bf16.mxu0 0
      %769 = vmatmul.mubr.bf16.gmra.mrb[0].mxu0 %v661
      %v770 = vpop.f32.mrb[0].mxu0
      %v771 = vadd.f32 0.0, %v770
      %v772 = vpop.f32.mrb[0].mxu0
      %v773 = vadd.f32 0.0, %v772
      %v774 = vpop.f32.mrb[0].mxu0
      %v775 = vadd.f32 0.0, %v774
      %v776 = vpop.f32.mrb[0].mxu0
      %v777 = vadd.f32 0.0, %v776
      %778 = vmatprep.mubr.bf16.mxu0 0
      %779 = vmatmul.mubr.bf16.gmra.mrb[0].mxu0 %v664
      %v780 = vpop.f32.mrb[0].mxu0
      %v781 = vadd.f32 0.0, %v780
      %v782 = vpop.f32.mrb[0].mxu0
      %v783 = vadd.f32 0.0, %v782
      %v784 = vpop.f32.mrb[0].mxu0
      %v785 = vadd.f32 0.0, %v784
      %v786 = vpop.f32.mrb[0].mxu0
      %v787 = vadd.f32 0.0, %v786
      %788 = vmatprep.mubr.bf16.mxu0 0
      %789 = vmatmul.mubr.bf16.gmra.mrb[0].mxu0 %v667
      %v790 = vpop.f32.mrb[0].mxu0
      %v791 = vadd.f32 0.0, %v790
      %v792 = vpop.f32.mrb[0].mxu0
      %v793 = vadd.f32 0.0, %v792
      %v794 = vpop.f32.mrb[0].mxu0
      %v795 = vadd.f32 0.0, %v794
      %v796 = vpop.f32.mrb[0].mxu0
      %v797 = vadd.f32 0.0, %v796
      %798 = vmatprep.mubr.bf16.mxu0 0
      %799 = vmatmul.mubr.bf16.gmra.mrb[0].mxu0 %v670
      %v800 = vpop.f32.mrb[0].mxu0
      %v801 = vadd.f32 0.0, %v800
      %v802 = vpop.f32.mrb[0].mxu0
      %v803 = vadd.f32 0.0, %v802
      %v804 = vpop.f32.mrb[0].mxu0
      %v805 = vadd.f32 0.0, %v804
      %v806 = vpop.f32.mrb[0].mxu0
      %v807 = vadd.f32 0.0, %v806
      %808 = vmatprep.mubr.bf16.mxu0 0
      %809 = vmatmul.mubr.bf16.gmra.mrb[0].mxu0 %v673
      %v810 = vpop.f32.mrb[0].mxu0
      %v811 = vadd.f32 0.0, %v810
      %v812 = vpop.f32.mrb[0].mxu0
      %v813 = vadd.f32 0.0, %v812
      %v814 = vpop.f32.mrb[0].mxu0
      %v815 = vadd.f32 0.0, %v814
      %v816 = vpop.f32.mrb[0].mxu0
      %v817 = vadd.f32 0.0, %v816
      %818 = vmatprep.mubr.bf16.mxu0 0
      %819 = vmatmul.mubr.bf16.gmra.mrb[0].mxu0 %v676
      %v820 = vpop.f32.mrb[0].mxu0
      %v821 = vadd.f32 0.0, %v820
      %v822 = vpop.f32.mrb[0].mxu0
      %v823 = vadd.f32 0.0, %v822
      %v824 = vpop.f32.mrb[0].mxu0
      %v825 = vadd.f32 0.0, %v824
      %v826 = vpop.f32.mrb[0].mxu0
      %v827 = vadd.f32 0.0, %v826
      %828 = vmatprep.mubr.bf16.mxu0 0
      %829 = vmatmul.mubr.bf16.gmra.mrb[0].mxu0 %v679
      %v830 = vpop.f32.mrb[0].mxu0
      %v831 = vadd.f32 0.0, %v830
      %v832 = vpop.f32.mrb[0].mxu0
      %v833 = vadd.f32 0.0, %v832
      %v834 = vpop.f32.mrb[0].mxu0
      %v835 = vadd.f32 0.0, %v834
      %v836 = vpop.f32.mrb[0].mxu0
      %v837 = vadd.f32 0.0, %v836
      %838 = vmatprep.mubr.bf16.mxu0 0
      %839 = vmatmul.mubr.bf16.gmra.mrb[0].mxu0 %v682
      %v840 = vpop.f32.mrb[0].mxu0
      %v841 = vadd.f32 0.0, %v840
      %v842 = vpop.f32.mrb[0].mxu0
      %v843 = vadd.f32 0.0, %v842
      %v844 = vpop.f32.mrb[0].mxu0
      %v845 = vadd.f32 0.0, %v844
      %v846 = vpop.f32.mrb[0].mxu0
      %v847 = vadd.f32 0.0, %v846
      %848 = vmatprep.mubr.bf16.mxu0 0
      %849 = vmatmul.mubr.bf16.gmra.mrb[0].mxu0 %v685
      %v850 = vpop.f32.mrb[0].mxu0
      %v851 = vadd.f32 0.0, %v850
      %v852 = vpop.f32.mrb[0].mxu0
      %v853 = vadd.f32 0.0, %v852
      %v854 = vpop.f32.mrb[0].mxu0
      %v855 = vadd.f32 0.0, %v854
      %v856 = vpop.f32.mrb[0].mxu0
      %v857 = vadd.f32 0.0, %v856
      %858 = vmatprep.mubr.bf16.mxu0 0
      %859 = vmatmul.mubr.bf16.gmra.mrb[0].mxu0 %v688
      %v860 = vpop.f32.mrb[0].mxu0
      %v861 = vadd.f32 0.0, %v860
      %v862 = vpop.f32.mrb[0].mxu0
      %v863 = vadd.f32 0.0, %v862
      %v864 = vpop.f32.mrb[0].mxu0
      %v865 = vadd.f32 0.0, %v864
      %v866 = vpop.f32.mrb[0].mxu0
      %v867 = vadd.f32 0.0, %v866
      %868 = vmatprep.mubr.bf16.mxu0 0
      %869 = vmatmul.mubr.bf16.gmra.mrb[0].mxu0 %v691
      %v870 = vpop.f32.mrb[0].mxu0
      %v871 = vadd.f32 0.0, %v870
      %v872 = vpop.f32.mrb[0].mxu0
      %v873 = vadd.f32 0.0, %v872
      %v874 = vpop.f32.mrb[0].mxu0
      %v875 = vadd.f32 0.0, %v874
      %v876 = vpop.f32.mrb[0].mxu0
      %v877 = vadd.f32 0.0, %v876
      %878 = vmatprep.mubr.bf16.mxu0 0
      %879 = vmatmul.mubr.bf16.gmra.mrb[0].mxu0 %v694
      %v880 = vpop.f32.mrb[0].mxu0
      %v881 = vadd.f32 0.0, %v880
      %v882 = vpop.f32.mrb[0].mxu0
      %v883 = vadd.f32 0.0, %v882
      %v884 = vpop.f32.mrb[0].mxu0
      %v885 = vadd.f32 0.0, %v884
      %v886 = vpop.f32.mrb[0].mxu0
      %v887 = vadd.f32 0.0, %v886
      %888 = vmatprep.mubr.bf16.mxu0 0
      %889 = vmatmul.mubr.bf16.gmra.mrb[0].mxu0 %v697
      %v890 = vpop.f32.mrb[0].mxu0
      %v891 = vadd.f32 0.0, %v890
      %v892 = vpop.f32.mrb[0].mxu0
      %v893 = vadd.f32 0.0, %v892
      %v894 = vpop.f32.mrb[0].mxu0
      %v895 = vadd.f32 0.0, %v894
      %v896 = vpop.f32.mrb[0].mxu0
      %v897 = vadd.f32 0.0, %v896
      %898 = vdwg.mxu0
      %v900 = vunpack.c.l.b16 %v306
      %v901 = vunpack.c.h.b16 %v306
      %v902 = vpack.c.b16 %v900, %v900
      %v903 = vpack.c.b16 %v901, %v901
      %v905 = vsel %vm650, %v597, 0
      %v908 = vsel %vm650, %v598, 0
      %v911 = vsel %vm650, %v599, 0
      %v914 = vsel %vm650, %v600, 0
      %v917 = vsel %vm650, %v601, 0
      %v920 = vsel %vm650, %v602, 0
      %v923 = vsel %vm650, %v603, 0
      %v926 = vsel %vm650, %v604, 0
      %v929 = vsel %vm650, %v605, 0
      %v932 = vsel %vm650, %v606, 0
      %v935 = vsel %vm650, %v607, 0
      %v938 = vsel %vm650, %v608, 0
      %v941 = vsel %vm650, %v609, 0
      %v944 = vsel %vm650, %v610, 0
      %v947 = vsel %vm650, %v611, 0
      %v950 = vsel %vm650, %v612, 0
      %v953 = vsel %vm699, %v902, 0
      %v956 = vsel %vm699, %v903, 0
      %958 = vmatprep.subr.bf16.mxu0 %v956
      %959 = vmatpush1.bf16.msra.mxu0 %v953
      %960 = vmatprep.subr.bf16.mxu0 0
      %961 = vmatpush1.bf16.msra.mxu0 0
      %962 = vmatprep.subr.bf16.mxu0 0
      %963 = vmatpush1.bf16.msra.mxu0 0
      %964 = vmatprep.subr.bf16.mxu0 0
      %965 = vmatpush1.bf16.msra.mxu0 0
      %966 = vmatprep.subr.bf16.mxu0 0
      %967 = vmatpush1.bf16.msra.mxu0 0
      %968 = vmatprep.subr.bf16.mxu0 0
      %969 = vmatpush1.bf16.msra.mxu0 0
      %970 = vmatprep.subr.bf16.mxu0 0
      %971 = vmatpush1.bf16.msra.mxu0 0
      %972 = vmatprep.subr.bf16.mxu0 0
      %973 = vmatpush1.bf16.msra.mxu0 0
      %974 = vmatprep.subr.bf16.mxu0 0
      %975 = vmatpush1.bf16.msra.mxu0 0
      %976 = vmatprep.subr.bf16.mxu0 0
      %977 = vmatpush1.bf16.msra.mxu0 0
      %978 = vmatprep.subr.bf16.mxu0 0
      %979 = vmatpush1.bf16.msra.mxu0 0
      %980 = vmatprep.subr.bf16.mxu0 0
      %981 = vmatpush1.bf16.msra.mxu0 0
      %982 = vmatprep.subr.bf16.mxu0 0
      %983 = vmatpush1.bf16.msra.mxu0 0
      %984 = vmatprep.subr.bf16.mxu0 0
      %985 = vmatpush1.bf16.msra.mxu0 0
      %986 = vmatprep.subr.bf16.mxu0 0
      %987 = vmatpush1.bf16.msra.mxu0 0
      %988 = vmatprep.subr.bf16.mxu0 0
      %989 = vmatpush1.bf16.msra.mxu0 0
      %990 = vmatprep.mubr.bf16.mxu0 0
      %991 = vmatmul.mubr.bf16.gmra.mrb[0].mxu0 %v905
      %v992 = vpop.f32.mrb[0].mxu0
      %v993 = vadd.f32 0.0, %v992
      %v994 = vpop.f32.mrb[0].mxu0
      %v995 = vadd.f32 0.0, %v994
      %v996 = vpop.f32.mrb[0].mxu0
      %v997 = vadd.f32 0.0, %v996
      %v998 = vpop.f32.mrb[0].mxu0
      %v999 = vadd.f32 0.0, %v998
      %1000 = vmatprep.mubr.bf16.mxu0 0
      %1001 = vmatmul.mubr.bf16.gmra.mrb[0].mxu0 %v908
      %v1002 = vpop.f32.mrb[0].mxu0
      %v1003 = vadd.f32 0.0, %v1002
      %v1004 = vpop.f32.mrb[0].mxu0
      %v1005 = vadd.f32 0.0, %v1004
      %v1006 = vpop.f32.mrb[0].mxu0
      %v1007 = vadd.f32 0.0, %v1006
      %v1008 = vpop.f32.mrb[0].mxu0
      %v1009 = vadd.f32 0.0, %v1008
      %1010 = vmatprep.mubr.bf16.mxu0 0
      %1011 = vmatmul.mubr.bf16.gmra.mrb[0].mxu0 %v911
      %v1012 = vpop.f32.mrb[0].mxu0
      %v1013 = vadd.f32 0.0, %v1012
      %v1014 = vpop.f32.mrb[0].mxu0
      %v1015 = vadd.f32 0.0, %v1014
      %v1016 = vpop.f32.mrb[0].mxu0
      %v1017 = vadd.f32 0.0, %v1016
      %v1018 = vpop.f32.mrb[0].mxu0
      %v1019 = vadd.f32 0.0, %v1018
      %1020 = vmatprep.mubr.bf16.mxu0 0
      %1021 = vmatmul.mubr.bf16.gmra.mrb[0].mxu0 %v914
      %v1022 = vpop.f32.mrb[0].mxu0
      %v1023 = vadd.f32 0.0, %v1022
      %v1024 = vpop.f32.mrb[0].mxu0
      %v1025 = vadd.f32 0.0, %v1024
      %v1026 = vpop.f32.mrb[0].mxu0
      %v1027 = vadd.f32 0.0, %v1026
      %v1028 = vpop.f32.mrb[0].mxu0
      %v1029 = vadd.f32 0.0, %v1028
      %1030 = vmatprep.mubr.bf16.mxu0 0
      %1031 = vmatmul.mubr.bf16.gmra.mrb[0].mxu0 %v917
      %v1032 = vpop.f32.mrb[0].mxu0
      %v1033 = vadd.f32 0.0, %v1032
      %v1034 = vpop.f32.mrb[0].mxu0
      %v1035 = vadd.f32 0.0, %v1034
      %v1036 = vpop.f32.mrb[0].mxu0
      %v1037 = vadd.f32 0.0, %v1036
      %v1038 = vpop.f32.mrb[0].mxu0
      %v1039 = vadd.f32 0.0, %v1038
      %1040 = vmatprep.mubr.bf16.mxu0 0
      %1041 = vmatmul.mubr.bf16.gmra.mrb[0].mxu0 %v920
      %v1042 = vpop.f32.mrb[0].mxu0
      %v1043 = vadd.f32 0.0, %v1042
      %v1044 = vpop.f32.mrb[0].mxu0
      %v1045 = vadd.f32 0.0, %v1044
      %v1046 = vpop.f32.mrb[0].mxu0
      %v1047 = vadd.f32 0.0, %v1046
      %v1048 = vpop.f32.mrb[0].mxu0
      %v1049 = vadd.f32 0.0, %v1048
      %1050 = vmatprep.mubr.bf16.mxu0 0
      %1051 = vmatmul.mubr.bf16.gmra.mrb[0].mxu0 %v923
      %v1052 = vpop.f32.mrb[0].mxu0
      %v1053 = vadd.f32 0.0, %v1052
      %v1054 = vpop.f32.mrb[0].mxu0
      %v1055 = vadd.f32 0.0, %v1054
      %v1056 = vpop.f32.mrb[0].mxu0
      %v1057 = vadd.f32 0.0, %v1056
      %v1058 = vpop.f32.mrb[0].mxu0
      %v1059 = vadd.f32 0.0, %v1058
      %1060 = vmatprep.mubr.bf16.mxu0 0
      %1061 = vmatmul.mubr.bf16.gmra.mrb[0].mxu0 %v926
      %v1062 = vpop.f32.mrb[0].mxu0
      %v1063 = vadd.f32 0.0, %v1062
      %v1064 = vpop.f32.mrb[0].mxu0
      %v1065 = vadd.f32 0.0, %v1064
      %v1066 = vpop.f32.mrb[0].mxu0
      %v1067 = vadd.f32 0.0, %v1066
      %v1068 = vpop.f32.mrb[0].mxu0
      %v1069 = vadd.f32 0.0, %v1068
      %1070 = vmatprep.mubr.bf16.mxu0 0
      %1071 = vmatmul.mubr.bf16.gmra.mrb[0].mxu0 %v929
      %v1072 = vpop.f32.mrb[0].mxu0
      %v1073 = vadd.f32 0.0, %v1072
      %v1074 = vpop.f32.mrb[0].mxu0
      %v1075 = vadd.f32 0.0, %v1074
      %v1076 = vpop.f32.mrb[0].mxu0
      %v1077 = vadd.f32 0.0, %v1076
      %v1078 = vpop.f32.mrb[0].mxu0
      %v1079 = vadd.f32 0.0, %v1078
      %1080 = vmatprep.mubr.bf16.mxu0 0
      %1081 = vmatmul.mubr.bf16.gmra.mrb[0].mxu0 %v932
      %v1082 = vpop.f32.mrb[0].mxu0
      %v1083 = vadd.f32 0.0, %v1082
      %v1084 = vpop.f32.mrb[0].mxu0
      %v1085 = vadd.f32 0.0, %v1084
      %v1086 = vpop.f32.mrb[0].mxu0
      %v1087 = vadd.f32 0.0, %v1086
      %v1088 = vpop.f32.mrb[0].mxu0
      %v1089 = vadd.f32 0.0, %v1088
      %1090 = vmatprep.mubr.bf16.mxu0 0
      %1091 = vmatmul.mubr.bf16.gmra.mrb[0].mxu0 %v935
      %v1092 = vpop.f32.mrb[0].mxu0
      %v1093 = vadd.f32 0.0, %v1092
      %v1094 = vpop.f32.mrb[0].mxu0
      %v1095 = vadd.f32 0.0, %v1094
      %v1096 = vpop.f32.mrb[0].mxu0
      %v1097 = vadd.f32 0.0, %v1096
      %v1098 = vpop.f32.mrb[0].mxu0
      %v1099 = vadd.f32 0.0, %v1098
      %1100 = vmatprep.mubr.bf16.mxu0 0
      %1101 = vmatmul.mubr.bf16.gmra.mrb[0].mxu0 %v938
      %v1102 = vpop.f32.mrb[0].mxu0
      %v1103 = vadd.f32 0.0, %v1102
      %v1104 = vpop.f32.mrb[0].mxu0
      %v1105 = vadd.f32 0.0, %v1104
      %v1106 = vpop.f32.mrb[0].mxu0
      %v1107 = vadd.f32 0.0, %v1106
      %v1108 = vpop.f32.mrb[0].mxu0
      %v1109 = vadd.f32 0.0, %v1108
      %1110 = vmatprep.mubr.bf16.mxu0 0
      %1111 = vmatmul.mubr.bf16.gmra.mrb[0].mxu0 %v941
      %v1112 = vpop.f32.mrb[0].mxu0
      %v1113 = vadd.f32 0.0, %v1112
      %v1114 = vpop.f32.mrb[0].mxu0
      %v1115 = vadd.f32 0.0, %v1114
      %v1116 = vpop.f32.mrb[0].mxu0
      %v1117 = vadd.f32 0.0, %v1116
      %v1118 = vpop.f32.mrb[0].mxu0
      %v1119 = vadd.f32 0.0, %v1118
      %1120 = vmatprep.mubr.bf16.mxu0 0
      %1121 = vmatmul.mubr.bf16.gmra.mrb[0].mxu0 %v944
      %v1122 = vpop.f32.mrb[0].mxu0
      %v1123 = vadd.f32 0.0, %v1122
      %v1124 = vpop.f32.mrb[0].mxu0
      %v1125 = vadd.f32 0.0, %v1124
      %v1126 = vpop.f32.mrb[0].mxu0
      %v1127 = vadd.f32 0.0, %v1126
      %v1128 = vpop.f32.mrb[0].mxu0
      %v1129 = vadd.f32 0.0, %v1128
      %1130 = vmatprep.mubr.bf16.mxu0 0
      %1131 = vmatmul.mubr.bf16.gmra.mrb[0].mxu0 %v947
      %v1132 = vpop.f32.mrb[0].mxu0
      %v1133 = vadd.f32 0.0, %v1132
      %v1134 = vpop.f32.mrb[0].mxu0
      %v1135 = vadd.f32 0.0, %v1134
      %v1136 = vpop.f32.mrb[0].mxu0
      %v1137 = vadd.f32 0.0, %v1136
      %v1138 = vpop.f32.mrb[0].mxu0
      %v1139 = vadd.f32 0.0, %v1138
      %1140 = vmatprep.mubr.bf16.mxu0 0
      %1141 = vmatmul.mubr.bf16.gmra.mrb[0].mxu0 %v950
      %v1142 = vpop.f32.mrb[0].mxu0
      %v1143 = vadd.f32 0.0, %v1142
      %v1144 = vpop.f32.mrb[0].mxu0
      %v1145 = vadd.f32 0.0, %v1144
      %v1146 = vpop.f32.mrb[0].mxu0
      %v1147 = vadd.f32 0.0, %v1146
      %v1148 = vpop.f32.mrb[0].mxu0
      %v1149 = vadd.f32 0.0, %v1148
      %1150 = vdwg.mxu0
      %v1152 = vunpack.c.l.b16 %v307
      %v1153 = vunpack.c.h.b16 %v307
      %v1154 = vpack.c.b16 %v1152, %v1152
      %v1155 = vpack.c.b16 %v1153, %v1153
      %v1157 = vsel %vm650, %v613, 0
      %v1160 = vsel %vm650, %v614, 0
      %v1163 = vsel %vm650, %v615, 0
      %v1166 = vsel %vm650, %v616, 0
      %v1169 = vsel %vm650, %v617, 0
      %v1172 = vsel %vm650, %v618, 0
      %v1175 = vsel %vm650, %v619, 0
      %v1178 = vsel %vm650, %v620, 0
      %v1181 = vsel %vm650, %v621, 0
      %v1184 = vsel %vm650, %v622, 0
      %v1187 = vsel %vm650, %v623, 0
      %v1190 = vsel %vm650, %v624, 0
      %v1193 = vsel %vm650, %v625, 0
      %v1196 = vsel %vm650, %v626, 0
      %v1199 = vsel %vm650, %v627, 0
      %v1202 = vsel %vm650, %v628, 0
      %v1205 = vsel %vm699, %v1154, 0
      %v1208 = vsel %vm699, %v1155, 0
      %1210 = vmatprep.subr.bf16.mxu0 %v1208
      %1211 = vmatpush1.bf16.msra.mxu0 %v1205
      %1212 = vmatprep.subr.bf16.mxu0 0
      %1213 = vmatpush1.bf16.msra.mxu0 0
      %1214 = vmatprep.subr.bf16.mxu0 0
      %1215 = vmatpush1.bf16.msra.mxu0 0
      %1216 = vmatprep.subr.bf16.mxu0 0
      %1217 = vmatpush1.bf16.msra.mxu0 0
      %1218 = vmatprep.subr.bf16.mxu0 0
      %1219 = vmatpush1.bf16.msra.mxu0 0
      %1220 = vmatprep.subr.bf16.mxu0 0
      %1221 = vmatpush1.bf16.msra.mxu0 0
      %1222 = vmatprep.subr.bf16.mxu0 0
      %1223 = vmatpush1.bf16.msra.mxu0 0
      %1224 = vmatprep.subr.bf16.mxu0 0
      %1225 = vmatpush1.bf16.msra.mxu0 0
      %1226 = vmatprep.subr.bf16.mxu0 0
      %1227 = vmatpush1.bf16.msra.mxu0 0
      %1228 = vmatprep.subr.bf16.mxu0 0
      %1229 = vmatpush1.bf16.msra.mxu0 0
      %1230 = vmatprep.subr.bf16.mxu0 0
      %1231 = vmatpush1.bf16.msra.mxu0 0
      %1232 = vmatprep.subr.bf16.mxu0 0
      %1233 = vmatpush1.bf16.msra.mxu0 0
      %1234 = vmatprep.subr.bf16.mxu0 0
      %1235 = vmatpush1.bf16.msra.mxu0 0
      %1236 = vmatprep.subr.bf16.mxu0 0
      %1237 = vmatpush1.bf16.msra.mxu0 0
      %1238 = vmatprep.subr.bf16.mxu0 0
      %1239 = vmatpush1.bf16.msra.mxu0 0
      %1240 = vmatprep.subr.bf16.mxu0 0
      %1241 = vmatpush1.bf16.msra.mxu0 0
      %1242 = vmatprep.mubr.bf16.mxu0 0
      %1243 = vmatmul.mubr.bf16.gmra.mrb[0].mxu0 %v1157
      %v1244 = vpop.f32.mrb[0].mxu0
      %v1245 = vadd.f32 0.0, %v1244
      %v1246 = vpop.f32.mrb[0].mxu0
      %v1247 = vadd.f32 0.0, %v1246
      %v1248 = vpop.f32.mrb[0].mxu0
      %v1249 = vadd.f32 0.0, %v1248
      %v1250 = vpop.f32.mrb[0].mxu0
      %v1251 = vadd.f32 0.0, %v1250
      %1252 = vmatprep.mubr.bf16.mxu0 0
      %1253 = vmatmul.mubr.bf16.gmra.mrb[0].mxu0 %v1160
      %v1254 = vpop.f32.mrb[0].mxu0
      %v1255 = vadd.f32 0.0, %v1254
      %v1256 = vpop.f32.mrb[0].mxu0
      %v1257 = vadd.f32 0.0, %v1256
      %v1258 = vpop.f32.mrb[0].mxu0
      %v1259 = vadd.f32 0.0, %v1258
      %v1260 = vpop.f32.mrb[0].mxu0
      %v1261 = vadd.f32 0.0, %v1260
      %1262 = vmatprep.mubr.bf16.mxu0 0
      %1263 = vmatmul.mubr.bf16.gmra.mrb[0].mxu0 %v1163
      %v1264 = vpop.f32.mrb[0].mxu0
      %v1265 = vadd.f32 0.0, %v1264
      %v1266 = vpop.f32.mrb[0].mxu0
      %v1267 = vadd.f32 0.0, %v1266
      %v1268 = vpop.f32.mrb[0].mxu0
      %v1269 = vadd.f32 0.0, %v1268
      %v1270 = vpop.f32.mrb[0].mxu0
      %v1271 = vadd.f32 0.0, %v1270
      %1272 = vmatprep.mubr.bf16.mxu0 0
      %1273 = vmatmul.mubr.bf16.gmra.mrb[0].mxu0 %v1166
      %v1274 = vpop.f32.mrb[0].mxu0
      %v1275 = vadd.f32 0.0, %v1274
      %v1276 = vpop.f32.mrb[0].mxu0
      %v1277 = vadd.f32 0.0, %v1276
      %v1278 = vpop.f32.mrb[0].mxu0
      %v1279 = vadd.f32 0.0, %v1278
      %v1280 = vpop.f32.mrb[0].mxu0
      %v1281 = vadd.f32 0.0, %v1280
      %1282 = vmatprep.mubr.bf16.mxu0 0
      %1283 = vmatmul.mubr.bf16.gmra.mrb[0].mxu0 %v1169
      %v1284 = vpop.f32.mrb[0].mxu0
      %v1285 = vadd.f32 0.0, %v1284
      %v1286 = vpop.f32.mrb[0].mxu0
      %v1287 = vadd.f32 0.0, %v1286
      %v1288 = vpop.f32.mrb[0].mxu0
      %v1289 = vadd.f32 0.0, %v1288
      %v1290 = vpop.f32.mrb[0].mxu0
      %v1291 = vadd.f32 0.0, %v1290
      %1292 = vmatprep.mubr.bf16.mxu0 0
      %1293 = vmatmul.mubr.bf16.gmra.mrb[0].mxu0 %v1172
      %v1294 = vpop.f32.mrb[0].mxu0
      %v1295 = vadd.f32 0.0, %v1294
      %v1296 = vpop.f32.mrb[0].mxu0
      %v1297 = vadd.f32 0.0, %v1296
      %v1298 = vpop.f32.mrb[0].mxu0
      %v1299 = vadd.f32 0.0, %v1298
      %v1300 = vpop.f32.mrb[0].mxu0
      %v1301 = vadd.f32 0.0, %v1300
      %1302 = vmatprep.mubr.bf16.mxu0 0
      %1303 = vmatmul.mubr.bf16.gmra.mrb[0].mxu0 %v1175
      %v1304 = vpop.f32.mrb[0].mxu0
      %v1305 = vadd.f32 0.0, %v1304
      %v1306 = vpop.f32.mrb[0].mxu0
      %v1307 = vadd.f32 0.0, %v1306
      %v1308 = vpop.f32.mrb[0].mxu0
      %v1309 = vadd.f32 0.0, %v1308
      %v1310 = vpop.f32.mrb[0].mxu0
      %v1311 = vadd.f32 0.0, %v1310
      %1312 = vmatprep.mubr.bf16.mxu0 0
      %1313 = vmatmul.mubr.bf16.gmra.mrb[0].mxu0 %v1178
      %v1314 = vpop.f32.mrb[0].mxu0
      %v1315 = vadd.f32 0.0, %v1314
      %v1316 = vpop.f32.mrb[0].mxu0
      %v1317 = vadd.f32 0.0, %v1316
      %v1318 = vpop.f32.mrb[0].mxu0
      %v1319 = vadd.f32 0.0, %v1318
      %v1320 = vpop.f32.mrb[0].mxu0
      %v1321 = vadd.f32 0.0, %v1320
      %1322 = vmatprep.mubr.bf16.mxu0 0
      %1323 = vmatmul.mubr.bf16.gmra.mrb[0].mxu0 %v1181
      %v1324 = vpop.f32.mrb[0].mxu0
      %v1325 = vadd.f32 0.0, %v1324
      %v1326 = vpop.f32.mrb[0].mxu0
      %v1327 = vadd.f32 0.0, %v1326
      %v1328 = vpop.f32.mrb[0].mxu0
      %v1329 = vadd.f32 0.0, %v1328
      %v1330 = vpop.f32.mrb[0].mxu0
      %v1331 = vadd.f32 0.0, %v1330
      %1332 = vmatprep.mubr.bf16.mxu0 0
      %1333 = vmatmul.mubr.bf16.gmra.mrb[0].mxu0 %v1184
      %v1334 = vpop.f32.mrb[0].mxu0
      %v1335 = vadd.f32 0.0, %v1334
      %v1336 = vpop.f32.mrb[0].mxu0
      %v1337 = vadd.f32 0.0, %v1336
      %v1338 = vpop.f32.mrb[0].mxu0
      %v1339 = vadd.f32 0.0, %v1338
      %v1340 = vpop.f32.mrb[0].mxu0
      %v1341 = vadd.f32 0.0, %v1340
      %1342 = vmatprep.mubr.bf16.mxu0 0
      %1343 = vmatmul.mubr.bf16.gmra.mrb[0].mxu0 %v1187
      %v1344 = vpop.f32.mrb[0].mxu0
      %v1345 = vadd.f32 0.0, %v1344
      %v1346 = vpop.f32.mrb[0].mxu0
      %v1347 = vadd.f32 0.0, %v1346
      %v1348 = vpop.f32.mrb[0].mxu0
      %v1349 = vadd.f32 0.0, %v1348
      %v1350 = vpop.f32.mrb[0].mxu0
      %v1351 = vadd.f32 0.0, %v1350
      %1352 = vmatprep.mubr.bf16.mxu0 0
      %1353 = vmatmul.mubr.bf16.gmra.mrb[0].mxu0 %v1190
      %v1354 = vpop.f32.mrb[0].mxu0
      %v1355 = vadd.f32 0.0, %v1354
      %v1356 = vpop.f32.mrb[0].mxu0
      %v1357 = vadd.f32 0.0, %v1356
      %v1358 = vpop.f32.mrb[0].mxu0
      %v1359 = vadd.f32 0.0, %v1358
      %v1360 = vpop.f32.mrb[0].mxu0
      %v1361 = vadd.f32 0.0, %v1360
      %1362 = vmatprep.mubr.bf16.mxu0 0
      %1363 = vmatmul.mubr.bf16.gmra.mrb[0].mxu0 %v1193
      %v1364 = vpop.f32.mrb[0].mxu0
      %v1365 = vadd.f32 0.0, %v1364
      %v1366 = vpop.f32.mrb[0].mxu0
      %v1367 = vadd.f32 0.0, %v1366
      %v1368 = vpop.f32.mrb[0].mxu0
      %v1369 = vadd.f32 0.0, %v1368
      %v1370 = vpop.f32.mrb[0].mxu0
      %v1371 = vadd.f32 0.0, %v1370
      %1372 = vmatprep.mubr.bf16.mxu0 0
      %1373 = vmatmul.mubr.bf16.gmra.mrb[0].mxu0 %v1196
      %v1374 = vpop.f32.mrb[0].mxu0
      %v1375 = vadd.f32 0.0, %v1374
      %v1376 = vpop.f32.mrb[0].mxu0
      %v1377 = vadd.f32 0.0, %v1376
      %v1378 = vpop.f32.mrb[0].mxu0
      %v1379 = vadd.f32 0.0, %v1378
      %v1380 = vpop.f32.mrb[0].mxu0
      %v1381 = vadd.f32 0.0, %v1380
      %1382 = vmatprep.mubr.bf16.mxu0 0
      %1383 = vmatmul.mubr.bf16.gmra.mrb[0].mxu0 %v1199
      %v1384 = vpop.f32.mrb[0].mxu0
      %v1385 = vadd.f32 0.0, %v1384
      %v1386 = vpop.f32.mrb[0].mxu0
      %v1387 = vadd.f32 0.0, %v1386
      %v1388 = vpop.f32.mrb[0].mxu0
      %v1389 = vadd.f32 0.0, %v1388
      %v1390 = vpop.f32.mrb[0].mxu0
      %v1391 = vadd.f32 0.0, %v1390
      %1392 = vmatprep.mubr.bf16.mxu0 0
      %1393 = vmatmul.mubr.bf16.gmra.mrb[0].mxu0 %v1202
      %v1394 = vpop.f32.mrb[0].mxu0
      %v1395 = vadd.f32 0.0, %v1394
      %v1396 = vpop.f32.mrb[0].mxu0
      %v1397 = vadd.f32 0.0, %v1396
      %v1398 = vpop.f32.mrb[0].mxu0
      %v1399 = vadd.f32 0.0, %v1398
      %v1400 = vpop.f32.mrb[0].mxu0
      %v1401 = vadd.f32 0.0, %v1400
      %1402 = vdwg.mxu0
      %v1404 = vunpack.c.l.b16 %v308
      %v1405 = vunpack.c.h.b16 %v308
      %v1406 = vpack.c.b16 %v1404, %v1404
      %v1407 = vpack.c.b16 %v1405, %v1405
      %v1409 = vsel %vm650, %v629, 0
      %v1412 = vsel %vm650, %v630, 0
      %v1415 = vsel %vm650, %v631, 0
      %v1418 = vsel %vm650, %v632, 0
      %v1421 = vsel %vm650, %v633, 0
      %v1424 = vsel %vm650, %v634, 0
      %v1427 = vsel %vm650, %v635, 0
      %v1430 = vsel %vm650, %v636, 0
      %v1433 = vsel %vm650, %v637, 0
      %v1436 = vsel %vm650, %v638, 0
      %v1439 = vsel %vm650, %v639, 0
      %v1442 = vsel %vm650, %v640, 0
      %v1445 = vsel %vm650, %v641, 0
      %v1448 = vsel %vm650, %v642, 0
      %v1451 = vsel %vm650, %v643, 0
      %v1454 = vsel %vm650, %v644, 0
      %v1457 = vsel %vm699, %v1406, 0
      %v1460 = vsel %vm699, %v1407, 0
      %1462 = vmatprep.subr.bf16.mxu0 %v1460
      %1463 = vmatpush1.bf16.msra.mxu0 %v1457
      %1464 = vmatprep.subr.bf16.mxu0 0
      %1465 = vmatpush1.bf16.msra.mxu0 0
      %1466 = vmatprep.subr.bf16.mxu0 0
      %1467 = vmatpush1.bf16.msra.mxu0 0
      %1468 = vmatprep.subr.bf16.mxu0 0
      %1469 = vmatpush1.bf16.msra.mxu0 0
      %1470 = vmatprep.subr.bf16.mxu0 0
      %1471 = vmatpush1.bf16.msra.mxu0 0
      %1472 = vmatprep.subr.bf16.mxu0 0
      %1473 = vmatpush1.bf16.msra.mxu0 0
      %1474 = vmatprep.subr.bf16.mxu0 0
      %1475 = vmatpush1.bf16.msra.mxu0 0
      %1476 = vmatprep.subr.bf16.mxu0 0
      %1477 = vmatpush1.bf16.msra.mxu0 0
      %1478 = vmatprep.subr.bf16.mxu0 0
      %1479 = vmatpush1.bf16.msra.mxu0 0
      %1480 = vmatprep.subr.bf16.mxu0 0
      %1481 = vmatpush1.bf16.msra.mxu0 0
      %1482 = vmatprep.subr.bf16.mxu0 0
      %1483 = vmatpush1.bf16.msra.mxu0 0
      %1484 = vmatprep.subr.bf16.mxu0 0
      %1485 = vmatpush1.bf16.msra.mxu0 0
      %1486 = vmatprep.subr.bf16.mxu0 0
      %1487 = vmatpush1.bf16.msra.mxu0 0
      %1488 = vmatprep.subr.bf16.mxu0 0
      %1489 = vmatpush1.bf16.msra.mxu0 0
      %1490 = vmatprep.subr.bf16.mxu0 0
      %1491 = vmatpush1.bf16.msra.mxu0 0
      %1492 = vmatprep.subr.bf16.mxu0 0
      %1493 = vmatpush1.bf16.msra.mxu0 0
      %1494 = vmatprep.mubr.bf16.mxu0 0
      %1495 = vmatmul.mubr.bf16.gmra.mrb[0].mxu0 %v1409
      %v1496 = vpop.f32.mrb[0].mxu0
      %v1497 = vadd.f32 0.0, %v1496
      %v1498 = vpop.f32.mrb[0].mxu0
      %v1499 = vadd.f32 0.0, %v1498
      %v1500 = vpop.f32.mrb[0].mxu0
      %v1501 = vadd.f32 0.0, %v1500
      %v1502 = vpop.f32.mrb[0].mxu0
      %v1503 = vadd.f32 0.0, %v1502
      %1504 = vmatprep.mubr.bf16.mxu0 0
      %1505 = vmatmul.mubr.bf16.gmra.mrb[0].mxu0 %v1412
      %v1506 = vpop.f32.mrb[0].mxu0
      %v1507 = vadd.f32 0.0, %v1506
      %v1508 = vpop.f32.mrb[0].mxu0
      %v1509 = vadd.f32 0.0, %v1508
      %v1510 = vpop.f32.mrb[0].mxu0
      %v1511 = vadd.f32 0.0, %v1510
      %v1512 = vpop.f32.mrb[0].mxu0
      %v1513 = vadd.f32 0.0, %v1512
      %1514 = vmatprep.mubr.bf16.mxu0 0
      %1515 = vmatmul.mubr.bf16.gmra.mrb[0].mxu0 %v1415
      %v1516 = vpop.f32.mrb[0].mxu0
      %v1517 = vadd.f32 0.0, %v1516
      %v1518 = vpop.f32.mrb[0].mxu0
      %v1519 = vadd.f32 0.0, %v1518
      %v1520 = vpop.f32.mrb[0].mxu0
      %v1521 = vadd.f32 0.0, %v1520
      %v1522 = vpop.f32.mrb[0].mxu0
      %v1523 = vadd.f32 0.0, %v1522
      %1524 = vmatprep.mubr.bf16.mxu0 0
      %1525 = vmatmul.mubr.bf16.gmra.mrb[0].mxu0 %v1418
      %v1526 = vpop.f32.mrb[0].mxu0
      %v1527 = vadd.f32 0.0, %v1526
      %v1528 = vpop.f32.mrb[0].mxu0
      %v1529 = vadd.f32 0.0, %v1528
      %v1530 = vpop.f32.mrb[0].mxu0
      %v1531 = vadd.f32 0.0, %v1530
      %v1532 = vpop.f32.mrb[0].mxu0
      %v1533 = vadd.f32 0.0, %v1532
      %1534 = vmatprep.mubr.bf16.mxu0 0
      %1535 = vmatmul.mubr.bf16.gmra.mrb[0].mxu0 %v1421
      %v1536 = vpop.f32.mrb[0].mxu0
      %v1537 = vadd.f32 0.0, %v1536
      %v1538 = vpop.f32.mrb[0].mxu0
      %v1539 = vadd.f32 0.0, %v1538
      %v1540 = vpop.f32.mrb[0].mxu0
      %v1541 = vadd.f32 0.0, %v1540
      %v1542 = vpop.f32.mrb[0].mxu0
      %v1543 = vadd.f32 0.0, %v1542
      %1544 = vmatprep.mubr.bf16.mxu0 0
      %1545 = vmatmul.mubr.bf16.gmra.mrb[0].mxu0 %v1424
      %v1546 = vpop.f32.mrb[0].mxu0
      %v1547 = vadd.f32 0.0, %v1546
      %v1548 = vpop.f32.mrb[0].mxu0
      %v1549 = vadd.f32 0.0, %v1548
      %v1550 = vpop.f32.mrb[0].mxu0
      %v1551 = vadd.f32 0.0, %v1550
      %v1552 = vpop.f32.mrb[0].mxu0
      %v1553 = vadd.f32 0.0, %v1552
      %1554 = vmatprep.mubr.bf16.mxu0 0
      %1555 = vmatmul.mubr.bf16.gmra.mrb[0].mxu0 %v1427
      %v1556 = vpop.f32.mrb[0].mxu0
      %v1557 = vadd.f32 0.0, %v1556
      %v1558 = vpop.f32.mrb[0].mxu0
      %v1559 = vadd.f32 0.0, %v1558
      %v1560 = vpop.f32.mrb[0].mxu0
      %v1561 = vadd.f32 0.0, %v1560
      %v1562 = vpop.f32.mrb[0].mxu0
      %v1563 = vadd.f32 0.0, %v1562
      %1564 = vmatprep.mubr.bf16.mxu0 0
      %1565 = vmatmul.mubr.bf16.gmra.mrb[0].mxu0 %v1430
      %v1566 = vpop.f32.mrb[0].mxu0
      %v1567 = vadd.f32 0.0, %v1566
      %v1568 = vpop.f32.mrb[0].mxu0
      %v1569 = vadd.f32 0.0, %v1568
      %v1570 = vpop.f32.mrb[0].mxu0
      %v1571 = vadd.f32 0.0, %v1570
      %v1572 = vpop.f32.mrb[0].mxu0
      %v1573 = vadd.f32 0.0, %v1572
      %1574 = vmatprep.mubr.bf16.mxu0 0
      %1575 = vmatmul.mubr.bf16.gmra.mrb[0].mxu0 %v1433
      %v1576 = vpop.f32.mrb[0].mxu0
      %v1577 = vadd.f32 0.0, %v1576
      %v1578 = vpop.f32.mrb[0].mxu0
      %v1579 = vadd.f32 0.0, %v1578
      %v1580 = vpop.f32.mrb[0].mxu0
      %v1581 = vadd.f32 0.0, %v1580
      %v1582 = vpop.f32.mrb[0].mxu0
      %v1583 = vadd.f32 0.0, %v1582
      %1584 = vmatprep.mubr.bf16.mxu0 0
      %1585 = vmatmul.mubr.bf16.gmra.mrb[0].mxu0 %v1436
      %v1586 = vpop.f32.mrb[0].mxu0
      %v1587 = vadd.f32 0.0, %v1586
      %v1588 = vpop.f32.mrb[0].mxu0
      %v1589 = vadd.f32 0.0, %v1588
      %v1590 = vpop.f32.mrb[0].mxu0
      %v1591 = vadd.f32 0.0, %v1590
      %v1592 = vpop.f32.mrb[0].mxu0
      %v1593 = vadd.f32 0.0, %v1592
      %1594 = vmatprep.mubr.bf16.mxu0 0
      %1595 = vmatmul.mubr.bf16.gmra.mrb[0].mxu0 %v1439
      %v1596 = vpop.f32.mrb[0].mxu0
      %v1597 = vadd.f32 0.0, %v1596
      %v1598 = vpop.f32.mrb[0].mxu0
      %v1599 = vadd.f32 0.0, %v1598
      %v1600 = vpop.f32.mrb[0].mxu0
      %v1601 = vadd.f32 0.0, %v1600
      %v1602 = vpop.f32.mrb[0].mxu0
      %v1603 = vadd.f32 0.0, %v1602
      %1604 = vmatprep.mubr.bf16.mxu0 0
      %1605 = vmatmul.mubr.bf16.gmra.mrb[0].mxu0 %v1442
      %v1606 = vpop.f32.mrb[0].mxu0
      %v1607 = vadd.f32 0.0, %v1606
      %v1608 = vpop.f32.mrb[0].mxu0
      %v1609 = vadd.f32 0.0, %v1608
      %v1610 = vpop.f32.mrb[0].mxu0
      %v1611 = vadd.f32 0.0, %v1610
      %v1612 = vpop.f32.mrb[0].mxu0
      %v1613 = vadd.f32 0.0, %v1612
      %1614 = vmatprep.mubr.bf16.mxu0 0
      %1615 = vmatmul.mubr.bf16.gmra.mrb[0].mxu0 %v1445
      %v1616 = vpop.f32.mrb[0].mxu0
      %v1617 = vadd.f32 0.0, %v1616
      %v1618 = vpop.f32.mrb[0].mxu0
      %v1619 = vadd.f32 0.0, %v1618
      %v1620 = vpop.f32.mrb[0].mxu0
      %v1621 = vadd.f32 0.0, %v1620
      %v1622 = vpop.f32.mrb[0].mxu0
      %v1623 = vadd.f32 0.0, %v1622
      %1624 = vmatprep.mubr.bf16.mxu0 0
      %1625 = vmatmul.mubr.bf16.gmra.mrb[0].mxu0 %v1448
      %v1626 = vpop.f32.mrb[0].mxu0
      %v1627 = vadd.f32 0.0, %v1626
      %v1628 = vpop.f32.mrb[0].mxu0
      %v1629 = vadd.f32 0.0, %v1628
      %v1630 = vpop.f32.mrb[0].mxu0
      %v1631 = vadd.f32 0.0, %v1630
      %v1632 = vpop.f32.mrb[0].mxu0
      %v1633 = vadd.f32 0.0, %v1632
      %1634 = vmatprep.mubr.bf16.mxu0 0
      %1635 = vmatmul.mubr.bf16.gmra.mrb[0].mxu0 %v1451
      %v1636 = vpop.f32.mrb[0].mxu0
      %v1637 = vadd.f32 0.0, %v1636
      %v1638 = vpop.f32.mrb[0].mxu0
      %v1639 = vadd.f32 0.0, %v1638
      %v1640 = vpop.f32.mrb[0].mxu0
      %v1641 = vadd.f32 0.0, %v1640
      %v1642 = vpop.f32.mrb[0].mxu0
      %v1643 = vadd.f32 0.0, %v1642
      %1644 = vmatprep.mubr.bf16.mxu0 0
      %1645 = vmatmul.mubr.bf16.gmra.mrb[0].mxu0 %v1454
      %v1646 = vpop.f32.mrb[0].mxu0
      %v1647 = vadd.f32 0.0, %v1646
      %v1648 = vpop.f32.mrb[0].mxu0
      %v1649 = vadd.f32 0.0, %v1648
      %v1650 = vpop.f32.mrb[0].mxu0
      %v1651 = vadd.f32 0.0, %v1650
      %v1652 = vpop.f32.mrb[0].mxu0
      %v1653 = vadd.f32 0.0, %v1652
      %1654 = vdwg.mxu0
      %v1655 = vmax.f32 %v741, %v743
      %1656 = vmax.xlane.f32.xlu0 %v1655
      %v1657 = vpop.xlane.xlu0 %1656
      %v1658 = vmax.f32 %v745, %v747
      %1659 = vmax.xlane.f32.xlu0 %v1658
      %v1660 = vpop.xlane.xlu0 %1659
      %v1661 = vmax.f32 %v751, %v753
      %1662 = vmax.xlane.f32.xlu0 %v1661
      %v1663 = vpop.xlane.xlu0 %1662
      %v1664 = vmax.f32 %v755, %v757
      %1665 = vmax.xlane.f32.xlu0 %v1664
      %v1666 = vpop.xlane.xlu0 %1665
      %v1667 = vmax.f32 %v761, %v763
      %1668 = vmax.xlane.f32.xlu0 %v1667
      %v1669 = vpop.xlane.xlu0 %1668
      %v1670 = vmax.f32 %v765, %v767
      %1671 = vmax.xlane.f32.xlu0 %v1670
      %v1672 = vpop.xlane.xlu0 %1671
      %v1673 = vmax.f32 %v771, %v773
      %1674 = vmax.xlane.f32.xlu0 %v1673
      %v1675 = vpop.xlane.xlu0 %1674
      %v1676 = vmax.f32 %v775, %v777
      %1677 = vmax.xlane.f32.xlu0 %v1676
      %v1678 = vpop.xlane.xlu0 %1677
      %v1679 = vmax.f32 %v781, %v783
      %1680 = vmax.xlane.f32.xlu0 %v1679
      %v1681 = vpop.xlane.xlu0 %1680
      %v1682 = vmax.f32 %v785, %v787
      %1683 = vmax.xlane.f32.xlu0 %v1682
      %v1684 = vpop.xlane.xlu0 %1683
      %v1685 = vmax.f32 %v791, %v793
      %1686 = vmax.xlane.f32.xlu0 %v1685
      %v1687 = vpop.xlane.xlu0 %1686
      %v1688 = vmax.f32 %v795, %v797
      %1689 = vmax.xlane.f32.xlu0 %v1688
      %v1690 = vpop.xlane.xlu0 %1689
      %v1691 = vmax.f32 %v801, %v803
      %1692 = vmax.xlane.f32.xlu0 %v1691
      %v1693 = vpop.xlane.xlu0 %1692
      %v1694 = vmax.f32 %v805, %v807
      %1695 = vmax.xlane.f32.xlu0 %v1694
      %v1696 = vpop.xlane.xlu0 %1695
      %v1697 = vmax.f32 %v811, %v813
      %1698 = vmax.xlane.f32.xlu0 %v1697
      %v1699 = vpop.xlane.xlu0 %1698
      %v1700 = vmax.f32 %v815, %v817
      %1701 = vmax.xlane.f32.xlu0 %v1700
      %v1702 = vpop.xlane.xlu0 %1701
      %v1703 = vmax.f32 %v821, %v823
      %1704 = vmax.xlane.f32.xlu0 %v1703
      %v1705 = vpop.xlane.xlu0 %1704
      %v1706 = vmax.f32 %v825, %v827
      %1707 = vmax.xlane.f32.xlu0 %v1706
      %v1708 = vpop.xlane.xlu0 %1707
      %v1709 = vmax.f32 %v831, %v833
      %1710 = vmax.xlane.f32.xlu0 %v1709
      %v1711 = vpop.xlane.xlu0 %1710
      %v1712 = vmax.f32 %v835, %v837
      %1713 = vmax.xlane.f32.xlu0 %v1712
      %v1714 = vpop.xlane.xlu0 %1713
      %v1715 = vmax.f32 %v841, %v843
      %1716 = vmax.xlane.f32.xlu0 %v1715
      %v1717 = vpop.xlane.xlu0 %1716
      %v1718 = vmax.f32 %v845, %v847
      %1719 = vmax.xlane.f32.xlu0 %v1718
      %v1720 = vpop.xlane.xlu0 %1719
      %v1721 = vmax.f32 %v851, %v853
      %1722 = vmax.xlane.f32.xlu0 %v1721
      %v1723 = vpop.xlane.xlu0 %1722
      %v1724 = vmax.f32 %v855, %v857
      %1725 = vmax.xlane.f32.xlu0 %v1724
      %v1726 = vpop.xlane.xlu0 %1725
      %v1727 = vmax.f32 %v861, %v863
      %1728 = vmax.xlane.f32.xlu0 %v1727
      %v1729 = vpop.xlane.xlu0 %1728
      %v1730 = vmax.f32 %v865, %v867
      %1731 = vmax.xlane.f32.xlu0 %v1730
      %v1732 = vpop.xlane.xlu0 %1731
      %v1733 = vmax.f32 %v871, %v873
      %1734 = vmax.xlane.f32.xlu0 %v1733
      %v1735 = vpop.xlane.xlu0 %1734
      %v1736 = vmax.f32 %v875, %v877
      %1737 = vmax.xlane.f32.xlu0 %v1736
      %v1738 = vpop.xlane.xlu0 %1737
      %v1739 = vmax.f32 %v881, %v883
      %1740 = vmax.xlane.f32.xlu0 %v1739
      %v1741 = vpop.xlane.xlu0 %1740
      %v1742 = vmax.f32 %v885, %v887
      %1743 = vmax.xlane.f32.xlu0 %v1742
      %v1744 = vpop.xlane.xlu0 %1743
      %v1745 = vmax.f32 %v891, %v893
      %1746 = vmax.xlane.f32.xlu0 %v1745
      %v1747 = vpop.xlane.xlu0 %1746
      %v1748 = vmax.f32 %v895, %v897
      %1749 = vmax.xlane.f32.xlu0 %v1748
      %v1750 = vpop.xlane.xlu0 %1749
      %v1751 = vmax.f32 %v993, %v995
      %1752 = vmax.xlane.f32.xlu0 %v1751
      %v1753 = vpop.xlane.xlu0 %1752
      %v1754 = vmax.f32 %v997, %v999
      %1755 = vmax.xlane.f32.xlu0 %v1754
      %v1756 = vpop.xlane.xlu0 %1755
      %v1757 = vmax.f32 %v1003, %v1005
      %1758 = vmax.xlane.f32.xlu0 %v1757
      %v1759 = vpop.xlane.xlu0 %1758
      %v1760 = vmax.f32 %v1007, %v1009
      %1761 = vmax.xlane.f32.xlu0 %v1760
      %v1762 = vpop.xlane.xlu0 %1761
      %v1763 = vmax.f32 %v1013, %v1015
      %1764 = vmax.xlane.f32.xlu0 %v1763
      %v1765 = vpop.xlane.xlu0 %1764
      %v1766 = vmax.f32 %v1017, %v1019
      %1767 = vmax.xlane.f32.xlu0 %v1766
      %v1768 = vpop.xlane.xlu0 %1767
      %v1769 = vmax.f32 %v1023, %v1025
      %1770 = vmax.xlane.f32.xlu0 %v1769
      %v1771 = vpop.xlane.xlu0 %1770
      %v1772 = vmax.f32 %v1027, %v1029
      %1773 = vmax.xlane.f32.xlu0 %v1772
      %v1774 = vpop.xlane.xlu0 %1773
      %v1775 = vmax.f32 %v1033, %v1035
      %1776 = vmax.xlane.f32.xlu0 %v1775
      %v1777 = vpop.xlane.xlu0 %1776
      %v1778 = vmax.f32 %v1037, %v1039
      %1779 = vmax.xlane.f32.xlu0 %v1778
      %v1780 = vpop.xlane.xlu0 %1779
      %v1781 = vmax.f32 %v1043, %v1045
      %1782 = vmax.xlane.f32.xlu0 %v1781
      %v1783 = vpop.xlane.xlu0 %1782
      %v1784 = vmax.f32 %v1047, %v1049
      %1785 = vmax.xlane.f32.xlu0 %v1784
      %v1786 = vpop.xlane.xlu0 %1785
      %v1787 = vmax.f32 %v1053, %v1055
      %1788 = vmax.xlane.f32.xlu0 %v1787
      %v1789 = vpop.xlane.xlu0 %1788
      %v1790 = vmax.f32 %v1057, %v1059
      %1791 = vmax.xlane.f32.xlu0 %v1790
      %v1792 = vpop.xlane.xlu0 %1791
      %v1793 = vmax.f32 %v1063, %v1065
      %1794 = vmax.xlane.f32.xlu0 %v1793
      %v1795 = vpop.xlane.xlu0 %1794
      %v1796 = vmax.f32 %v1067, %v1069
      %1797 = vmax.xlane.f32.xlu0 %v1796
      %v1798 = vpop.xlane.xlu0 %1797
      %v1799 = vmax.f32 %v1073, %v1075
      %1800 = vmax.xlane.f32.xlu0 %v1799
      %v1801 = vpop.xlane.xlu0 %1800
      %v1802 = vmax.f32 %v1077, %v1079
      %1803 = vmax.xlane.f32.xlu0 %v1802
      %v1804 = vpop.xlane.xlu0 %1803
      %v1805 = vmax.f32 %v1083, %v1085
      %1806 = vmax.xlane.f32.xlu0 %v1805
      %v1807 = vpop.xlane.xlu0 %1806
      %v1808 = vmax.f32 %v1087, %v1089
      %1809 = vmax.xlane.f32.xlu0 %v1808
      %v1810 = vpop.xlane.xlu0 %1809
      %v1811 = vmax.f32 %v1093, %v1095
      %1812 = vmax.xlane.f32.xlu0 %v1811
      %v1813 = vpop.xlane.xlu0 %1812
      %v1814 = vmax.f32 %v1097, %v1099
      %1815 = vmax.xlane.f32.xlu0 %v1814
      %v1816 = vpop.xlane.xlu0 %1815
      %v1817 = vmax.f32 %v1103, %v1105
      %1818 = vmax.xlane.f32.xlu0 %v1817
      %v1819 = vpop.xlane.xlu0 %1818
      %v1820 = vmax.f32 %v1107, %v1109
      %1821 = vmax.xlane.f32.xlu0 %v1820
      %v1822 = vpop.xlane.xlu0 %1821
      %v1823 = vmax.f32 %v1113, %v1115
      %1824 = vmax.xlane.f32.xlu0 %v1823
      %v1825 = vpop.xlane.xlu0 %1824
      %v1826 = vmax.f32 %v1117, %v1119
      %1827 = vmax.xlane.f32.xlu0 %v1826
      %v1828 = vpop.xlane.xlu0 %1827
      %v1829 = vmax.f32 %v1123, %v1125
      %1830 = vmax.xlane.f32.xlu0 %v1829
      %v1831 = vpop.xlane.xlu0 %1830
      %v1832 = vmax.f32 %v1127, %v1129
      %1833 = vmax.xlane.f32.xlu0 %v1832
      %v1834 = vpop.xlane.xlu0 %1833
      %v1835 = vmax.f32 %v1133, %v1135
      %1836 = vmax.xlane.f32.xlu0 %v1835
      %v1837 = vpop.xlane.xlu0 %1836
      %v1838 = vmax.f32 %v1137, %v1139
      %1839 = vmax.xlane.f32.xlu0 %v1838
      %v1840 = vpop.xlane.xlu0 %1839
      %v1841 = vmax.f32 %v1143, %v1145
      %1842 = vmax.xlane.f32.xlu0 %v1841
      %v1843 = vpop.xlane.xlu0 %1842
      %v1844 = vmax.f32 %v1147, %v1149
      %1845 = vmax.xlane.f32.xlu0 %v1844
      %v1846 = vpop.xlane.xlu0 %1845
      %v1847 = vmax.f32 %v1245, %v1247
      %1848 = vmax.xlane.f32.xlu0 %v1847
      %v1849 = vpop.xlane.xlu0 %1848
      %v1850 = vmax.f32 %v1249, %v1251
      %1851 = vmax.xlane.f32.xlu0 %v1850
      %v1852 = vpop.xlane.xlu0 %1851
      %v1853 = vmax.f32 %v1255, %v1257
      %1854 = vmax.xlane.f32.xlu0 %v1853
      %v1855 = vpop.xlane.xlu0 %1854
      %v1856 = vmax.f32 %v1259, %v1261
      %1857 = vmax.xlane.f32.xlu0 %v1856
      %v1858 = vpop.xlane.xlu0 %1857
      %v1859 = vmax.f32 %v1265, %v1267
      %1860 = vmax.xlane.f32.xlu0 %v1859
      %v1861 = vpop.xlane.xlu0 %1860
      %v1862 = vmax.f32 %v1269, %v1271
      %1863 = vmax.xlane.f32.xlu0 %v1862
      %v1864 = vpop.xlane.xlu0 %1863
      %v1865 = vmax.f32 %v1275, %v1277
      %1866 = vmax.xlane.f32.xlu0 %v1865
      %v1867 = vpop.xlane.xlu0 %1866
      %v1868 = vmax.f32 %v1279, %v1281
      %1869 = vmax.xlane.f32.xlu0 %v1868
      %v1870 = vpop.xlane.xlu0 %1869
      %v1871 = vmax.f32 %v1285, %v1287
      %1872 = vmax.xlane.f32.xlu0 %v1871
      %v1873 = vpop.xlane.xlu0 %1872
      %v1874 = vmax.f32 %v1289, %v1291
      %1875 = vmax.xlane.f32.xlu0 %v1874
      %v1876 = vpop.xlane.xlu0 %1875
      %v1877 = vmax.f32 %v1295, %v1297
      %1878 = vmax.xlane.f32.xlu0 %v1877
      %v1879 = vpop.xlane.xlu0 %1878
      %v1880 = vmax.f32 %v1299, %v1301
      %1881 = vmax.xlane.f32.xlu0 %v1880
      %v1882 = vpop.xlane.xlu0 %1881
      %v1883 = vmax.f32 %v1305, %v1307
      %1884 = vmax.xlane.f32.xlu0 %v1883
      %v1885 = vpop.xlane.xlu0 %1884
      %v1886 = vmax.f32 %v1309, %v1311
      %1887 = vmax.xlane.f32.xlu0 %v1886
      %v1888 = vpop.xlane.xlu0 %1887
      %v1889 = vmax.f32 %v1315, %v1317
      %1890 = vmax.xlane.f32.xlu0 %v1889
      %v1891 = vpop.xlane.xlu0 %1890
      %v1892 = vmax.f32 %v1319, %v1321
      %1893 = vmax.xlane.f32.xlu0 %v1892
      %v1894 = vpop.xlane.xlu0 %1893
      %v1895 = vmax.f32 %v1325, %v1327
      %1896 = vmax.xlane.f32.xlu0 %v1895
      %v1897 = vpop.xlane.xlu0 %1896
      %v1898 = vmax.f32 %v1329, %v1331
      %1899 = vmax.xlane.f32.xlu0 %v1898
      %v1900 = vpop.xlane.xlu0 %1899
      %v1901 = vmax.f32 %v1335, %v1337
      %1902 = vmax.xlane.f32.xlu0 %v1901
      %v1903 = vpop.xlane.xlu0 %1902
      %v1904 = vmax.f32 %v1339, %v1341
      %1905 = vmax.xlane.f32.xlu0 %v1904
      %v1906 = vpop.xlane.xlu0 %1905
      %v1907 = vmax.f32 %v1345, %v1347
      %1908 = vmax.xlane.f32.xlu0 %v1907
      %v1909 = vpop.xlane.xlu0 %1908
      %v1910 = vmax.f32 %v1349, %v1351
      %1911 = vmax.xlane.f32.xlu0 %v1910
      %v1912 = vpop.xlane.xlu0 %1911
      %v1913 = vmax.f32 %v1355, %v1357
      %1914 = vmax.xlane.f32.xlu0 %v1913
      %v1915 = vpop.xlane.xlu0 %1914
      %v1916 = vmax.f32 %v1359, %v1361
      %1917 = vmax.xlane.f32.xlu0 %v1916
      %v1918 = vpop.xlane.xlu0 %1917
      %v1919 = vmax.f32 %v1365, %v1367
      %1920 = vmax.xlane.f32.xlu0 %v1919
      %v1921 = vpop.xlane.xlu0 %1920
      %v1922 = vmax.f32 %v1369, %v1371
      %1923 = vmax.xlane.f32.xlu0 %v1922
      %v1924 = vpop.xlane.xlu0 %1923
      %v1925 = vmax.f32 %v1375, %v1377
      %1926 = vmax.xlane.f32.xlu0 %v1925
      %v1927 = vpop.xlane.xlu0 %1926
      %v1928 = vmax.f32 %v1379, %v1381
      %1929 = vmax.xlane.f32.xlu0 %v1928
      %v1930 = vpop.xlane.xlu0 %1929
      %v1931 = vmax.f32 %v1385, %v1387
      %1932 = vmax.xlane.f32.xlu0 %v1931
      %v1933 = vpop.xlane.xlu0 %1932
      %v1934 = vmax.f32 %v1389, %v1391
      %1935 = vmax.xlane.f32.xlu0 %v1934
      %v1936 = vpop.xlane.xlu0 %1935
      %v1937 = vmax.f32 %v1395, %v1397
      %1938 = vmax.xlane.f32.xlu0 %v1937
      %v1939 = vpop.xlane.xlu0 %1938
      %v1940 = vmax.f32 %v1399, %v1401
      %1941 = vmax.xlane.f32.xlu0 %v1940
      %v1942 = vpop.xlane.xlu0 %1941
      %v1943 = vmax.f32 %v1497, %v1499
      %1944 = vmax.xlane.f32.xlu0 %v1943
      %v1945 = vpop.xlane.xlu0 %1944
      %v1946 = vmax.f32 %v1501, %v1503
      %1947 = vmax.xlane.f32.xlu0 %v1946
      %v1948 = vpop.xlane.xlu0 %1947
      %v1949 = vmax.f32 %v1507, %v1509
      %1950 = vmax.xlane.f32.xlu0 %v1949
      %v1951 = vpop.xlane.xlu0 %1950
      %v1952 = vmax.f32 %v1511, %v1513
      %1953 = vmax.xlane.f32.xlu0 %v1952
      %v1954 = vpop.xlane.xlu0 %1953
      %v1955 = vmax.f32 %v1517, %v1519
      %1956 = vmax.xlane.f32.xlu0 %v1955
      %v1957 = vpop.xlane.xlu0 %1956
      %v1958 = vmax.f32 %v1521, %v1523
      %1959 = vmax.xlane.f32.xlu0 %v1958
      %v1960 = vpop.xlane.xlu0 %1959
      %v1961 = vmax.f32 %v1527, %v1529
      %1962 = vmax.xlane.f32.xlu0 %v1961
      %v1963 = vpop.xlane.xlu0 %1962
      %v1964 = vmax.f32 %v1531, %v1533
      %1965 = vmax.xlane.f32.xlu0 %v1964
      %v1966 = vpop.xlane.xlu0 %1965
      %v1967 = vmax.f32 %v1537, %v1539
      %1968 = vmax.xlane.f32.xlu0 %v1967
      %v1969 = vpop.xlane.xlu0 %1968
      %v1970 = vmax.f32 %v1541, %v1543
      %1971 = vmax.xlane.f32.xlu0 %v1970
      %v1972 = vpop.xlane.xlu0 %1971
      %v1973 = vmax.f32 %v1547, %v1549
      %1974 = vmax.xlane.f32.xlu0 %v1973
      %v1975 = vpop.xlane.xlu0 %1974
      %v1976 = vmax.f32 %v1551, %v1553
      %1977 = vmax.xlane.f32.xlu0 %v1976
      %v1978 = vpop.xlane.xlu0 %1977
      %v1979 = vmax.f32 %v1557, %v1559
      %1980 = vmax.xlane.f32.xlu0 %v1979
      %v1981 = vpop.xlane.xlu0 %1980
      %v1982 = vmax.f32 %v1561, %v1563
      %1983 = vmax.xlane.f32.xlu0 %v1982
      %v1984 = vpop.xlane.xlu0 %1983
      %v1985 = vmax.f32 %v1567, %v1569
      %1986 = vmax.xlane.f32.xlu0 %v1985
      %v1987 = vpop.xlane.xlu0 %1986
      %v1988 = vmax.f32 %v1571, %v1573
      %1989 = vmax.xlane.f32.xlu0 %v1988
      %v1990 = vpop.xlane.xlu0 %1989
      %v1991 = vmax.f32 %v1577, %v1579
      %1992 = vmax.xlane.f32.xlu0 %v1991
      %v1993 = vpop.xlane.xlu0 %1992
      %v1994 = vmax.f32 %v1581, %v1583
      %1995 = vmax.xlane.f32.xlu0 %v1994
      %v1996 = vpop.xlane.xlu0 %1995
      %v1997 = vmax.f32 %v1587, %v1589
      %1998 = vmax.xlane.f32.xlu0 %v1997
      %v1999 = vpop.xlane.xlu0 %1998
      %v2000 = vmax.f32 %v1591, %v1593
      %2001 = vmax.xlane.f32.xlu0 %v2000
      %v2002 = vpop.xlane.xlu0 %2001
      %v2003 = vmax.f32 %v1597, %v1599
      %2004 = vmax.xlane.f32.xlu0 %v2003
      %v2005 = vpop.xlane.xlu0 %2004
      %v2006 = vmax.f32 %v1601, %v1603
      %2007 = vmax.xlane.f32.xlu0 %v2006
      %v2008 = vpop.xlane.xlu0 %2007
      %v2009 = vmax.f32 %v1607, %v1609
      %2010 = vmax.xlane.f32.xlu0 %v2009
      %v2011 = vpop.xlane.xlu0 %2010
      %v2012 = vmax.f32 %v1611, %v1613
      %2013 = vmax.xlane.f32.xlu0 %v2012
      %v2014 = vpop.xlane.xlu0 %2013
      %v2015 = vmax.f32 %v1617, %v1619
      %2016 = vmax.xlane.f32.xlu0 %v2015
      %v2017 = vpop.xlane.xlu0 %2016
      %v2018 = vmax.f32 %v1621, %v1623
      %2019 = vmax.xlane.f32.xlu0 %v2018
      %v2020 = vpop.xlane.xlu0 %2019
      %v2021 = vmax.f32 %v1627, %v1629
      %2022 = vmax.xlane.f32.xlu0 %v2021
      %v2023 = vpop.xlane.xlu0 %2022
      %v2024 = vmax.f32 %v1631, %v1633
      %2025 = vmax.xlane.f32.xlu0 %v2024
      %v2026 = vpop.xlane.xlu0 %2025
      %v2027 = vmax.f32 %v1637, %v1639
      %2028 = vmax.xlane.f32.xlu0 %v2027
      %v2029 = vpop.xlane.xlu0 %2028
      %v2030 = vmax.f32 %v1641, %v1643
      %2031 = vmax.xlane.f32.xlu0 %v2030
      %v2032 = vpop.xlane.xlu0 %2031
      %v2033 = vmax.f32 %v1647, %v1649
      %2034 = vmax.xlane.f32.xlu0 %v2033
      %v2035 = vpop.xlane.xlu0 %2034
      %v2036 = vmax.f32 %v1651, %v1653
      %2037 = vmax.xlane.f32.xlu0 %v2036
      %v2038 = vpop.xlane.xlu0 %2037
      %v2039 = vsub.f32 %v741, %v1657
      %v2040 = vsub.f32 %v743, %v1657
      %v2041 = vsub.f32 %v745, %v1660
      %v2042 = vsub.f32 %v747, %v1660
      %v2043 = vsub.f32 %v751, %v1663
      %v2044 = vsub.f32 %v753, %v1663
      %v2045 = vsub.f32 %v755, %v1666
      %v2046 = vsub.f32 %v757, %v1666
      %v2047 = vsub.f32 %v761, %v1669
      %v2048 = vsub.f32 %v763, %v1669
      %v2049 = vsub.f32 %v765, %v1672
      %v2050 = vsub.f32 %v767, %v1672
      %v2051 = vsub.f32 %v771, %v1675
      %v2052 = vsub.f32 %v773, %v1675
      %v2053 = vsub.f32 %v775, %v1678
      %v2054 = vsub.f32 %v777, %v1678
      %v2055 = vsub.f32 %v781, %v1681
      %v2056 = vsub.f32 %v783, %v1681
      %v2057 = vsub.f32 %v785, %v1684
      %v2058 = vsub.f32 %v787, %v1684
      %v2059 = vsub.f32 %v791, %v1687
      %v2060 = vsub.f32 %v793, %v1687
      %v2061 = vsub.f32 %v795, %v1690
      %v2062 = vsub.f32 %v797, %v1690
      %v2063 = vsub.f32 %v801, %v1693
      %v2064 = vsub.f32 %v803, %v1693
      %v2065 = vsub.f32 %v805, %v1696
      %v2066 = vsub.f32 %v807, %v1696
      %v2067 = vsub.f32 %v811, %v1699
      %v2068 = vsub.f32 %v813, %v1699
      %v2069 = vsub.f32 %v815, %v1702
      %v2070 = vsub.f32 %v817, %v1702
      %v2071 = vsub.f32 %v821, %v1705
      %v2072 = vsub.f32 %v823, %v1705
      %v2073 = vsub.f32 %v825, %v1708
      %v2074 = vsub.f32 %v827, %v1708
      %v2075 = vsub.f32 %v831, %v1711
      %v2076 = vsub.f32 %v833, %v1711
      %v2077 = vsub.f32 %v835, %v1714
      %v2078 = vsub.f32 %v837, %v1714
      %v2079 = vsub.f32 %v841, %v1717
      %v2080 = vsub.f32 %v843, %v1717
      %v2081 = vsub.f32 %v845, %v1720
      %v2082 = vsub.f32 %v847, %v1720
      %v2083 = vsub.f32 %v851, %v1723
      %v2084 = vsub.f32 %v853, %v1723
      %v2085 = vsub.f32 %v855, %v1726
      %v2086 = vsub.f32 %v857, %v1726
      %v2087 = vsub.f32 %v861, %v1729
      %v2088 = vsub.f32 %v863, %v1729
      %v2089 = vsub.f32 %v865, %v1732
      %v2090 = vsub.f32 %v867, %v1732
      %v2091 = vsub.f32 %v871, %v1735
      %v2092 = vsub.f32 %v873, %v1735
      %v2093 = vsub.f32 %v875, %v1738
      %v2094 = vsub.f32 %v877, %v1738
      %v2095 = vsub.f32 %v881, %v1741
      %v2096 = vsub.f32 %v883, %v1741
      %v2097 = vsub.f32 %v885, %v1744
      %v2098 = vsub.f32 %v887, %v1744
      %v2099 = vsub.f32 %v891, %v1747
      %v2100 = vsub.f32 %v893, %v1747
      %v2101 = vsub.f32 %v895, %v1750
      %v2102 = vsub.f32 %v897, %v1750
      %v2103 = vsub.f32 %v993, %v1753
      %v2104 = vsub.f32 %v995, %v1753
      %v2105 = vsub.f32 %v997, %v1756
      %v2106 = vsub.f32 %v999, %v1756
      %v2107 = vsub.f32 %v1003, %v1759
      %v2108 = vsub.f32 %v1005, %v1759
      %v2109 = vsub.f32 %v1007, %v1762
      %v2110 = vsub.f32 %v1009, %v1762
      %v2111 = vsub.f32 %v1013, %v1765
      %v2112 = vsub.f32 %v1015, %v1765
      %v2113 = vsub.f32 %v1017, %v1768
      %v2114 = vsub.f32 %v1019, %v1768
      %v2115 = vsub.f32 %v1023, %v1771
      %v2116 = vsub.f32 %v1025, %v1771
      %v2117 = vsub.f32 %v1027, %v1774
      %v2118 = vsub.f32 %v1029, %v1774
      %v2119 = vsub.f32 %v1033, %v1777
      %v2120 = vsub.f32 %v1035, %v1777
      %v2121 = vsub.f32 %v1037, %v1780
      %v2122 = vsub.f32 %v1039, %v1780
      %v2123 = vsub.f32 %v1043, %v1783
      %v2124 = vsub.f32 %v1045, %v1783
      %v2125 = vsub.f32 %v1047, %v1786
      %v2126 = vsub.f32 %v1049, %v1786
      %v2127 = vsub.f32 %v1053, %v1789
      %v2128 = vsub.f32 %v1055, %v1789
      %v2129 = vsub.f32 %v1057, %v1792
      %v2130 = vsub.f32 %v1059, %v1792
      %v2131 = vsub.f32 %v1063, %v1795
      %v2132 = vsub.f32 %v1065, %v1795
      %v2133 = vsub.f32 %v1067, %v1798
      %v2134 = vsub.f32 %v1069, %v1798
      %v2135 = vsub.f32 %v1073, %v1801
      %v2136 = vsub.f32 %v1075, %v1801
      %v2137 = vsub.f32 %v1077, %v1804
      %v2138 = vsub.f32 %v1079, %v1804
      %v2139 = vsub.f32 %v1083, %v1807
      %v2140 = vsub.f32 %v1085, %v1807
      %v2141 = vsub.f32 %v1087, %v1810
      %v2142 = vsub.f32 %v1089, %v1810
      %v2143 = vsub.f32 %v1093, %v1813
      %v2144 = vsub.f32 %v1095, %v1813
      %v2145 = vsub.f32 %v1097, %v1816
      %v2146 = vsub.f32 %v1099, %v1816
      %v2147 = vsub.f32 %v1103, %v1819
      %v2148 = vsub.f32 %v1105, %v1819
      %v2149 = vsub.f32 %v1107, %v1822
      %v2150 = vsub.f32 %v1109, %v1822
      %v2151 = vsub.f32 %v1113, %v1825
      %v2152 = vsub.f32 %v1115, %v1825
      %v2153 = vsub.f32 %v1117, %v1828
      %v2154 = vsub.f32 %v1119, %v1828
      %v2155 = vsub.f32 %v1123, %v1831
      %v2156 = vsub.f32 %v1125, %v1831
      %v2157 = vsub.f32 %v1127, %v1834
      %v2158 = vsub.f32 %v1129, %v1834
      %v2159 = vsub.f32 %v1133, %v1837
      %v2160 = vsub.f32 %v1135, %v1837
      %v2161 = vsub.f32 %v1137, %v1840
      %v2162 = vsub.f32 %v1139, %v1840
      %v2163 = vsub.f32 %v1143, %v1843
      %v2164 = vsub.f32 %v1145, %v1843
      %v2165 = vsub.f32 %v1147, %v1846
      %v2166 = vsub.f32 %v1149, %v1846
      %v2167 = vsub.f32 %v1245, %v1849
      %v2168 = vsub.f32 %v1247, %v1849
      %v2169 = vsub.f32 %v1249, %v1852
      %v2170 = vsub.f32 %v1251, %v1852
      %v2171 = vsub.f32 %v1255, %v1855
      %v2172 = vsub.f32 %v1257, %v1855
      %v2173 = vsub.f32 %v1259, %v1858
      %v2174 = vsub.f32 %v1261, %v1858
      %v2175 = vsub.f32 %v1265, %v1861
      %v2176 = vsub.f32 %v1267, %v1861
      %v2177 = vsub.f32 %v1269, %v1864
      %v2178 = vsub.f32 %v1271, %v1864
      %v2179 = vsub.f32 %v1275, %v1867
      %v2180 = vsub.f32 %v1277, %v1867
      %v2181 = vsub.f32 %v1279, %v1870
      %v2182 = vsub.f32 %v1281, %v1870
      %v2183 = vsub.f32 %v1285, %v1873
      %v2184 = vsub.f32 %v1287, %v1873
      %v2185 = vsub.f32 %v1289, %v1876
      %v2186 = vsub.f32 %v1291, %v1876
      %v2187 = vsub.f32 %v1295, %v1879
      %v2188 = vsub.f32 %v1297, %v1879
      %v2189 = vsub.f32 %v1299, %v1882
      %v2190 = vsub.f32 %v1301, %v1882
      %v2191 = vsub.f32 %v1305, %v1885
      %v2192 = vsub.f32 %v1307, %v1885
      %v2193 = vsub.f32 %v1309, %v1888
      %v2194 = vsub.f32 %v1311, %v1888
      %v2195 = vsub.f32 %v1315, %v1891
      %v2196 = vsub.f32 %v1317, %v1891
      %v2197 = vsub.f32 %v1319, %v1894
      %v2198 = vsub.f32 %v1321, %v1894
      %v2199 = vsub.f32 %v1325, %v1897
      %v2200 = vsub.f32 %v1327, %v1897
      %v2201 = vsub.f32 %v1329, %v1900
      %v2202 = vsub.f32 %v1331, %v1900
      %v2203 = vsub.f32 %v1335, %v1903
      %v2204 = vsub.f32 %v1337, %v1903
      %v2205 = vsub.f32 %v1339, %v1906
      %v2206 = vsub.f32 %v1341, %v1906
      %v2207 = vsub.f32 %v1345, %v1909
      %v2208 = vsub.f32 %v1347, %v1909
      %v2209 = vsub.f32 %v1349, %v1912
      %v2210 = vsub.f32 %v1351, %v1912
      %v2211 = vsub.f32 %v1355, %v1915
      %v2212 = vsub.f32 %v1357, %v1915
      %v2213 = vsub.f32 %v1359, %v1918
      %v2214 = vsub.f32 %v1361, %v1918
      %v2215 = vsub.f32 %v1365, %v1921
      %v2216 = vsub.f32 %v1367, %v1921
      %v2217 = vsub.f32 %v1369, %v1924
      %v2218 = vsub.f32 %v1371, %v1924
      %v2219 = vsub.f32 %v1375, %v1927
      %v2220 = vsub.f32 %v1377, %v1927
      %v2221 = vsub.f32 %v1379, %v1930
      %v2222 = vsub.f32 %v1381, %v1930
      %v2223 = vsub.f32 %v1385, %v1933
      %v2224 = vsub.f32 %v1387, %v1933
      %v2225 = vsub.f32 %v1389, %v1936
      %v2226 = vsub.f32 %v1391, %v1936
      %v2227 = vsub.f32 %v1395, %v1939
      %v2228 = vsub.f32 %v1397, %v1939
      %v2229 = vsub.f32 %v1399, %v1942
      %v2230 = vsub.f32 %v1401, %v1942
      %v2231 = vsub.f32 %v1497, %v1945
      %v2232 = vsub.f32 %v1499, %v1945
      %v2233 = vsub.f32 %v1501, %v1948
      %v2234 = vsub.f32 %v1503, %v1948
      %v2235 = vsub.f32 %v1507, %v1951
      %v2236 = vsub.f32 %v1509, %v1951
      %v2237 = vsub.f32 %v1511, %v1954
      %v2238 = vsub.f32 %v1513, %v1954
      %v2239 = vsub.f32 %v1517, %v1957
      %v2240 = vsub.f32 %v1519, %v1957
      %v2241 = vsub.f32 %v1521, %v1960
      %v2242 = vsub.f32 %v1523, %v1960
      %v2243 = vsub.f32 %v1527, %v1963
      %v2244 = vsub.f32 %v1529, %v1963
      %v2245 = vsub.f32 %v1531, %v1966
      %v2246 = vsub.f32 %v1533, %v1966
      %v2247 = vsub.f32 %v1537, %v1969
      %v2248 = vsub.f32 %v1539, %v1969
      %v2249 = vsub.f32 %v1541, %v1972
      %v2250 = vsub.f32 %v1543, %v1972
      %v2251 = vsub.f32 %v1547, %v1975
      %v2252 = vsub.f32 %v1549, %v1975
      %v2253 = vsub.f32 %v1551, %v1978
      %v2254 = vsub.f32 %v1553, %v1978
      %v2255 = vsub.f32 %v1557, %v1981
      %v2256 = vsub.f32 %v1559, %v1981
      %v2257 = vsub.f32 %v1561, %v1984
      %v2258 = vsub.f32 %v1563, %v1984
      %v2259 = vsub.f32 %v1567, %v1987
      %v2260 = vsub.f32 %v1569, %v1987
      %v2261 = vsub.f32 %v1571, %v1990
      %v2262 = vsub.f32 %v1573, %v1990
      %v2263 = vsub.f32 %v1577, %v1993
      %v2264 = vsub.f32 %v1579, %v1993
      %v2265 = vsub.f32 %v1581, %v1996
      %v2266 = vsub.f32 %v1583, %v1996
      %v2267 = vsub.f32 %v1587, %v1999
      %v2268 = vsub.f32 %v1589, %v1999
      %v2269 = vsub.f32 %v1591, %v2002
      %v2270 = vsub.f32 %v1593, %v2002
      %v2271 = vsub.f32 %v1597, %v2005
      %v2272 = vsub.f32 %v1599, %v2005
      %v2273 = vsub.f32 %v1601, %v2008
      %v2274 = vsub.f32 %v1603, %v2008
      %v2275 = vsub.f32 %v1607, %v2011
      %v2276 = vsub.f32 %v1609, %v2011
      %v2277 = vsub.f32 %v1611, %v2014
      %v2278 = vsub.f32 %v1613, %v2014
      %v2279 = vsub.f32 %v1617, %v2017
      %v2280 = vsub.f32 %v1619, %v2017
      %v2281 = vsub.f32 %v1621, %v2020
      %v2282 = vsub.f32 %v1623, %v2020
      %v2283 = vsub.f32 %v1627, %v2023
      %v2284 = vsub.f32 %v1629, %v2023
      %v2285 = vsub.f32 %v1631, %v2026
      %v2286 = vsub.f32 %v1633, %v2026
      %v2287 = vsub.f32 %v1637, %v2029
      %v2288 = vsub.f32 %v1639, %v2029
      %v2289 = vsub.f32 %v1641, %v2032
      %v2290 = vsub.f32 %v1643, %v2032
      %v2291 = vsub.f32 %v1647, %v2035
      %v2292 = vsub.f32 %v1649, %v2035
      %v2293 = vsub.f32 %v1651, %v2038
      %v2294 = vsub.f32 %v1653, %v2038
      %v2295 = vmul.f32 %v2039, 1.442695
      %v2296 = vpow.pop %v2295
      %v2297 = vmul.f32 %v2040, 1.442695
      %v2298 = vpow.pop %v2297
      %v2299 = vmul.f32 %v2041, 1.442695
      %v2300 = vpow.pop %v2299
      %v2301 = vmul.f32 %v2042, 1.442695
      %v2302 = vpow.pop %v2301
      %v2303 = vmul.f32 %v2043, 1.442695
      %v2304 = vpow.pop %v2303
      %v2305 = vmul.f32 %v2044, 1.442695
      %v2306 = vpow.pop %v2305
      %v2307 = vmul.f32 %v2045, 1.442695
      %v2308 = vpow.pop %v2307
      %v2309 = vmul.f32 %v2046, 1.442695
      %v2310 = vpow.pop %v2309
      %v2311 = vmul.f32 %v2047, 1.442695
      %v2312 = vpow.pop %v2311
      %v2313 = vmul.f32 %v2048, 1.442695
      %v2314 = vpow.pop %v2313
      %v2315 = vmul.f32 %v2049, 1.442695
      %v2316 = vpow.pop %v2315
      %v2317 = vmul.f32 %v2050, 1.442695
      %v2318 = vpow.pop %v2317
      %v2319 = vmul.f32 %v2051, 1.442695
      %v2320 = vpow.pop %v2319
      %v2321 = vmul.f32 %v2052, 1.442695
      %v2322 = vpow.pop %v2321
      %v2323 = vmul.f32 %v2053, 1.442695
      %v2324 = vpow.pop %v2323
      %v2325 = vmul.f32 %v2054, 1.442695
      %v2326 = vpow.pop %v2325
      %v2327 = vmul.f32 %v2055, 1.442695
      %v2328 = vpow.pop %v2327
      %v2329 = vmul.f32 %v2056, 1.442695
      %v2330 = vpow.pop %v2329
      %v2331 = vmul.f32 %v2057, 1.442695
      %v2332 = vpow.pop %v2331
      %v2333 = vmul.f32 %v2058, 1.442695
      %v2334 = vpow.pop %v2333
      %v2335 = vmul.f32 %v2059, 1.442695
      %v2336 = vpow.pop %v2335
      %v2337 = vmul.f32 %v2060, 1.442695
      %v2338 = vpow.pop %v2337
      %v2339 = vmul.f32 %v2061, 1.442695
      %v2340 = vpow.pop %v2339
      %v2341 = vmul.f32 %v2062, 1.442695
      %v2342 = vpow.pop %v2341
      %v2343 = vmul.f32 %v2063, 1.442695
      %v2344 = vpow.pop %v2343
      %v2345 = vmul.f32 %v2064, 1.442695
      %v2346 = vpow.pop %v2345
      %v2347 = vmul.f32 %v2065, 1.442695
      %v2348 = vpow.pop %v2347
      %v2349 = vmul.f32 %v2066, 1.442695
      %v2350 = vpow.pop %v2349
      %v2351 = vmul.f32 %v2067, 1.442695
      %v2352 = vpow.pop %v2351
      %v2353 = vmul.f32 %v2068, 1.442695
      %v2354 = vpow.pop %v2353
      %v2355 = vmul.f32 %v2069, 1.442695
      %v2356 = vpow.pop %v2355
      %v2357 = vmul.f32 %v2070, 1.442695
      %v2358 = vpow.pop %v2357
      %v2359 = vmul.f32 %v2071, 1.442695
      %v2360 = vpow.pop %v2359
      %v2361 = vmul.f32 %v2072, 1.442695
      %v2362 = vpow.pop %v2361
      %v2363 = vmul.f32 %v2073, 1.442695
      %v2364 = vpow.pop %v2363
      %v2365 = vmul.f32 %v2074, 1.442695
      %v2366 = vpow.pop %v2365
      %v2367 = vmul.f32 %v2075, 1.442695
      %v2368 = vpow.pop %v2367
      %v2369 = vmul.f32 %v2076, 1.442695
      %v2370 = vpow.pop %v2369
      %v2371 = vmul.f32 %v2077, 1.442695
      %v2372 = vpow.pop %v2371
      %v2373 = vmul.f32 %v2078, 1.442695
      %v2374 = vpow.pop %v2373
      %v2375 = vmul.f32 %v2079, 1.442695
      %v2376 = vpow.pop %v2375
      %v2377 = vmul.f32 %v2080, 1.442695
      %v2378 = vpow.pop %v2377
      %v2379 = vmul.f32 %v2081, 1.442695
      %v2380 = vpow.pop %v2379
      %v2381 = vmul.f32 %v2082, 1.442695
      %v2382 = vpow.pop %v2381
      %v2383 = vmul.f32 %v2083, 1.442695
      %v2384 = vpow.pop %v2383
      %v2385 = vmul.f32 %v2084, 1.442695
      %v2386 = vpow.pop %v2385
      %v2387 = vmul.f32 %v2085, 1.442695
      %v2388 = vpow.pop %v2387
      %v2389 = vmul.f32 %v2086, 1.442695
      %v2390 = vpow.pop %v2389
      %v2391 = vmul.f32 %v2087, 1.442695
      %v2392 = vpow.pop %v2391
      %v2393 = vmul.f32 %v2088, 1.442695
      %v2394 = vpow.pop %v2393
      %v2395 = vmul.f32 %v2089, 1.442695
      %v2396 = vpow.pop %v2395
      %v2397 = vmul.f32 %v2090, 1.442695
      %v2398 = vpow.pop %v2397
      %v2399 = vmul.f32 %v2091, 1.442695
      %v2400 = vpow.pop %v2399
      %v2401 = vmul.f32 %v2092, 1.442695
      %v2402 = vpow.pop %v2401
      %v2403 = vmul.f32 %v2093, 1.442695
      %v2404 = vpow.pop %v2403
      %v2405 = vmul.f32 %v2094, 1.442695
      %v2406 = vpow.pop %v2405
      %v2407 = vmul.f32 %v2095, 1.442695
      %v2408 = vpow.pop %v2407
      %v2409 = vmul.f32 %v2096, 1.442695
      %v2410 = vpow.pop %v2409
      %v2411 = vmul.f32 %v2097, 1.442695
      %v2412 = vpow.pop %v2411
      %v2413 = vmul.f32 %v2098, 1.442695
      %v2414 = vpow.pop %v2413
      %v2415 = vmul.f32 %v2099, 1.442695
      %v2416 = vpow.pop %v2415
      %v2417 = vmul.f32 %v2100, 1.442695
      %v2418 = vpow.pop %v2417
      %v2419 = vmul.f32 %v2101, 1.442695
      %v2420 = vpow.pop %v2419
      %v2421 = vmul.f32 %v2102, 1.442695
      %v2422 = vpow.pop %v2421
      %v2423 = vmul.f32 %v2103, 1.442695
      %v2424 = vpow.pop %v2423
      %v2425 = vmul.f32 %v2104, 1.442695
      %v2426 = vpow.pop %v2425
      %v2427 = vmul.f32 %v2105, 1.442695
      %v2428 = vpow.pop %v2427
      %v2429 = vmul.f32 %v2106, 1.442695
      %v2430 = vpow.pop %v2429
      %v2431 = vmul.f32 %v2107, 1.442695
      %v2432 = vpow.pop %v2431
      %v2433 = vmul.f32 %v2108, 1.442695
      %v2434 = vpow.pop %v2433
      %v2435 = vmul.f32 %v2109, 1.442695
      %v2436 = vpow.pop %v2435
      %v2437 = vmul.f32 %v2110, 1.442695
      %v2438 = vpow.pop %v2437
      %v2439 = vmul.f32 %v2111, 1.442695
      %v2440 = vpow.pop %v2439
      %v2441 = vmul.f32 %v2112, 1.442695
      %v2442 = vpow.pop %v2441
      %v2443 = vmul.f32 %v2113, 1.442695
      %v2444 = vpow.pop %v2443
      %v2445 = vmul.f32 %v2114, 1.442695
      %v2446 = vpow.pop %v2445
      %v2447 = vmul.f32 %v2115, 1.442695
      %v2448 = vpow.pop %v2447
      %v2449 = vmul.f32 %v2116, 1.442695
      %v2450 = vpow.pop %v2449
      %v2451 = vmul.f32 %v2117, 1.442695
      %v2452 = vpow.pop %v2451
      %v2453 = vmul.f32 %v2118, 1.442695
      %v2454 = vpow.pop %v2453
      %v2455 = vmul.f32 %v2119, 1.442695
      %v2456 = vpow.pop %v2455
      %v2457 = vmul.f32 %v2120, 1.442695
      %v2458 = vpow.pop %v2457
      %v2459 = vmul.f32 %v2121, 1.442695
      %v2460 = vpow.pop %v2459
      %v2461 = vmul.f32 %v2122, 1.442695
      %v2462 = vpow.pop %v2461
      %v2463 = vmul.f32 %v2123, 1.442695
      %v2464 = vpow.pop %v2463
      %v2465 = vmul.f32 %v2124, 1.442695
      %v2466 = vpow.pop %v2465
      %v2467 = vmul.f32 %v2125, 1.442695
      %v2468 = vpow.pop %v2467
      %v2469 = vmul.f32 %v2126, 1.442695
      %v2470 = vpow.pop %v2469
      %v2471 = vmul.f32 %v2127, 1.442695
      %v2472 = vpow.pop %v2471
      %v2473 = vmul.f32 %v2128, 1.442695
      %v2474 = vpow.pop %v2473
      %v2475 = vmul.f32 %v2129, 1.442695
      %v2476 = vpow.pop %v2475
      %v2477 = vmul.f32 %v2130, 1.442695
      %v2478 = vpow.pop %v2477
      %v2479 = vmul.f32 %v2131, 1.442695
      %v2480 = vpow.pop %v2479
      %v2481 = vmul.f32 %v2132, 1.442695
      %v2482 = vpow.pop %v2481
      %v2483 = vmul.f32 %v2133, 1.442695
      %v2484 = vpow.pop %v2483
      %v2485 = vmul.f32 %v2134, 1.442695
      %v2486 = vpow.pop %v2485
      %v2487 = vmul.f32 %v2135, 1.442695
      %v2488 = vpow.pop %v2487
      %v2489 = vmul.f32 %v2136, 1.442695
      %v2490 = vpow.pop %v2489
      %v2491 = vmul.f32 %v2137, 1.442695
      %v2492 = vpow.pop %v2491
      %v2493 = vmul.f32 %v2138, 1.442695
      %v2494 = vpow.pop %v2493
      %v2495 = vmul.f32 %v2139, 1.442695
      %v2496 = vpow.pop %v2495
      %v2497 = vmul.f32 %v2140, 1.442695
      %v2498 = vpow.pop %v2497
      %v2499 = vmul.f32 %v2141, 1.442695
      %v2500 = vpow.pop %v2499
      %v2501 = vmul.f32 %v2142, 1.442695
      %v2502 = vpow.pop %v2501
      %v2503 = vmul.f32 %v2143, 1.442695
      %v2504 = vpow.pop %v2503
      %v2505 = vmul.f32 %v2144, 1.442695
      %v2506 = vpow.pop %v2505
      %v2507 = vmul.f32 %v2145, 1.442695
      %v2508 = vpow.pop %v2507
      %v2509 = vmul.f32 %v2146, 1.442695
      %v2510 = vpow.pop %v2509
      %v2511 = vmul.f32 %v2147, 1.442695
      %v2512 = vpow.pop %v2511
      %v2513 = vmul.f32 %v2148, 1.442695
      %v2514 = vpow.pop %v2513
      %v2515 = vmul.f32 %v2149, 1.442695
      %v2516 = vpow.pop %v2515
      %v2517 = vmul.f32 %v2150, 1.442695
      %v2518 = vpow.pop %v2517
      %v2519 = vmul.f32 %v2151, 1.442695
      %v2520 = vpow.pop %v2519
      %v2521 = vmul.f32 %v2152, 1.442695
      %v2522 = vpow.pop %v2521
      %v2523 = vmul.f32 %v2153, 1.442695
      %v2524 = vpow.pop %v2523
      %v2525 = vmul.f32 %v2154, 1.442695
      %v2526 = vpow.pop %v2525
      %v2527 = vmul.f32 %v2155, 1.442695
      %v2528 = vpow.pop %v2527
      %v2529 = vmul.f32 %v2156, 1.442695
      %v2530 = vpow.pop %v2529
      %v2531 = vmul.f32 %v2157, 1.442695
      %v2532 = vpow.pop %v2531
      %v2533 = vmul.f32 %v2158, 1.442695
      %v2534 = vpow.pop %v2533
      %v2535 = vmul.f32 %v2159, 1.442695
      %v2536 = vpow.pop %v2535
      %v2537 = vmul.f32 %v2160, 1.442695
      %v2538 = vpow.pop %v2537
      %v2539 = vmul.f32 %v2161, 1.442695
      %v2540 = vpow.pop %v2539
      %v2541 = vmul.f32 %v2162, 1.442695
      %v2542 = vpow.pop %v2541
      %v2543 = vmul.f32 %v2163, 1.442695
      %v2544 = vpow.pop %v2543
      %v2545 = vmul.f32 %v2164, 1.442695
      %v2546 = vpow.pop %v2545
      %v2547 = vmul.f32 %v2165, 1.442695
      %v2548 = vpow.pop %v2547
      %v2549 = vmul.f32 %v2166, 1.442695
      %v2550 = vpow.pop %v2549
      %v2551 = vmul.f32 %v2167, 1.442695
      %v2552 = vpow.pop %v2551
      %v2553 = vmul.f32 %v2168, 1.442695
      %v2554 = vpow.pop %v2553
      %v2555 = vmul.f32 %v2169, 1.442695
      %v2556 = vpow.pop %v2555
      %v2557 = vmul.f32 %v2170, 1.442695
      %v2558 = vpow.pop %v2557
      %v2559 = vmul.f32 %v2171, 1.442695
      %v2560 = vpow.pop %v2559
      %v2561 = vmul.f32 %v2172, 1.442695
      %v2562 = vpow.pop %v2561
      %v2563 = vmul.f32 %v2173, 1.442695
      %v2564 = vpow.pop %v2563
      %v2565 = vmul.f32 %v2174, 1.442695
      %v2566 = vpow.pop %v2565
      %v2567 = vmul.f32 %v2175, 1.442695
      %v2568 = vpow.pop %v2567
      %v2569 = vmul.f32 %v2176, 1.442695
      %v2570 = vpow.pop %v2569
      %v2571 = vmul.f32 %v2177, 1.442695
      %v2572 = vpow.pop %v2571
      %v2573 = vmul.f32 %v2178, 1.442695
      %v2574 = vpow.pop %v2573
      %v2575 = vmul.f32 %v2179, 1.442695
      %v2576 = vpow.pop %v2575
      %v2577 = vmul.f32 %v2180, 1.442695
      %v2578 = vpow.pop %v2577
      %v2579 = vmul.f32 %v2181, 1.442695
      %v2580 = vpow.pop %v2579
      %v2581 = vmul.f32 %v2182, 1.442695
      %v2582 = vpow.pop %v2581
      %v2583 = vmul.f32 %v2183, 1.442695
      %v2584 = vpow.pop %v2583
      %v2585 = vmul.f32 %v2184, 1.442695
      %v2586 = vpow.pop %v2585
      %v2587 = vmul.f32 %v2185, 1.442695
      %v2588 = vpow.pop %v2587
      %v2589 = vmul.f32 %v2186, 1.442695
      %v2590 = vpow.pop %v2589
      %v2591 = vmul.f32 %v2187, 1.442695
      %v2592 = vpow.pop %v2591
      %v2593 = vmul.f32 %v2188, 1.442695
      %v2594 = vpow.pop %v2593
      %v2595 = vmul.f32 %v2189, 1.442695
      %v2596 = vpow.pop %v2595
      %v2597 = vmul.f32 %v2190, 1.442695
      %v2598 = vpow.pop %v2597
      %v2599 = vmul.f32 %v2191, 1.442695
      %v2600 = vpow.pop %v2599
      %v2601 = vmul.f32 %v2192, 1.442695
      %v2602 = vpow.pop %v2601
      %v2603 = vmul.f32 %v2193, 1.442695
      %v2604 = vpow.pop %v2603
      %v2605 = vmul.f32 %v2194, 1.442695
      %v2606 = vpow.pop %v2605
      %v2607 = vmul.f32 %v2195, 1.442695
      %v2608 = vpow.pop %v2607
      %v2609 = vmul.f32 %v2196, 1.442695
      %v2610 = vpow.pop %v2609
      %v2611 = vmul.f32 %v2197, 1.442695
      %v2612 = vpow.pop %v2611
      %v2613 = vmul.f32 %v2198, 1.442695
      %v2614 = vpow.pop %v2613
      %v2615 = vmul.f32 %v2199, 1.442695
      %v2616 = vpow.pop %v2615
      %v2617 = vmul.f32 %v2200, 1.442695
      %v2618 = vpow.pop %v2617
      %v2619 = vmul.f32 %v2201, 1.442695
      %v2620 = vpow.pop %v2619
      %v2621 = vmul.f32 %v2202, 1.442695
      %v2622 = vpow.pop %v2621
      %v2623 = vmul.f32 %v2203, 1.442695
      %v2624 = vpow.pop %v2623
      %v2625 = vmul.f32 %v2204, 1.442695
      %v2626 = vpow.pop %v2625
      %v2627 = vmul.f32 %v2205, 1.442695
      %v2628 = vpow.pop %v2627
      %v2629 = vmul.f32 %v2206, 1.442695
      %v2630 = vpow.pop %v2629
      %v2631 = vmul.f32 %v2207, 1.442695
      %v2632 = vpow.pop %v2631
      %v2633 = vmul.f32 %v2208, 1.442695
      %v2634 = vpow.pop %v2633
      %v2635 = vmul.f32 %v2209, 1.442695
      %v2636 = vpow.pop %v2635
      %v2637 = vmul.f32 %v2210, 1.442695
      %v2638 = vpow.pop %v2637
      %v2639 = vmul.f32 %v2211, 1.442695
      %v2640 = vpow.pop %v2639
      %v2641 = vmul.f32 %v2212, 1.442695
      %v2642 = vpow.pop %v2641
      %v2643 = vmul.f32 %v2213, 1.442695
      %v2644 = vpow.pop %v2643
      %v2645 = vmul.f32 %v2214, 1.442695
      %v2646 = vpow.pop %v2645
      %v2647 = vmul.f32 %v2215, 1.442695
      %v2648 = vpow.pop %v2647
      %v2649 = vmul.f32 %v2216, 1.442695
      %v2650 = vpow.pop %v2649
      %v2651 = vmul.f32 %v2217, 1.442695
      %v2652 = vpow.pop %v2651
      %v2653 = vmul.f32 %v2218, 1.442695
      %v2654 = vpow.pop %v2653
      %v2655 = vmul.f32 %v2219, 1.442695
      %v2656 = vpow.pop %v2655
      %v2657 = vmul.f32 %v2220, 1.442695
      %v2658 = vpow.pop %v2657
      %v2659 = vmul.f32 %v2221, 1.442695
      %v2660 = vpow.pop %v2659
      %v2661 = vmul.f32 %v2222, 1.442695
      %v2662 = vpow.pop %v2661
      %v2663 = vmul.f32 %v2223, 1.442695
      %v2664 = vpow.pop %v2663
      %v2665 = vmul.f32 %v2224, 1.442695
      %v2666 = vpow.pop %v2665
      %v2667 = vmul.f32 %v2225, 1.442695
      %v2668 = vpow.pop %v2667
      %v2669 = vmul.f32 %v2226, 1.442695
      %v2670 = vpow.pop %v2669
      %v2671 = vmul.f32 %v2227, 1.442695
      %v2672 = vpow.pop %v2671
      %v2673 = vmul.f32 %v2228, 1.442695
      %v2674 = vpow.pop %v2673
      %v2675 = vmul.f32 %v2229, 1.442695
      %v2676 = vpow.pop %v2675
      %v2677 = vmul.f32 %v2230, 1.442695
      %v2678 = vpow.pop %v2677
      %v2679 = vmul.f32 %v2231, 1.442695
      %v2680 = vpow.pop %v2679
      %v2681 = vmul.f32 %v2232, 1.442695
      %v2682 = vpow.pop %v2681
      %v2683 = vmul.f32 %v2233, 1.442695
      %v2684 = vpow.pop %v2683
      %v2685 = vmul.f32 %v2234, 1.442695
      %v2686 = vpow.pop %v2685
      %v2687 = vmul.f32 %v2235, 1.442695
      %v2688 = vpow.pop %v2687
      %v2689 = vmul.f32 %v2236, 1.442695
      %v2690 = vpow.pop %v2689
      %v2691 = vmul.f32 %v2237, 1.442695
      %v2692 = vpow.pop %v2691
      %v2693 = vmul.f32 %v2238, 1.442695
      %v2694 = vpow.pop %v2693
      %v2695 = vmul.f32 %v2239, 1.442695
      %v2696 = vpow.pop %v2695
      %v2697 = vmul.f32 %v2240, 1.442695
      %v2698 = vpow.pop %v2697
      %v2699 = vmul.f32 %v2241, 1.442695
      %v2700 = vpow.pop %v2699
      %v2701 = vmul.f32 %v2242, 1.442695
      %v2702 = vpow.pop %v2701
      %v2703 = vmul.f32 %v2243, 1.442695
      %v2704 = vpow.pop %v2703
      %v2705 = vmul.f32 %v2244, 1.442695
      %v2706 = vpow.pop %v2705
      %v2707 = vmul.f32 %v2245, 1.442695
      %v2708 = vpow.pop %v2707
      %v2709 = vmul.f32 %v2246, 1.442695
      %v2710 = vpow.pop %v2709
      %v2711 = vmul.f32 %v2247, 1.442695
      %v2712 = vpow.pop %v2711
      %v2713 = vmul.f32 %v2248, 1.442695
      %v2714 = vpow.pop %v2713
      %v2715 = vmul.f32 %v2249, 1.442695
      %v2716 = vpow.pop %v2715
      %v2717 = vmul.f32 %v2250, 1.442695
      %v2718 = vpow.pop %v2717
      %v2719 = vmul.f32 %v2251, 1.442695
      %v2720 = vpow.pop %v2719
      %v2721 = vmul.f32 %v2252, 1.442695
      %v2722 = vpow.pop %v2721
      %v2723 = vmul.f32 %v2253, 1.442695
      %v2724 = vpow.pop %v2723
      %v2725 = vmul.f32 %v2254, 1.442695
      %v2726 = vpow.pop %v2725
      %v2727 = vmul.f32 %v2255, 1.442695
      %v2728 = vpow.pop %v2727
      %v2729 = vmul.f32 %v2256, 1.442695
      %v2730 = vpow.pop %v2729
      %v2731 = vmul.f32 %v2257, 1.442695
      %v2732 = vpow.pop %v2731
      %v2733 = vmul.f32 %v2258, 1.442695
      %v2734 = vpow.pop %v2733
      %v2735 = vmul.f32 %v2259, 1.442695
      %v2736 = vpow.pop %v2735
      %v2737 = vmul.f32 %v2260, 1.442695
      %v2738 = vpow.pop %v2737
      %v2739 = vmul.f32 %v2261, 1.442695
      %v2740 = vpow.pop %v2739
      %v2741 = vmul.f32 %v2262, 1.442695
      %v2742 = vpow.pop %v2741
      %v2743 = vmul.f32 %v2263, 1.442695
      %v2744 = vpow.pop %v2743
      %v2745 = vmul.f32 %v2264, 1.442695
      %v2746 = vpow.pop %v2745
      %v2747 = vmul.f32 %v2265, 1.442695
      %v2748 = vpow.pop %v2747
      %v2749 = vmul.f32 %v2266, 1.442695
      %v2750 = vpow.pop %v2749
      %v2751 = vmul.f32 %v2267, 1.442695
      %v2752 = vpow.pop %v2751
      %v2753 = vmul.f32 %v2268, 1.442695
      %v2754 = vpow.pop %v2753
      %v2755 = vmul.f32 %v2269, 1.442695
      %v2756 = vpow.pop %v2755
      %v2757 = vmul.f32 %v2270, 1.442695
      %v2758 = vpow.pop %v2757
      %v2759 = vmul.f32 %v2271, 1.442695
      %v2760 = vpow.pop %v2759
      %v2761 = vmul.f32 %v2272, 1.442695
      %v2762 = vpow.pop %v2761
      %v2763 = vmul.f32 %v2273, 1.442695
      %v2764 = vpow.pop %v2763
      %v2765 = vmul.f32 %v2274, 1.442695
      %v2766 = vpow.pop %v2765
      %v2767 = vmul.f32 %v2275, 1.442695
      %v2768 = vpow.pop %v2767
      %v2769 = vmul.f32 %v2276, 1.442695
      %v2770 = vpow.pop %v2769
      %v2771 = vmul.f32 %v2277, 1.442695
      %v2772 = vpow.pop %v2771
      %v2773 = vmul.f32 %v2278, 1.442695
      %v2774 = vpow.pop %v2773
      %v2775 = vmul.f32 %v2279, 1.442695
      %v2776 = vpow.pop %v2775
      %v2777 = vmul.f32 %v2280, 1.442695
      %v2778 = vpow.pop %v2777
      %v2779 = vmul.f32 %v2281, 1.442695
      %v2780 = vpow.pop %v2779
      %v2781 = vmul.f32 %v2282, 1.442695
      %v2782 = vpow.pop %v2781
      %v2783 = vmul.f32 %v2283, 1.442695
      %v2784 = vpow.pop %v2783
      %v2785 = vmul.f32 %v2284, 1.442695
      %v2786 = vpow.pop %v2785
      %v2787 = vmul.f32 %v2285, 1.442695
      %v2788 = vpow.pop %v2787
      %v2789 = vmul.f32 %v2286, 1.442695
      %v2790 = vpow.pop %v2789
      %v2791 = vmul.f32 %v2287, 1.442695
      %v2792 = vpow.pop %v2791
      %v2793 = vmul.f32 %v2288, 1.442695
      %v2794 = vpow.pop %v2793
      %v2795 = vmul.f32 %v2289, 1.442695
      %v2796 = vpow.pop %v2795
      %v2797 = vmul.f32 %v2290, 1.442695
      %v2798 = vpow.pop %v2797
      %v2799 = vmul.f32 %v2291, 1.442695
      %v2800 = vpow.pop %v2799
      %v2801 = vmul.f32 %v2292, 1.442695
      %v2802 = vpow.pop %v2801
      %v2803 = vmul.f32 %v2293, 1.442695
      %v2804 = vpow.pop %v2803
      %v2805 = vmul.f32 %v2294, 1.442695
      %v2806 = vpow.pop %v2805
      %v2807 = vadd.f32 %v2296, %v2298
      %2808 = vadd.xlane.f32.xlu0 %v2807
      %v2809 = vpop.xlane.xlu0 %2808
      %v2810 = vadd.f32 %v2300, %v2302
      %2811 = vadd.xlane.f32.xlu0 %v2810
      %v2812 = vpop.xlane.xlu0 %2811
      %v2813 = vadd.f32 %v2304, %v2306
      %2814 = vadd.xlane.f32.xlu0 %v2813
      %v2815 = vpop.xlane.xlu0 %2814
      %v2816 = vadd.f32 %v2308, %v2310
      %2817 = vadd.xlane.f32.xlu0 %v2816
      %v2818 = vpop.xlane.xlu0 %2817
      %v2819 = vadd.f32 %v2312, %v2314
      %2820 = vadd.xlane.f32.xlu0 %v2819
      %v2821 = vpop.xlane.xlu0 %2820
      %v2822 = vadd.f32 %v2316, %v2318
      %2823 = vadd.xlane.f32.xlu0 %v2822
      %v2824 = vpop.xlane.xlu0 %2823
      %v2825 = vadd.f32 %v2320, %v2322
      %2826 = vadd.xlane.f32.xlu0 %v2825
      %v2827 = vpop.xlane.xlu0 %2826
      %v2828 = vadd.f32 %v2324, %v2326
      %2829 = vadd.xlane.f32.xlu0 %v2828
      %v2830 = vpop.xlane.xlu0 %2829
      %v2831 = vadd.f32 %v2328, %v2330
      %2832 = vadd.xlane.f32.xlu0 %v2831
      %v2833 = vpop.xlane.xlu0 %2832
      %v2834 = vadd.f32 %v2332, %v2334
      %2835 = vadd.xlane.f32.xlu0 %v2834
      %v2836 = vpop.xlane.xlu0 %2835
      %v2837 = vadd.f32 %v2336, %v2338
      %2838 = vadd.xlane.f32.xlu0 %v2837
      %v2839 = vpop.xlane.xlu0 %2838
      %v2840 = vadd.f32 %v2340, %v2342
      %2841 = vadd.xlane.f32.xlu0 %v2840
      %v2842 = vpop.xlane.xlu0 %2841
      %v2843 = vadd.f32 %v2344, %v2346
      %2844 = vadd.xlane.f32.xlu0 %v2843
      %v2845 = vpop.xlane.xlu0 %2844
      %v2846 = vadd.f32 %v2348, %v2350
      %2847 = vadd.xlane.f32.xlu0 %v2846
      %v2848 = vpop.xlane.xlu0 %2847
      %v2849 = vadd.f32 %v2352, %v2354
      %2850 = vadd.xlane.f32.xlu0 %v2849
      %v2851 = vpop.xlane.xlu0 %2850
      %v2852 = vadd.f32 %v2356, %v2358
      %2853 = vadd.xlane.f32.xlu0 %v2852
      %v2854 = vpop.xlane.xlu0 %2853
      %v2855 = vadd.f32 %v2360, %v2362
      %2856 = vadd.xlane.f32.xlu0 %v2855
      %v2857 = vpop.xlane.xlu0 %2856
      %v2858 = vadd.f32 %v2364, %v2366
      %2859 = vadd.xlane.f32.xlu0 %v2858
      %v2860 = vpop.xlane.xlu0 %2859
      %v2861 = vadd.f32 %v2368, %v2370
      %2862 = vadd.xlane.f32.xlu0 %v2861
      %v2863 = vpop.xlane.xlu0 %2862
      %v2864 = vadd.f32 %v2372, %v2374
      %2865 = vadd.xlane.f32.xlu0 %v2864
      %v2866 = vpop.xlane.xlu0 %2865
      %v2867 = vadd.f32 %v2376, %v2378
      %2868 = vadd.xlane.f32.xlu0 %v2867
      %v2869 = vpop.xlane.xlu0 %2868
      %v2870 = vadd.f32 %v2380, %v2382
      %2871 = vadd.xlane.f32.xlu0 %v2870
      %v2872 = vpop.xlane.xlu0 %2871
      %v2873 = vadd.f32 %v2384, %v2386
      %2874 = vadd.xlane.f32.xlu0 %v2873
      %v2875 = vpop.xlane.xlu0 %2874
      %v2876 = vadd.f32 %v2388, %v2390
      %2877 = vadd.xlane.f32.xlu0 %v2876
      %v2878 = vpop.xlane.xlu0 %2877
      %v2879 = vadd.f32 %v2392, %v2394
      %2880 = vadd.xlane.f32.xlu0 %v2879
      %v2881 = vpop.xlane.xlu0 %2880
      %v2882 = vadd.f32 %v2396, %v2398
      %2883 = vadd.xlane.f32.xlu0 %v2882
      %v2884 = vpop.xlane.xlu0 %2883
      %v2885 = vadd.f32 %v2400, %v2402
      %2886 = vadd.xlane.f32.xlu0 %v2885
      %v2887 = vpop.xlane.xlu0 %2886
      %v2888 = vadd.f32 %v2404, %v2406
      %2889 = vadd.xlane.f32.xlu0 %v2888
      %v2890 = vpop.xlane.xlu0 %2889
      %v2891 = vadd.f32 %v2408, %v2410
      %2892 = vadd.xlane.f32.xlu0 %v2891
      %v2893 = vpop.xlane.xlu0 %2892
      %v2894 = vadd.f32 %v2412, %v2414
      %2895 = vadd.xlane.f32.xlu0 %v2894
      %v2896 = vpop.xlane.xlu0 %2895
      %v2897 = vadd.f32 %v2416, %v2418
      %2898 = vadd.xlane.f32.xlu0 %v2897
      %v2899 = vpop.xlane.xlu0 %2898
      %v2900 = vadd.f32 %v2420, %v2422
      %2901 = vadd.xlane.f32.xlu0 %v2900
      %v2902 = vpop.xlane.xlu0 %2901
      %v2903 = vadd.f32 %v2424, %v2426
      %2904 = vadd.xlane.f32.xlu0 %v2903
      %v2905 = vpop.xlane.xlu0 %2904
      %v2906 = vadd.f32 %v2428, %v2430
      %2907 = vadd.xlane.f32.xlu0 %v2906
      %v2908 = vpop.xlane.xlu0 %2907
      %v2909 = vadd.f32 %v2432, %v2434
      %2910 = vadd.xlane.f32.xlu0 %v2909
      %v2911 = vpop.xlane.xlu0 %2910
      %v2912 = vadd.f32 %v2436, %v2438
      %2913 = vadd.xlane.f32.xlu0 %v2912
      %v2914 = vpop.xlane.xlu0 %2913
      %v2915 = vadd.f32 %v2440, %v2442
      %2916 = vadd.xlane.f32.xlu0 %v2915
      %v2917 = vpop.xlane.xlu0 %2916
      %v2918 = vadd.f32 %v2444, %v2446
      %2919 = vadd.xlane.f32.xlu0 %v2918
      %v2920 = vpop.xlane.xlu0 %2919
      %v2921 = vadd.f32 %v2448, %v2450
      %2922 = vadd.xlane.f32.xlu0 %v2921
      %v2923 = vpop.xlane.xlu0 %2922
      %v2924 = vadd.f32 %v2452, %v2454
      %2925 = vadd.xlane.f32.xlu0 %v2924
      %v2926 = vpop.xlane.xlu0 %2925
      %v2927 = vadd.f32 %v2456, %v2458
      %2928 = vadd.xlane.f32.xlu0 %v2927
      %v2929 = vpop.xlane.xlu0 %2928
      %v2930 = vadd.f32 %v2460, %v2462
      %2931 = vadd.xlane.f32.xlu0 %v2930
      %v2932 = vpop.xlane.xlu0 %2931
      %v2933 = vadd.f32 %v2464, %v2466
      %2934 = vadd.xlane.f32.xlu0 %v2933
      %v2935 = vpop.xlane.xlu0 %2934
      %v2936 = vadd.f32 %v2468, %v2470
      %2937 = vadd.xlane.f32.xlu0 %v2936
      %v2938 = vpop.xlane.xlu0 %2937
      %v2939 = vadd.f32 %v2472, %v2474
      %2940 = vadd.xlane.f32.xlu0 %v2939
      %v2941 = vpop.xlane.xlu0 %2940
      %v2942 = vadd.f32 %v2476, %v2478
      %2943 = vadd.xlane.f32.xlu0 %v2942
      %v2944 = vpop.xlane.xlu0 %2943
      %v2945 = vadd.f32 %v2480, %v2482
      %2946 = vadd.xlane.f32.xlu0 %v2945
      %v2947 = vpop.xlane.xlu0 %2946
      %v2948 = vadd.f32 %v2484, %v2486
      %2949 = vadd.xlane.f32.xlu0 %v2948
      %v2950 = vpop.xlane.xlu0 %2949
      %v2951 = vadd.f32 %v2488, %v2490
      %2952 = vadd.xlane.f32.xlu0 %v2951
      %v2953 = vpop.xlane.xlu0 %2952
      %v2954 = vadd.f32 %v2492, %v2494
      %2955 = vadd.xlane.f32.xlu0 %v2954
      %v2956 = vpop.xlane.xlu0 %2955
      %v2957 = vadd.f32 %v2496, %v2498
      %2958 = vadd.xlane.f32.xlu0 %v2957
      %v2959 = vpop.xlane.xlu0 %2958
      %v2960 = vadd.f32 %v2500, %v2502
      %2961 = vadd.xlane.f32.xlu0 %v2960
      %v2962 = vpop.xlane.xlu0 %2961
      %v2963 = vadd.f32 %v2504, %v2506
      %2964 = vadd.xlane.f32.xlu0 %v2963
      %v2965 = vpop.xlane.xlu0 %2964
      %v2966 = vadd.f32 %v2508, %v2510
      %2967 = vadd.xlane.f32.xlu0 %v2966
      %v2968 = vpop.xlane.xlu0 %2967
      %v2969 = vadd.f32 %v2512, %v2514
      %2970 = vadd.xlane.f32.xlu0 %v2969
      %v2971 = vpop.xlane.xlu0 %2970
      %v2972 = vadd.f32 %v2516, %v2518
      %2973 = vadd.xlane.f32.xlu0 %v2972
      %v2974 = vpop.xlane.xlu0 %2973
      %v2975 = vadd.f32 %v2520, %v2522
      %2976 = vadd.xlane.f32.xlu0 %v2975
      %v2977 = vpop.xlane.xlu0 %2976
      %v2978 = vadd.f32 %v2524, %v2526
      %2979 = vadd.xlane.f32.xlu0 %v2978
      %v2980 = vpop.xlane.xlu0 %2979
      %v2981 = vadd.f32 %v2528, %v2530
      %2982 = vadd.xlane.f32.xlu0 %v2981
      %v2983 = vpop.xlane.xlu0 %2982
      %v2984 = vadd.f32 %v2532, %v2534
      %2985 = vadd.xlane.f32.xlu0 %v2984
      %v2986 = vpop.xlane.xlu0 %2985
      %v2987 = vadd.f32 %v2536, %v2538
      %2988 = vadd.xlane.f32.xlu0 %v2987
      %v2989 = vpop.xlane.xlu0 %2988
      %v2990 = vadd.f32 %v2540, %v2542
      %2991 = vadd.xlane.f32.xlu0 %v2990
      %v2992 = vpop.xlane.xlu0 %2991
      %v2993 = vadd.f32 %v2544, %v2546
      %2994 = vadd.xlane.f32.xlu0 %v2993
      %v2995 = vpop.xlane.xlu0 %2994
      %v2996 = vadd.f32 %v2548, %v2550
      %2997 = vadd.xlane.f32.xlu0 %v2996
      %v2998 = vpop.xlane.xlu0 %2997
      %v2999 = vadd.f32 %v2552, %v2554
      %3000 = vadd.xlane.f32.xlu0 %v2999
      %v3001 = vpop.xlane.xlu0 %3000
      %v3002 = vadd.f32 %v2556, %v2558
      %3003 = vadd.xlane.f32.xlu0 %v3002
      %v3004 = vpop.xlane.xlu0 %3003
      %v3005 = vadd.f32 %v2560, %v2562
      %3006 = vadd.xlane.f32.xlu0 %v3005
      %v3007 = vpop.xlane.xlu0 %3006
      %v3008 = vadd.f32 %v2564, %v2566
      %3009 = vadd.xlane.f32.xlu0 %v3008
      %v3010 = vpop.xlane.xlu0 %3009
      %v3011 = vadd.f32 %v2568, %v2570
      %3012 = vadd.xlane.f32.xlu0 %v3011
      %v3013 = vpop.xlane.xlu0 %3012
      %v3014 = vadd.f32 %v2572, %v2574
      %3015 = vadd.xlane.f32.xlu0 %v3014
      %v3016 = vpop.xlane.xlu0 %3015
      %v3017 = vadd.f32 %v2576, %v2578
      %3018 = vadd.xlane.f32.xlu0 %v3017
      %v3019 = vpop.xlane.xlu0 %3018
      %v3020 = vadd.f32 %v2580, %v2582
      %3021 = vadd.xlane.f32.xlu0 %v3020
      %v3022 = vpop.xlane.xlu0 %3021
      %v3023 = vadd.f32 %v2584, %v2586
      %3024 = vadd.xlane.f32.xlu0 %v3023
      %v3025 = vpop.xlane.xlu0 %3024
      %v3026 = vadd.f32 %v2588, %v2590
      %3027 = vadd.xlane.f32.xlu0 %v3026
      %v3028 = vpop.xlane.xlu0 %3027
      %v3029 = vadd.f32 %v2592, %v2594
      %3030 = vadd.xlane.f32.xlu0 %v3029
      %v3031 = vpop.xlane.xlu0 %3030
      %v3032 = vadd.f32 %v2596, %v2598
      %3033 = vadd.xlane.f32.xlu0 %v3032
      %v3034 = vpop.xlane.xlu0 %3033
      %v3035 = vadd.f32 %v2600, %v2602
      %3036 = vadd.xlane.f32.xlu0 %v3035
      %v3037 = vpop.xlane.xlu0 %3036
      %v3038 = vadd.f32 %v2604, %v2606
      %3039 = vadd.xlane.f32.xlu0 %v3038
      %v3040 = vpop.xlane.xlu0 %3039
      %v3041 = vadd.f32 %v2608, %v2610
      %3042 = vadd.xlane.f32.xlu0 %v3041
      %v3043 = vpop.xlane.xlu0 %3042
      %v3044 = vadd.f32 %v2612, %v2614
      %3045 = vadd.xlane.f32.xlu0 %v3044
      %v3046 = vpop.xlane.xlu0 %3045
      %v3047 = vadd.f32 %v2616, %v2618
      %3048 = vadd.xlane.f32.xlu0 %v3047
      %v3049 = vpop.xlane.xlu0 %3048
      %v3050 = vadd.f32 %v2620, %v2622
      %3051 = vadd.xlane.f32.xlu0 %v3050
      %v3052 = vpop.xlane.xlu0 %3051
      %v3053 = vadd.f32 %v2624, %v2626
      %3054 = vadd.xlane.f32.xlu0 %v3053
      %v3055 = vpop.xlane.xlu0 %3054
      %v3056 = vadd.f32 %v2628, %v2630
      %3057 = vadd.xlane.f32.xlu0 %v3056
      %v3058 = vpop.xlane.xlu0 %3057
      %v3059 = vadd.f32 %v2632, %v2634
      %3060 = vadd.xlane.f32.xlu0 %v3059
      %v3061 = vpop.xlane.xlu0 %3060
      %v3062 = vadd.f32 %v2636, %v2638
      %3063 = vadd.xlane.f32.xlu0 %v3062
      %v3064 = vpop.xlane.xlu0 %3063
      %v3065 = vadd.f32 %v2640, %v2642
      %3066 = vadd.xlane.f32.xlu0 %v3065
      %v3067 = vpop.xlane.xlu0 %3066
      %v3068 = vadd.f32 %v2644, %v2646
      %3069 = vadd.xlane.f32.xlu0 %v3068
      %v3070 = vpop.xlane.xlu0 %3069
      %v3071 = vadd.f32 %v2648, %v2650
      %3072 = vadd.xlane.f32.xlu0 %v3071
      %v3073 = vpop.xlane.xlu0 %3072
      %v3074 = vadd.f32 %v2652, %v2654
      %3075 = vadd.xlane.f32.xlu0 %v3074
      %v3076 = vpop.xlane.xlu0 %3075
      %v3077 = vadd.f32 %v2656, %v2658
      %3078 = vadd.xlane.f32.xlu0 %v3077
      %v3079 = vpop.xlane.xlu0 %3078
      %v3080 = vadd.f32 %v2660, %v2662
      %3081 = vadd.xlane.f32.xlu0 %v3080
      %v3082 = vpop.xlane.xlu0 %3081
      %v3083 = vadd.f32 %v2664, %v2666
      %3084 = vadd.xlane.f32.xlu0 %v3083
      %v3085 = vpop.xlane.xlu0 %3084
      %v3086 = vadd.f32 %v2668, %v2670
      %3087 = vadd.xlane.f32.xlu0 %v3086
      %v3088 = vpop.xlane.xlu0 %3087
      %v3089 = vadd.f32 %v2672, %v2674
      %3090 = vadd.xlane.f32.xlu0 %v3089
      %v3091 = vpop.xlane.xlu0 %3090
      %v3092 = vadd.f32 %v2676, %v2678
      %3093 = vadd.xlane.f32.xlu0 %v3092
      %v3094 = vpop.xlane.xlu0 %3093
      %v3095 = vadd.f32 %v2680, %v2682
      %3096 = vadd.xlane.f32.xlu0 %v3095
      %v3097 = vpop.xlane.xlu0 %3096
      %v3098 = vadd.f32 %v2684, %v2686
      %3099 = vadd.xlane.f32.xlu0 %v3098
      %v3100 = vpop.xlane.xlu0 %3099
      %v3101 = vadd.f32 %v2688, %v2690
      %3102 = vadd.xlane.f32.xlu0 %v3101
      %v3103 = vpop.xlane.xlu0 %3102
      %v3104 = vadd.f32 %v2692, %v2694
      %3105 = vadd.xlane.f32.xlu0 %v3104
      %v3106 = vpop.xlane.xlu0 %3105
      %v3107 = vadd.f32 %v2696, %v2698
      %3108 = vadd.xlane.f32.xlu0 %v3107
      %v3109 = vpop.xlane.xlu0 %3108
      %v3110 = vadd.f32 %v2700, %v2702
      %3111 = vadd.xlane.f32.xlu0 %v3110
      %v3112 = vpop.xlane.xlu0 %3111
      %v3113 = vadd.f32 %v2704, %v2706
      %3114 = vadd.xlane.f32.xlu0 %v3113
      %v3115 = vpop.xlane.xlu0 %3114
      %v3116 = vadd.f32 %v2708, %v2710
      %3117 = vadd.xlane.f32.xlu0 %v3116
      %v3118 = vpop.xlane.xlu0 %3117
      %v3119 = vadd.f32 %v2712, %v2714
      %3120 = vadd.xlane.f32.xlu0 %v3119
      %v3121 = vpop.xlane.xlu0 %3120
      %v3122 = vadd.f32 %v2716, %v2718
      %3123 = vadd.xlane.f32.xlu0 %v3122
      %v3124 = vpop.xlane.xlu0 %3123
      %v3125 = vadd.f32 %v2720, %v2722
      %3126 = vadd.xlane.f32.xlu0 %v3125
      %v3127 = vpop.xlane.xlu0 %3126
      %v3128 = vadd.f32 %v2724, %v2726
      %3129 = vadd.xlane.f32.xlu0 %v3128
      %v3130 = vpop.xlane.xlu0 %3129
      %v3131 = vadd.f32 %v2728, %v2730
      %3132 = vadd.xlane.f32.xlu0 %v3131
      %v3133 = vpop.xlane.xlu0 %3132
      %v3134 = vadd.f32 %v2732, %v2734
      %3135 = vadd.xlane.f32.xlu0 %v3134
      %v3136 = vpop.xlane.xlu0 %3135
      %v3137 = vadd.f32 %v2736, %v2738
      %3138 = vadd.xlane.f32.xlu0 %v3137
      %v3139 = vpop.xlane.xlu0 %3138
      %v3140 = vadd.f32 %v2740, %v2742
      %3141 = vadd.xlane.f32.xlu0 %v3140
      %v3142 = vpop.xlane.xlu0 %3141
      %v3143 = vadd.f32 %v2744, %v2746
      %3144 = vadd.xlane.f32.xlu0 %v3143
      %v3145 = vpop.xlane.xlu0 %3144
      %v3146 = vadd.f32 %v2748, %v2750
      %3147 = vadd.xlane.f32.xlu0 %v3146
      %v3148 = vpop.xlane.xlu0 %3147
      %v3149 = vadd.f32 %v2752, %v2754
      %3150 = vadd.xlane.f32.xlu0 %v3149
      %v3151 = vpop.xlane.xlu0 %3150
      %v3152 = vadd.f32 %v2756, %v2758
      %3153 = vadd.xlane.f32.xlu0 %v3152
      %v3154 = vpop.xlane.xlu0 %3153
      %v3155 = vadd.f32 %v2760, %v2762
      %3156 = vadd.xlane.f32.xlu0 %v3155
      %v3157 = vpop.xlane.xlu0 %3156
      %v3158 = vadd.f32 %v2764, %v2766
      %3159 = vadd.xlane.f32.xlu0 %v3158
      %v3160 = vpop.xlane.xlu0 %3159
      %v3161 = vadd.f32 %v2768, %v2770
      %3162 = vadd.xlane.f32.xlu0 %v3161
      %v3163 = vpop.xlane.xlu0 %3162
      %v3164 = vadd.f32 %v2772, %v2774
      %3165 = vadd.xlane.f32.xlu0 %v3164
      %v3166 = vpop.xlane.xlu0 %3165
      %v3167 = vadd.f32 %v2776, %v2778
      %3168 = vadd.xlane.f32.xlu0 %v3167
      %v3169 = vpop.xlane.xlu0 %3168
      %v3170 = vadd.f32 %v2780, %v2782
      %3171 = vadd.xlane.f32.xlu0 %v3170
      %v3172 = vpop.xlane.xlu0 %3171
      %v3173 = vadd.f32 %v2784, %v2786
      %3174 = vadd.xlane.f32.xlu0 %v3173
      %v3175 = vpop.xlane.xlu0 %3174
      %v3176 = vadd.f32 %v2788, %v2790
      %3177 = vadd.xlane.f32.xlu0 %v3176
      %v3178 = vpop.xlane.xlu0 %3177
      %v3179 = vadd.f32 %v2792, %v2794
      %3180 = vadd.xlane.f32.xlu0 %v3179
      %v3181 = vpop.xlane.xlu0 %3180
      %v3182 = vadd.f32 %v2796, %v2798
      %3183 = vadd.xlane.f32.xlu0 %v3182
      %v3184 = vpop.xlane.xlu0 %3183
      %v3185 = vadd.f32 %v2800, %v2802
      %3186 = vadd.xlane.f32.xlu0 %v3185
      %v3187 = vpop.xlane.xlu0 %3186
      %v3188 = vadd.f32 %v2804, %v2806
      %3189 = vadd.xlane.f32.xlu0 %v3188
      %v3190 = vpop.xlane.xlu0 %3189
      %v3191 = vrcp.pop %v2809
      %v3192 = vrcp.pop %v2812
      %v3193 = vrcp.pop %v2815
      %v3194 = vrcp.pop %v2818
      %v3195 = vrcp.pop %v2821
      %v3196 = vrcp.pop %v2824
      %v3197 = vrcp.pop %v2827
      %v3198 = vrcp.pop %v2830
      %v3199 = vrcp.pop %v2833
      %v3200 = vrcp.pop %v2836
      %v3201 = vrcp.pop %v2839
      %v3202 = vrcp.pop %v2842
      %v3203 = vrcp.pop %v2845
      %v3204 = vrcp.pop %v2848
      %v3205 = vrcp.pop %v2851
      %v3206 = vrcp.pop %v2854
      %v3207 = vrcp.pop %v2857
      %v3208 = vrcp.pop %v2860
      %v3209 = vrcp.pop %v2863
      %v3210 = vrcp.pop %v2866
      %v3211 = vrcp.pop %v2869
      %v3212 = vrcp.pop %v2872
      %v3213 = vrcp.pop %v2875
      %v3214 = vrcp.pop %v2878
      %v3215 = vrcp.pop %v2881
      %v3216 = vrcp.pop %v2884
      %v3217 = vrcp.pop %v2887
      %v3218 = vrcp.pop %v2890
      %v3219 = vrcp.pop %v2893
      %v3220 = vrcp.pop %v2896
      %v3221 = vrcp.pop %v2899
      %v3222 = vrcp.pop %v2902
      %v3223 = vrcp.pop %v2905
      %v3224 = vrcp.pop %v2908
      %v3225 = vrcp.pop %v2911
      %v3226 = vrcp.pop %v2914
      %v3227 = vrcp.pop %v2917
      %v3228 = vrcp.pop %v2920
      %v3229 = vrcp.pop %v2923
      %v3230 = vrcp.pop %v2926
      %v3231 = vrcp.pop %v2929
      %v3232 = vrcp.pop %v2932
      %v3233 = vrcp.pop %v2935
      %v3234 = vrcp.pop %v2938
      %v3235 = vrcp.pop %v2941
      %v3236 = vrcp.pop %v2944
      %v3237 = vrcp.pop %v2947
      %v3238 = vrcp.pop %v2950
      %v3239 = vrcp.pop %v2953
      %v3240 = vrcp.pop %v2956
      %v3241 = vrcp.pop %v2959
      %v3242 = vrcp.pop %v2962
      %v3243 = vrcp.pop %v2965
      %v3244 = vrcp.pop %v2968
      %v3245 = vrcp.pop %v2971
      %v3246 = vrcp.pop %v2974
      %v3247 = vrcp.pop %v2977
      %v3248 = vrcp.pop %v2980
      %v3249 = vrcp.pop %v2983
      %v3250 = vrcp.pop %v2986
      %v3251 = vrcp.pop %v2989
      %v3252 = vrcp.pop %v2992
      %v3253 = vrcp.pop %v2995
      %v3254 = vrcp.pop %v2998
      %v3255 = vrcp.pop %v3001
      %v3256 = vrcp.pop %v3004
      %v3257 = vrcp.pop %v3007
      %v3258 = vrcp.pop %v3010
      %v3259 = vrcp.pop %v3013
      %v3260 = vrcp.pop %v3016
      %v3261 = vrcp.pop %v3019
      %v3262 = vrcp.pop %v3022
      %v3263 = vrcp.pop %v3025
      %v3264 = vrcp.pop %v3028
      %v3265 = vrcp.pop %v3031
      %v3266 = vrcp.pop %v3034
      %v3267 = vrcp.pop %v3037
      %v3268 = vrcp.pop %v3040
      %v3269 = vrcp.pop %v3043
      %v3270 = vrcp.pop %v3046
      %v3271 = vrcp.pop %v3049
      %v3272 = vrcp.pop %v3052
      %v3273 = vrcp.pop %v3055
      %v3274 = vrcp.pop %v3058
      %v3275 = vrcp.pop %v3061
      %v3276 = vrcp.pop %v3064
      %v3277 = vrcp.pop %v3067
      %v3278 = vrcp.pop %v3070
      %v3279 = vrcp.pop %v3073
      %v3280 = vrcp.pop %v3076
      %v3281 = vrcp.pop %v3079
      %v3282 = vrcp.pop %v3082
      %v3283 = vrcp.pop %v3085
      %v3284 = vrcp.pop %v3088
      %v3285 = vrcp.pop %v3091
      %v3286 = vrcp.pop %v3094
      %v3287 = vrcp.pop %v3097
      %v3288 = vrcp.pop %v3100
      %v3289 = vrcp.pop %v3103
      %v3290 = vrcp.pop %v3106
      %v3291 = vrcp.pop %v3109
      %v3292 = vrcp.pop %v3112
      %v3293 = vrcp.pop %v3115
      %v3294 = vrcp.pop %v3118
      %v3295 = vrcp.pop %v3121
      %v3296 = vrcp.pop %v3124
      %v3297 = vrcp.pop %v3127
      %v3298 = vrcp.pop %v3130
      %v3299 = vrcp.pop %v3133
      %v3300 = vrcp.pop %v3136
      %v3301 = vrcp.pop %v3139
      %v3302 = vrcp.pop %v3142
      %v3303 = vrcp.pop %v3145
      %v3304 = vrcp.pop %v3148
      %v3305 = vrcp.pop %v3151
      %v3306 = vrcp.pop %v3154
      %v3307 = vrcp.pop %v3157
      %v3308 = vrcp.pop %v3160
      %v3309 = vrcp.pop %v3163
      %v3310 = vrcp.pop %v3166
      %v3311 = vrcp.pop %v3169
      %v3312 = vrcp.pop %v3172
      %v3313 = vrcp.pop %v3175
      %v3314 = vrcp.pop %v3178
      %v3315 = vrcp.pop %v3181
      %v3316 = vrcp.pop %v3184
      %v3317 = vrcp.pop %v3187
      %v3318 = vrcp.pop %v3190
      %v3319 = vmul.f32 %v2296, %v3191
      %v3320 = vmul.f32 %v2298, %v3191
      %v3321 = vmul.f32 %v2300, %v3192
      %v3322 = vmul.f32 %v2302, %v3192
      %v3323 = vmul.f32 %v2304, %v3193
      %v3324 = vmul.f32 %v2306, %v3193
      %v3325 = vmul.f32 %v2308, %v3194
      %v3326 = vmul.f32 %v2310, %v3194
      %v3327 = vmul.f32 %v2312, %v3195
      %v3328 = vmul.f32 %v2314, %v3195
      %v3329 = vmul.f32 %v2316, %v3196
      %v3330 = vmul.f32 %v2318, %v3196
      %v3331 = vmul.f32 %v2320, %v3197
      %v3332 = vmul.f32 %v2322, %v3197
      %v3333 = vmul.f32 %v2324, %v3198
      %v3334 = vmul.f32 %v2326, %v3198
      %v3335 = vmul.f32 %v2328, %v3199
      %v3336 = vmul.f32 %v2330, %v3199
      %v3337 = vmul.f32 %v2332, %v3200
      %v3338 = vmul.f32 %v2334, %v3200
      %v3339 = vmul.f32 %v2336, %v3201
      %v3340 = vmul.f32 %v2338, %v3201
      %v3341 = vmul.f32 %v2340, %v3202
      %v3342 = vmul.f32 %v2342, %v3202
      %v3343 = vmul.f32 %v2344, %v3203
      %v3344 = vmul.f32 %v2346, %v3203
      %v3345 = vmul.f32 %v2348, %v3204
      %v3346 = vmul.f32 %v2350, %v3204
      %v3347 = vmul.f32 %v2352, %v3205
      %v3348 = vmul.f32 %v2354, %v3205
      %v3349 = vmul.f32 %v2356, %v3206
      %v3350 = vmul.f32 %v2358, %v3206
      %v3351 = vmul.f32 %v2360, %v3207
      %v3352 = vmul.f32 %v2362, %v3207
      %v3353 = vmul.f32 %v2364, %v3208
      %v3354 = vmul.f32 %v2366, %v3208
      %v3355 = vmul.f32 %v2368, %v3209
      %v3356 = vmul.f32 %v2370, %v3209
      %v3357 = vmul.f32 %v2372, %v3210
      %v3358 = vmul.f32 %v2374, %v3210
      %v3359 = vmul.f32 %v2376, %v3211
      %v3360 = vmul.f32 %v2378, %v3211
      %v3361 = vmul.f32 %v2380, %v3212
      %v3362 = vmul.f32 %v2382, %v3212
      %v3363 = vmul.f32 %v2384, %v3213
      %v3364 = vmul.f32 %v2386, %v3213
      %v3365 = vmul.f32 %v2388, %v3214
      %v3366 = vmul.f32 %v2390, %v3214
      %v3367 = vmul.f32 %v2392, %v3215
      %v3368 = vmul.f32 %v2394, %v3215
      %v3369 = vmul.f32 %v2396, %v3216
      %v3370 = vmul.f32 %v2398, %v3216
      %v3371 = vmul.f32 %v2400, %v3217
      %v3372 = vmul.f32 %v2402, %v3217
      %v3373 = vmul.f32 %v2404, %v3218
      %v3374 = vmul.f32 %v2406, %v3218
      %v3375 = vmul.f32 %v2408, %v3219
      %v3376 = vmul.f32 %v2410, %v3219
      %v3377 = vmul.f32 %v2412, %v3220
      %v3378 = vmul.f32 %v2414, %v3220
      %v3379 = vmul.f32 %v2416, %v3221
      %v3380 = vmul.f32 %v2418, %v3221
      %v3381 = vmul.f32 %v2420, %v3222
      %v3382 = vmul.f32 %v2422, %v3222
      %v3383 = vmul.f32 %v2424, %v3223
      %v3384 = vmul.f32 %v2426, %v3223
      %v3385 = vmul.f32 %v2428, %v3224
      %v3386 = vmul.f32 %v2430, %v3224
      %v3387 = vmul.f32 %v2432, %v3225
      %v3388 = vmul.f32 %v2434, %v3225
      %v3389 = vmul.f32 %v2436, %v3226
      %v3390 = vmul.f32 %v2438, %v3226
      %v3391 = vmul.f32 %v2440, %v3227
      %v3392 = vmul.f32 %v2442, %v3227
      %v3393 = vmul.f32 %v2444, %v3228
      %v3394 = vmul.f32 %v2446, %v3228
      %v3395 = vmul.f32 %v2448, %v3229
      %v3396 = vmul.f32 %v2450, %v3229
      %v3397 = vmul.f32 %v2452, %v3230
      %v3398 = vmul.f32 %v2454, %v3230
      %v3399 = vmul.f32 %v2456, %v3231
      %v3400 = vmul.f32 %v2458, %v3231
      %v3401 = vmul.f32 %v2460, %v3232
      %v3402 = vmul.f32 %v2462, %v3232
      %v3403 = vmul.f32 %v2464, %v3233
      %v3404 = vmul.f32 %v2466, %v3233
      %v3405 = vmul.f32 %v2468, %v3234
      %v3406 = vmul.f32 %v2470, %v3234
      %v3407 = vmul.f32 %v2472, %v3235
      %v3408 = vmul.f32 %v2474, %v3235
      %v3409 = vmul.f32 %v2476, %v3236
      %v3410 = vmul.f32 %v2478, %v3236
      %v3411 = vmul.f32 %v2480, %v3237
      %v3412 = vmul.f32 %v2482, %v3237
      %v3413 = vmul.f32 %v2484, %v3238
      %v3414 = vmul.f32 %v2486, %v3238
      %v3415 = vmul.f32 %v2488, %v3239
      %v3416 = vmul.f32 %v2490, %v3239
      %v3417 = vmul.f32 %v2492, %v3240
      %v3418 = vmul.f32 %v2494, %v3240
      %v3419 = vmul.f32 %v2496, %v3241
      %v3420 = vmul.f32 %v2498, %v3241
      %v3421 = vmul.f32 %v2500, %v3242
      %v3422 = vmul.f32 %v2502, %v3242
      %v3423 = vmul.f32 %v2504, %v3243
      %v3424 = vmul.f32 %v2506, %v3243
      %v3425 = vmul.f32 %v2508, %v3244
      %v3426 = vmul.f32 %v2510, %v3244
      %v3427 = vmul.f32 %v2512, %v3245
      %v3428 = vmul.f32 %v2514, %v3245
      %v3429 = vmul.f32 %v2516, %v3246
      %v3430 = vmul.f32 %v2518, %v3246
      %v3431 = vmul.f32 %v2520, %v3247
      %v3432 = vmul.f32 %v2522, %v3247
      %v3433 = vmul.f32 %v2524, %v3248
      %v3434 = vmul.f32 %v2526, %v3248
      %v3435 = vmul.f32 %v2528, %v3249
      %v3436 = vmul.f32 %v2530, %v3249
      %v3437 = vmul.f32 %v2532, %v3250
      %v3438 = vmul.f32 %v2534, %v3250
      %v3439 = vmul.f32 %v2536, %v3251
      %v3440 = vmul.f32 %v2538, %v3251
      %v3441 = vmul.f32 %v2540, %v3252
      %v3442 = vmul.f32 %v2542, %v3252
      %v3443 = vmul.f32 %v2544, %v3253
      %v3444 = vmul.f32 %v2546, %v3253
      %v3445 = vmul.f32 %v2548, %v3254
      %v3446 = vmul.f32 %v2550, %v3254
      %v3447 = vmul.f32 %v2552, %v3255
      %v3448 = vmul.f32 %v2554, %v3255
      %v3449 = vmul.f32 %v2556, %v3256
      %v3450 = vmul.f32 %v2558, %v3256
      %v3451 = vmul.f32 %v2560, %v3257
      %v3452 = vmul.f32 %v2562, %v3257
      %v3453 = vmul.f32 %v2564, %v3258
      %v3454 = vmul.f32 %v2566, %v3258
      %v3455 = vmul.f32 %v2568, %v3259
      %v3456 = vmul.f32 %v2570, %v3259
      %v3457 = vmul.f32 %v2572, %v3260
      %v3458 = vmul.f32 %v2574, %v3260
      %v3459 = vmul.f32 %v2576, %v3261
      %v3460 = vmul.f32 %v2578, %v3261
      %v3461 = vmul.f32 %v2580, %v3262
      %v3462 = vmul.f32 %v2582, %v3262
      %v3463 = vmul.f32 %v2584, %v3263
      %v3464 = vmul.f32 %v2586, %v3263
      %v3465 = vmul.f32 %v2588, %v3264
      %v3466 = vmul.f32 %v2590, %v3264
      %v3467 = vmul.f32 %v2592, %v3265
      %v3468 = vmul.f32 %v2594, %v3265
      %v3469 = vmul.f32 %v2596, %v3266
      %v3470 = vmul.f32 %v2598, %v3266
      %v3471 = vmul.f32 %v2600, %v3267
      %v3472 = vmul.f32 %v2602, %v3267
      %v3473 = vmul.f32 %v2604, %v3268
      %v3474 = vmul.f32 %v2606, %v3268
      %v3475 = vmul.f32 %v2608, %v3269
      %v3476 = vmul.f32 %v2610, %v3269
      %v3477 = vmul.f32 %v2612, %v3270
      %v3478 = vmul.f32 %v2614, %v3270
      %v3479 = vmul.f32 %v2616, %v3271
      %v3480 = vmul.f32 %v2618, %v3271
      %v3481 = vmul.f32 %v2620, %v3272
      %v3482 = vmul.f32 %v2622, %v3272
      %v3483 = vmul.f32 %v2624, %v3273
      %v3484 = vmul.f32 %v2626, %v3273
      %v3485 = vmul.f32 %v2628, %v3274
      %v3486 = vmul.f32 %v2630, %v3274
      %v3487 = vmul.f32 %v2632, %v3275
      %v3488 = vmul.f32 %v2634, %v3275
      %v3489 = vmul.f32 %v2636, %v3276
      %v3490 = vmul.f32 %v2638, %v3276
      %v3491 = vmul.f32 %v2640, %v3277
      %v3492 = vmul.f32 %v2642, %v3277
      %v3493 = vmul.f32 %v2644, %v3278
      %v3494 = vmul.f32 %v2646, %v3278
      %v3495 = vmul.f32 %v2648, %v3279
      %v3496 = vmul.f32 %v2650, %v3279
      %v3497 = vmul.f32 %v2652, %v3280
      %v3498 = vmul.f32 %v2654, %v3280
      %v3499 = vmul.f32 %v2656, %v3281
      %v3500 = vmul.f32 %v2658, %v3281
      %v3501 = vmul.f32 %v2660, %v3282
      %v3502 = vmul.f32 %v2662, %v3282
      %v3503 = vmul.f32 %v2664, %v3283
      %v3504 = vmul.f32 %v2666, %v3283
      %v3505 = vmul.f32 %v2668, %v3284
      %v3506 = vmul.f32 %v2670, %v3284
      %v3507 = vmul.f32 %v2672, %v3285
      %v3508 = vmul.f32 %v2674, %v3285
      %v3509 = vmul.f32 %v2676, %v3286
      %v3510 = vmul.f32 %v2678, %v3286
      %v3511 = vmul.f32 %v2680, %v3287
      %v3512 = vmul.f32 %v2682, %v3287
      %v3513 = vmul.f32 %v2684, %v3288
      %v3514 = vmul.f32 %v2686, %v3288
      %v3515 = vmul.f32 %v2688, %v3289
      %v3516 = vmul.f32 %v2690, %v3289
      %v3517 = vmul.f32 %v2692, %v3290
      %v3518 = vmul.f32 %v2694, %v3290
      %v3519 = vmul.f32 %v2696, %v3291
      %v3520 = vmul.f32 %v2698, %v3291
      %v3521 = vmul.f32 %v2700, %v3292
      %v3522 = vmul.f32 %v2702, %v3292
      %v3523 = vmul.f32 %v2704, %v3293
      %v3524 = vmul.f32 %v2706, %v3293
      %v3525 = vmul.f32 %v2708, %v3294
      %v3526 = vmul.f32 %v2710, %v3294
      %v3527 = vmul.f32 %v2712, %v3295
      %v3528 = vmul.f32 %v2714, %v3295
      %v3529 = vmul.f32 %v2716, %v3296
      %v3530 = vmul.f32 %v2718, %v3296
      %v3531 = vmul.f32 %v2720, %v3297
      %v3532 = vmul.f32 %v2722, %v3297
      %v3533 = vmul.f32 %v2724, %v3298
      %v3534 = vmul.f32 %v2726, %v3298
      %v3535 = vmul.f32 %v2728, %v3299
      %v3536 = vmul.f32 %v2730, %v3299
      %v3537 = vmul.f32 %v2732, %v3300
      %v3538 = vmul.f32 %v2734, %v3300
      %v3539 = vmul.f32 %v2736, %v3301
      %v3540 = vmul.f32 %v2738, %v3301
      %v3541 = vmul.f32 %v2740, %v3302
      %v3542 = vmul.f32 %v2742, %v3302
      %v3543 = vmul.f32 %v2744, %v3303
      %v3544 = vmul.f32 %v2746, %v3303
      %v3545 = vmul.f32 %v2748, %v3304
      %v3546 = vmul.f32 %v2750, %v3304
      %v3547 = vmul.f32 %v2752, %v3305
      %v3548 = vmul.f32 %v2754, %v3305
      %v3549 = vmul.f32 %v2756, %v3306
      %v3550 = vmul.f32 %v2758, %v3306
      %v3551 = vmul.f32 %v2760, %v3307
      %v3552 = vmul.f32 %v2762, %v3307
      %v3553 = vmul.f32 %v2764, %v3308
      %v3554 = vmul.f32 %v2766, %v3308
      %v3555 = vmul.f32 %v2768, %v3309
      %v3556 = vmul.f32 %v2770, %v3309
      %v3557 = vmul.f32 %v2772, %v3310
      %v3558 = vmul.f32 %v2774, %v3310
      %v3559 = vmul.f32 %v2776, %v3311
      %v3560 = vmul.f32 %v2778, %v3311
      %v3561 = vmul.f32 %v2780, %v3312
      %v3562 = vmul.f32 %v2782, %v3312
      %v3563 = vmul.f32 %v2784, %v3313
      %v3564 = vmul.f32 %v2786, %v3313
      %v3565 = vmul.f32 %v2788, %v3314
      %v3566 = vmul.f32 %v2790, %v3314
      %v3567 = vmul.f32 %v2792, %v3315
      %v3568 = vmul.f32 %v2794, %v3315
      %v3569 = vmul.f32 %v2796, %v3316
      %v3570 = vmul.f32 %v2798, %v3316
      %v3571 = vmul.f32 %v2800, %v3317
      %v3572 = vmul.f32 %v2802, %v3317
      %v3573 = vmul.f32 %v2804, %v3318
      %v3574 = vmul.f32 %v2806, %v3318
      %v3575 = vpack.c.bf16 %v3321, %v3319
      %v3576 = vpack.c.bf16 %v3322, %v3320
      %v3577 = vpack.c.bf16 %v3325, %v3323
      %v3578 = vpack.c.bf16 %v3326, %v3324
      %v3579 = vpack.c.bf16 %v3329, %v3327
      %v3580 = vpack.c.bf16 %v3330, %v3328
      %v3581 = vpack.c.bf16 %v3333, %v3331
      %v3582 = vpack.c.bf16 %v3334, %v3332
      %v3583 = vpack.c.bf16 %v3337, %v3335
      %v3584 = vpack.c.bf16 %v3338, %v3336
      %v3585 = vpack.c.bf16 %v3341, %v3339
      %v3586 = vpack.c.bf16 %v3342, %v3340
      %v3587 = vpack.c.bf16 %v3345, %v3343
      %v3588 = vpack.c.bf16 %v3346, %v3344
      %v3589 = vpack.c.bf16 %v3349, %v3347
      %v3590 = vpack.c.bf16 %v3350, %v3348
      %v3591 = vpack.c.bf16 %v3353, %v3351
      %v3592 = vpack.c.bf16 %v3354, %v3352
      %v3593 = vpack.c.bf16 %v3357, %v3355
      %v3594 = vpack.c.bf16 %v3358, %v3356
      %v3595 = vpack.c.bf16 %v3361, %v3359
      %v3596 = vpack.c.bf16 %v3362, %v3360
      %v3597 = vpack.c.bf16 %v3365, %v3363
      %v3598 = vpack.c.bf16 %v3366, %v3364
      %v3599 = vpack.c.bf16 %v3369, %v3367
      %v3600 = vpack.c.bf16 %v3370, %v3368
      %v3601 = vpack.c.bf16 %v3373, %v3371
      %v3602 = vpack.c.bf16 %v3374, %v3372
      %v3603 = vpack.c.bf16 %v3377, %v3375
      %v3604 = vpack.c.bf16 %v3378, %v3376
      %v3605 = vpack.c.bf16 %v3381, %v3379
      %v3606 = vpack.c.bf16 %v3382, %v3380
      %v3607 = vpack.c.bf16 %v3385, %v3383
      %v3608 = vpack.c.bf16 %v3386, %v3384
      %v3609 = vpack.c.bf16 %v3389, %v3387
      %v3610 = vpack.c.bf16 %v3390, %v3388
      %v3611 = vpack.c.bf16 %v3393, %v3391
      %v3612 = vpack.c.bf16 %v3394, %v3392
      %v3613 = vpack.c.bf16 %v3397, %v3395
      %v3614 = vpack.c.bf16 %v3398, %v3396
      %v3615 = vpack.c.bf16 %v3401, %v3399
      %v3616 = vpack.c.bf16 %v3402, %v3400
      %v3617 = vpack.c.bf16 %v3405, %v3403
      %v3618 = vpack.c.bf16 %v3406, %v3404
      %v3619 = vpack.c.bf16 %v3409, %v3407
      %v3620 = vpack.c.bf16 %v3410, %v3408
      %v3621 = vpack.c.bf16 %v3413, %v3411
      %v3622 = vpack.c.bf16 %v3414, %v3412
      %v3623 = vpack.c.bf16 %v3417, %v3415
      %v3624 = vpack.c.bf16 %v3418, %v3416
      %v3625 = vpack.c.bf16 %v3421, %v3419
      %v3626 = vpack.c.bf16 %v3422, %v3420
      %v3627 = vpack.c.bf16 %v3425, %v3423
      %v3628 = vpack.c.bf16 %v3426, %v3424
      %v3629 = vpack.c.bf16 %v3429, %v3427
      %v3630 = vpack.c.bf16 %v3430, %v3428
      %v3631 = vpack.c.bf16 %v3433, %v3431
      %v3632 = vpack.c.bf16 %v3434, %v3432
      %v3633 = vpack.c.bf16 %v3437, %v3435
      %v3634 = vpack.c.bf16 %v3438, %v3436
      %v3635 = vpack.c.bf16 %v3441, %v3439
      %v3636 = vpack.c.bf16 %v3442, %v3440
      %v3637 = vpack.c.bf16 %v3445, %v3443
      %v3638 = vpack.c.bf16 %v3446, %v3444
      %v3639 = vpack.c.bf16 %v3449, %v3447
      %v3640 = vpack.c.bf16 %v3450, %v3448
      %v3641 = vpack.c.bf16 %v3453, %v3451
      %v3642 = vpack.c.bf16 %v3454, %v3452
      %v3643 = vpack.c.bf16 %v3457, %v3455
      %v3644 = vpack.c.bf16 %v3458, %v3456
      %v3645 = vpack.c.bf16 %v3461, %v3459
      %v3646 = vpack.c.bf16 %v3462, %v3460
      %v3647 = vpack.c.bf16 %v3465, %v3463
      %v3648 = vpack.c.bf16 %v3466, %v3464
      %v3649 = vpack.c.bf16 %v3469, %v3467
      %v3650 = vpack.c.bf16 %v3470, %v3468
      %v3651 = vpack.c.bf16 %v3473, %v3471
      %v3652 = vpack.c.bf16 %v3474, %v3472
      %v3653 = vpack.c.bf16 %v3477, %v3475
      %v3654 = vpack.c.bf16 %v3478, %v3476
      %v3655 = vpack.c.bf16 %v3481, %v3479
      %v3656 = vpack.c.bf16 %v3482, %v3480
      %v3657 = vpack.c.bf16 %v3485, %v3483
      %v3658 = vpack.c.bf16 %v3486, %v3484
      %v3659 = vpack.c.bf16 %v3489, %v3487
      %v3660 = vpack.c.bf16 %v3490, %v3488
      %v3661 = vpack.c.bf16 %v3493, %v3491
      %v3662 = vpack.c.bf16 %v3494, %v3492
      %v3663 = vpack.c.bf16 %v3497, %v3495
      %v3664 = vpack.c.bf16 %v3498, %v3496
      %v3665 = vpack.c.bf16 %v3501, %v3499
      %v3666 = vpack.c.bf16 %v3502, %v3500
      %v3667 = vpack.c.bf16 %v3505, %v3503
      %v3668 = vpack.c.bf16 %v3506, %v3504
      %v3669 = vpack.c.bf16 %v3509, %v3507
      %v3670 = vpack.c.bf16 %v3510, %v3508
      %v3671 = vpack.c.bf16 %v3513, %v3511
      %v3672 = vpack.c.bf16 %v3514, %v3512
      %v3673 = vpack.c.bf16 %v3517, %v3515
      %v3674 = vpack.c.bf16 %v3518, %v3516
      %v3675 = vpack.c.bf16 %v3521, %v3519
      %v3676 = vpack.c.bf16 %v3522, %v3520
      %v3677 = vpack.c.bf16 %v3525, %v3523
      %v3678 = vpack.c.bf16 %v3526, %v3524
      %v3679 = vpack.c.bf16 %v3529, %v3527
      %v3680 = vpack.c.bf16 %v3530, %v3528
      %v3681 = vpack.c.bf16 %v3533, %v3531
      %v3682 = vpack.c.bf16 %v3534, %v3532
      %v3683 = vpack.c.bf16 %v3537, %v3535
      %v3684 = vpack.c.bf16 %v3538, %v3536
      %v3685 = vpack.c.bf16 %v3541, %v3539
      %v3686 = vpack.c.bf16 %v3542, %v3540
      %v3687 = vpack.c.bf16 %v3545, %v3543
      %v3688 = vpack.c.bf16 %v3546, %v3544
      %v3689 = vpack.c.bf16 %v3549, %v3547
      %v3690 = vpack.c.bf16 %v3550, %v3548
      %v3691 = vpack.c.bf16 %v3553, %v3551
      %v3692 = vpack.c.bf16 %v3554, %v3552
      %v3693 = vpack.c.bf16 %v3557, %v3555
      %v3694 = vpack.c.bf16 %v3558, %v3556
      %v3695 = vpack.c.bf16 %v3561, %v3559
      %v3696 = vpack.c.bf16 %v3562, %v3560
      %v3697 = vpack.c.bf16 %v3565, %v3563
      %v3698 = vpack.c.bf16 %v3566, %v3564
      %v3699 = vpack.c.bf16 %v3569, %v3567
      %v3700 = vpack.c.bf16 %v3570, %v3568
      %v3701 = vpack.c.bf16 %v3573, %v3571
      %v3702 = vpack.c.bf16 %v3574, %v3572
      %v3704 = vunpack.c.l.b16 %v309
      %v3705 = vunpack.c.h.b16 %v309
      %v3706 = vpack.c.b16 %v3704, %v3704
      %v3707 = vpack.c.b16 %v3705, %v3705
      %3710 = vmatprep.subr.bf16.mxu0 %v3576
      %3711 = vmatpush1.bf16.xpose.msra.mxu0 %v3575
      %3712 = vmatprep.subr.bf16.mxu0 %v3578
      %3713 = vmatpush1.bf16.xpose.msra.mxu0 %v3577
      %3714 = vmatprep.subr.bf16.mxu0 %v3580
      %3715 = vmatpush1.bf16.xpose.msra.mxu0 %v3579
      %3716 = vmatprep.subr.bf16.mxu0 %v3582
      %3717 = vmatpush1.bf16.xpose.msra.mxu0 %v3581
      %3718 = vmatprep.subr.bf16.mxu0 %v3584
      %3719 = vmatpush1.bf16.xpose.msra.mxu0 %v3583
      %3720 = vmatprep.subr.bf16.mxu0 %v3586
      %3721 = vmatpush1.bf16.xpose.msra.mxu0 %v3585
      %3722 = vmatprep.subr.bf16.mxu0 %v3588
      %3723 = vmatpush1.bf16.xpose.msra.mxu0 %v3587
      %3724 = vmatprep.subr.bf16.mxu0 %v3590
      %3725 = vmatpush1.bf16.xpose.msra.mxu0 %v3589
      %3726 = vmatprep.subr.bf16.mxu0 %v3592
      %3727 = vmatpush1.bf16.xpose.msra.mxu0 %v3591
      %3728 = vmatprep.subr.bf16.mxu0 %v3594
      %3729 = vmatpush1.bf16.xpose.msra.mxu0 %v3593
      %3730 = vmatprep.subr.bf16.mxu0 %v3596
      %3731 = vmatpush1.bf16.xpose.msra.mxu0 %v3595
      %3732 = vmatprep.subr.bf16.mxu0 %v3598
      %3733 = vmatpush1.bf16.xpose.msra.mxu0 %v3597
      %3734 = vmatprep.subr.bf16.mxu0 %v3600
      %3735 = vmatpush1.bf16.xpose.msra.mxu0 %v3599
      %3736 = vmatprep.subr.bf16.mxu0 %v3602
      %3737 = vmatpush1.bf16.xpose.msra.mxu0 %v3601
      %3738 = vmatprep.subr.bf16.mxu0 %v3604
      %3739 = vmatpush1.bf16.xpose.msra.mxu0 %v3603
      %3740 = vmatprep.subr.bf16.mxu0 %v3606
      %3741 = vmatpush1.bf16.xpose.msra.mxu0 %v3605
      %3742 = vmatprep.mubr.bf16.mxu0 %v3707
      %3743 = vmatmul.mubr.bf16.gmra.mrb[0].mxu0 %v3706
      %v3744 = vpop.f32.mrb[0].mxu0
      %v3745 = vadd.f32 0.0, %v3744
      %v3746 = vpop.f32.mrb[0].mxu0
      %v3747 = vadd.f32 0.0, %v3746
      %v3748 = vpop.f32.mrb[0].mxu0
      %v3749 = vpop.f32.mrb[0].mxu0
      %3750 = vdwg.mxu0
      %v3752 = vunpack.c.l.b16 %v310
      %v3753 = vunpack.c.h.b16 %v310
      %v3754 = vpack.c.b16 %v3752, %v3752
      %v3755 = vpack.c.b16 %v3753, %v3753
      %3758 = vmatprep.subr.bf16.mxu0 %v3608
      %3759 = vmatpush1.bf16.xpose.msra.mxu0 %v3607
      %3760 = vmatprep.subr.bf16.mxu0 %v3610
      %3761 = vmatpush1.bf16.xpose.msra.mxu0 %v3609
      %3762 = vmatprep.subr.bf16.mxu0 %v3612
      %3763 = vmatpush1.bf16.xpose.msra.mxu0 %v3611
      %3764 = vmatprep.subr.bf16.mxu0 %v3614
      %3765 = vmatpush1.bf16.xpose.msra.mxu0 %v3613
      %3766 = vmatprep.subr.bf16.mxu0 %v3616
      %3767 = vmatpush1.bf16.xpose.msra.mxu0 %v3615
      %3768 = vmatprep.subr.bf16.mxu0 %v3618
      %3769 = vmatpush1.bf16.xpose.msra.mxu0 %v3617
      %3770 = vmatprep.subr.bf16.mxu0 %v3620
      %3771 = vmatpush1.bf16.xpose.msra.mxu0 %v3619
      %3772 = vmatprep.subr.bf16.mxu0 %v3622
      %3773 = vmatpush1.bf16.xpose.msra.mxu0 %v3621
      %3774 = vmatprep.subr.bf16.mxu0 %v3624
      %3775 = vmatpush1.bf16.xpose.msra.mxu0 %v3623
      %3776 = vmatprep.subr.bf16.mxu0 %v3626
      %3777 = vmatpush1.bf16.xpose.msra.mxu0 %v3625
      %3778 = vmatprep.subr.bf16.mxu0 %v3628
      %3779 = vmatpush1.bf16.xpose.msra.mxu0 %v3627
      %3780 = vmatprep.subr.bf16.mxu0 %v3630
      %3781 = vmatpush1.bf16.xpose.msra.mxu0 %v3629
      %3782 = vmatprep.subr.bf16.mxu0 %v3632
      %3783 = vmatpush1.bf16.xpose.msra.mxu0 %v3631
      %3784 = vmatprep.subr.bf16.mxu0 %v3634
      %3785 = vmatpush1.bf16.xpose.msra.mxu0 %v3633
      %3786 = vmatprep.subr.bf16.mxu0 %v3636
      %3787 = vmatpush1.bf16.xpose.msra.mxu0 %v3635
      %3788 = vmatprep.subr.bf16.mxu0 %v3638
      %3789 = vmatpush1.bf16.xpose.msra.mxu0 %v3637
      %3790 = vmatprep.mubr.bf16.mxu0 %v3755
      %3791 = vmatmul.mubr.bf16.gmra.mrb[0].mxu0 %v3754
      %v3792 = vpop.f32.mrb[0].mxu0
      %v3793 = vadd.f32 0.0, %v3792
      %v3794 = vpop.f32.mrb[0].mxu0
      %v3795 = vadd.f32 0.0, %v3794
      %v3796 = vpop.f32.mrb[0].mxu0
      %v3797 = vpop.f32.mrb[0].mxu0
      %3798 = vdwg.mxu0
      %v3800 = vunpack.c.l.b16 %v311
      %v3801 = vunpack.c.h.b16 %v311
      %v3802 = vpack.c.b16 %v3800, %v3800
      %v3803 = vpack.c.b16 %v3801, %v3801
      %3806 = vmatprep.subr.bf16.mxu0 %v3640
      %3807 = vmatpush1.bf16.xpose.msra.mxu0 %v3639
      %3808 = vmatprep.subr.bf16.mxu0 %v3642
      %3809 = vmatpush1.bf16.xpose.msra.mxu0 %v3641
      %3810 = vmatprep.subr.bf16.mxu0 %v3644
      %3811 = vmatpush1.bf16.xpose.msra.mxu0 %v3643
      %3812 = vmatprep.subr.bf16.mxu0 %v3646
      %3813 = vmatpush1.bf16.xpose.msra.mxu0 %v3645
      %3814 = vmatprep.subr.bf16.mxu0 %v3648
      %3815 = vmatpush1.bf16.xpose.msra.mxu0 %v3647
      %3816 = vmatprep.subr.bf16.mxu0 %v3650
      %3817 = vmatpush1.bf16.xpose.msra.mxu0 %v3649
      %3818 = vmatprep.subr.bf16.mxu0 %v3652
      %3819 = vmatpush1.bf16.xpose.msra.mxu0 %v3651
      %3820 = vmatprep.subr.bf16.mxu0 %v3654
      %3821 = vmatpush1.bf16.xpose.msra.mxu0 %v3653
      %3822 = vmatprep.subr.bf16.mxu0 %v3656
      %3823 = vmatpush1.bf16.xpose.msra.mxu0 %v3655
      %3824 = vmatprep.subr.bf16.mxu0 %v3658
      %3825 = vmatpush1.bf16.xpose.msra.mxu0 %v3657
      %3826 = vmatprep.subr.bf16.mxu0 %v3660
      %3827 = vmatpush1.bf16.xpose.msra.mxu0 %v3659
      %3828 = vmatprep.subr.bf16.mxu0 %v3662
      %3829 = vmatpush1.bf16.xpose.msra.mxu0 %v3661
      %3830 = vmatprep.subr.bf16.mxu0 %v3664
      %3831 = vmatpush1.bf16.xpose.msra.mxu0 %v3663
      %3832 = vmatprep.subr.bf16.mxu0 %v3666
      %3833 = vmatpush1.bf16.xpose.msra.mxu0 %v3665
      %3834 = vmatprep.subr.bf16.mxu0 %v3668
      %3835 = vmatpush1.bf16.xpose.msra.mxu0 %v3667
      %3836 = vmatprep.subr.bf16.mxu0 %v3670
      %3837 = vmatpush1.bf16.xpose.msra.mxu0 %v3669
      %3838 = vmatprep.mubr.bf16.mxu0 %v3803
      %3839 = vmatmul.mubr.bf16.gmra.mrb[0].mxu0 %v3802
      %v3840 = vpop.f32.mrb[0].mxu0
      %v3841 = vadd.f32 0.0, %v3840
      %v3842 = vpop.f32.mrb[0].mxu0
      %v3843 = vadd.f32 0.0, %v3842
      %v3844 = vpop.f32.mrb[0].mxu0
      %v3845 = vpop.f32.mrb[0].mxu0
      %3846 = vdwg.mxu0
      %v3848 = vunpack.c.l.b16 %v312
      %v3849 = vunpack.c.h.b16 %v312
      %v3850 = vpack.c.b16 %v3848, %v3848
      %v3851 = vpack.c.b16 %v3849, %v3849
      %3854 = vmatprep.subr.bf16.mxu0 %v3672
      %3855 = vmatpush1.bf16.xpose.msra.mxu0 %v3671
      %3856 = vmatprep.subr.bf16.mxu0 %v3674
      %3857 = vmatpush1.bf16.xpose.msra.mxu0 %v3673
      %3858 = vmatprep.subr.bf16.mxu0 %v3676
      %3859 = vmatpush1.bf16.xpose.msra.mxu0 %v3675
      %3860 = vmatprep.subr.bf16.mxu0 %v3678
      %3861 = vmatpush1.bf16.xpose.msra.mxu0 %v3677
      %3862 = vmatprep.subr.bf16.mxu0 %v3680
      %3863 = vmatpush1.bf16.xpose.msra.mxu0 %v3679
      %3864 = vmatprep.subr.bf16.mxu0 %v3682
      %3865 = vmatpush1.bf16.xpose.msra.mxu0 %v3681
      %3866 = vmatprep.subr.bf16.mxu0 %v3684
      %3867 = vmatpush1.bf16.xpose.msra.mxu0 %v3683
      %3868 = vmatprep.subr.bf16.mxu0 %v3686
      %3869 = vmatpush1.bf16.xpose.msra.mxu0 %v3685
      %3870 = vmatprep.subr.bf16.mxu0 %v3688
      %3871 = vmatpush1.bf16.xpose.msra.mxu0 %v3687
      %3872 = vmatprep.subr.bf16.mxu0 %v3690
      %3873 = vmatpush1.bf16.xpose.msra.mxu0 %v3689
      %3874 = vmatprep.subr.bf16.mxu0 %v3692
      %3875 = vmatpush1.bf16.xpose.msra.mxu0 %v3691
      %3876 = vmatprep.subr.bf16.mxu0 %v3694
      %3877 = vmatpush1.bf16.xpose.msra.mxu0 %v3693
      %3878 = vmatprep.subr.bf16.mxu0 %v3696
      %3879 = vmatpush1.bf16.xpose.msra.mxu0 %v3695
      %3880 = vmatprep.subr.bf16.mxu0 %v3698
      %3881 = vmatpush1.bf16.xpose.msra.mxu0 %v3697
      %3882 = vmatprep.subr.bf16.mxu0 %v3700
      %3883 = vmatpush1.bf16.xpose.msra.mxu0 %v3699
      %3884 = vmatprep.subr.bf16.mxu0 %v3702
      %3885 = vmatpush1.bf16.xpose.msra.mxu0 %v3701
      %3886 = vmatprep.mubr.bf16.mxu0 %v3851
      %3887 = vmatmul.mubr.bf16.gmra.mrb[0].mxu0 %v3850
      %v3888 = vpop.f32.mrb[0].mxu0
      %v3889 = vadd.f32 0.0, %v3888
      %v3890 = vpop.f32.mrb[0].mxu0
      %v3891 = vadd.f32 0.0, %v3890
      %v3892 = vpop.f32.mrb[0].mxu0
      %v3893 = vpop.f32.mrb[0].mxu0
      %3894 = vdwg.mxu0
      %v3895 = vpack.c.bf16 %v3793, %v3745
      %v3896 = vpack.c.bf16 %v3795, %v3747
      %v3897 = vpack.c.bf16 %v3889, %v3841
      %v3898 = vpack.c.bf16 %v3891, %v3843
      %v3899 = vld [vmem:[%s3] sm:$0xf]
      %v3900 = vld [vmem:[%s3 + $0x4] sm:$0xf]
      %v3901 = vld [vmem:[%s3 + $0x8] sm:$0xf]
      %v3902 = vld [vmem:[%s3 + $0xc] sm:$0xf]
      %v3903 = vld [vmem:[%s4] sm:$0xff]
      %v3904 = vld [vmem:[%s4 + $0x8] sm:$0xff]
      %v3905 = vld [vmem:[%s4 + $0x10] sm:$0xff]
      %v3906 = vld [vmem:[%s4 + $0x18] sm:$0xff]
      %3908 = vset.pattern.permute.xlu0 0
      %3909 = vperm.xlu0 %3908, %v3903
      %v3910 = vpop.permute.xlu0 %3909
      %3913 = vset.pattern.permute.xlu0 0
      %3914 = vperm.xlu0 %3913, %v3904
      %v3915 = vpop.permute.xlu0 %3914
      %3918 = vset.pattern.permute.xlu0 0
      %3919 = vperm.xlu0 %3918, %v3905
      %v3920 = vpop.permute.xlu0 %3919
      %3923 = vset.pattern.permute.xlu0 0
      %3924 = vperm.xlu0 %3923, %v3906
      %v3925 = vpop.permute.xlu0 %3924
      %v3931 = vunpack.c.l.b16 %v3899
      %v3932 = vunpack.c.l.b16 %v3900
      %v3933 = vunpack.c.l.b16 %v3901
      %v3934 = vunpack.c.l.b16 %v3902
      %v3935 = vpack.c.b16 %v3932, %v3931
      %v3936 = vpack.c.b16 %v3934, %v3933
      %vm3937 = vcmask 261120
      %v3939 = vsel %vm3937, %v3935, 0
      %v3942 = vsel %vm3937, %v3936, 0
      %3944 = vmatprep.subr.bf16.mxu0 %v3896
      %3945 = vmatpush1.bf16.msra.mxu0 %v3895
      %3946 = vmatprep.subr.bf16.mxu0 %v3898
      %3947 = vmatpush1.bf16.msra.mxu0 %v3897
      %3948 = vmatprep.subr.bf16.mxu0 0
      %3949 = vmatpush1.bf16.msra.mxu0 0
      %3950 = vmatprep.subr.bf16.mxu0 0
      %3951 = vmatpush1.bf16.msra.mxu0 0
      %3952 = vmatprep.subr.bf16.mxu0 0
      %3953 = vmatpush1.bf16.msra.mxu0 0
      %3954 = vmatprep.subr.bf16.mxu0 0
      %3955 = vmatpush1.bf16.msra.mxu0 0
      %3956 = vmatprep.subr.bf16.mxu0 0
      %3957 = vmatpush1.bf16.msra.mxu0 0
      %3958 = vmatprep.subr.bf16.mxu0 0
      %3959 = vmatpush1.bf16.msra.mxu0 0
      %3960 = vmatprep.subr.bf16.mxu0 0
      %3961 = vmatpush1.bf16.msra.mxu0 0
      %3962 = vmatprep.subr.bf16.mxu0 0
      %3963 = vmatpush1.bf16.msra.mxu0 0
      %3964 = vmatprep.subr.bf16.mxu0 0
      %3965 = vmatpush1.bf16.msra.mxu0 0
      %3966 = vmatprep.subr.bf16.mxu0 0
      %3967 = vmatpush1.bf16.msra.mxu0 0
      %3968 = vmatprep.subr.bf16.mxu0 0
      %3969 = vmatpush1.bf16.msra.mxu0 0
      %3970 = vmatprep.subr.bf16.mxu0 0
      %3971 = vmatpush1.bf16.msra.mxu0 0
      %3972 = vmatprep.subr.bf16.mxu0 0
      %3973 = vmatpush1.bf16.msra.mxu0 0
      %3974 = vmatprep.subr.bf16.mxu0 0
      %3975 = vmatpush1.bf16.msra.mxu0 0
      %3976 = vmatprep.mubr.bf16.mxu0 0
      %3977 = vmatmul.mubr.bf16.gmra.mrb[0].mxu0 %v3939
      %v3978 = vpop.f32.mrb[0].mxu0
      %v3979 = vadd.f32 %v3910, %v3978
      %v3980 = vpop.f32.mrb[0].mxu0
      %v3981 = vadd.f32 %v3910, %v3980
      %v3982 = vpop.f32.mrb[0].mxu0
      %v3983 = vadd.f32 %v3915, %v3982
      %v3984 = vpop.f32.mrb[0].mxu0
      %v3985 = vadd.f32 %v3915, %v3984
      %3986 = vmatprep.mubr.bf16.mxu0 0
      %3987 = vmatmul.mubr.bf16.gmra.mrb[0].mxu0 %v3942
      %v3988 = vpop.f32.mrb[0].mxu0
      %v3989 = vadd.f32 %v3920, %v3988
      %v3990 = vpop.f32.mrb[0].mxu0
      %v3991 = vadd.f32 %v3920, %v3990
      %v3992 = vpop.f32.mrb[0].mxu0
      %v3993 = vadd.f32 %v3925, %v3992
      %v3994 = vpop.f32.mrb[0].mxu0
      %v3995 = vadd.f32 %v3925, %v3994
      %3996 = vdwg.mxu0
      %3997 = vst [vmem:[%s302] sm:$0xff] %v3979
      %3998 = vst [vmem:[%s302 + $0x8] sm:$0xff] %v3981
      %3999 = vst [vmem:[%s302 + $0x10] sm:$0xff] %v3983
      %4000 = vst [vmem:[%s302 + $0x18] sm:$0xff] %v3985
      %4001 = vst [vmem:[%s302 + $0x20] sm:$0xff] %v3989
      %4002 = vst [vmem:[%s302 + $0x28] sm:$0xff] %v3991
      %4003 = vst [vmem:[%s302 + $0x30] sm:$0xff] %v3993
      %4004 = vst [vmem:[%s302 + $0x38] sm:$0xff] %v3995
      %s4005 = smul.u32 2, %s21
      %p4006 = scmp.lt.s32.totalorder %s20, 1
      %s4007 = scalar_select %p4006, %s20, 1
      %p4008 = scmp.lt.s32.totalorder %s4005, 1
      %s4009 = scalar_select %p4008, %s4005, 1
      %s4010 = smul.addr %s4007, 8
      %s4011 = sadd.s32 %s4009, %s4010
      %s4012 = smul.addr %s4011, 8
      %s4013 = scalar_lea.vmem %s5, %s4012
      // Predicated region
      $region41: #{cross_attention_fast.3} parent=39 // pred_check
        %p4014 = pneg %p170
      $region42: #{cross_attention_fast.3} parent=39 // pred_check_branch
        %4016 = sbr.rel (%p4014) target = $region44
      $region43: #{cross_attention_fast.3} parent=39 // pred_region
        %s4017 = smul.u32 2, %s21
      $region44: #{cross_attention_fast.3} parent=39 // pred_fallthru
        _
    $region40: #{cross_attention_fast.3} parent=5 // pred_fallthru
      _
    %p4018 = scmp.le.s32.totalorder 2, %s11
    // Predicated region
    $region45: #{cross_attention_fast.3} parent=5 // pred_check
      %p4019 = pneg %p4018
    $region46: #{cross_attention_fast.3} parent=5 // pred_check_branch
      %4021 = sbr.rel (%p4019) target = $region48
    $region47: #{cross_attention_fast.3} parent=5 // pred_region
      %s4022 = ssub.s32 %s11, 2
      // Predicated region
      $region49: #{cross_attention_fast.3} parent=47 // pred_check
        %p4023 = pneg %p176
      $region50: #{cross_attention_fast.3} parent=47 // pred_check_branch
        %4025 = sbr.rel (%p4023) target = $region52
      $region51: #{cross_attention_fast.3} parent=47 // pred_region
        %s4026 = smul.u32 2, %s23
        %p4027 = scmp.lt.s32.totalorder %s22, 1
        %s4028 = scalar_select %p4027, %s22, 1
        %p4029 = scmp.lt.s32.totalorder %s4026, 1
        %s4030 = scalar_select %p4029, %s4026, 1
        %s4031 = smul.addr %s4028, 8
        %s4032 = sadd.s32 %s4030, %s4031
        %s4033 = smul.addr %s4032, 8
        %s4034 = scalar_lea.vmem %s5, %s4033
      $region52: #{cross_attention_fast.3} parent=47 // pred_fallthru
        _
    $region48: #{cross_attention_fast.3} parent=5 // pred_fallthru
      _
  $region6: #{cross_attention_fast.3} parent=0 // loop_footer
    %s15 = sadd.s32 1, %s11
  $region7: #{cross_attention_fast.3} parent=0 // loop_footer_branch
    %10 = sbr.rel target = $region3
  $region8: #{cross_attention_fast.3} parent=0 // loop_exit
    _

</llo_original>
